<compile_context>
chip_gen: v7x
topology: tpu7x:2x2x1
jax: 0.10.0
libtpu: 0.0.40
codegen_flags: <defaults>
</compile_context>

<pallas_src>
import functools

import jax
import jax.numpy as jnp
from jax.experimental import pallas as pl
from jax.experimental.pallas import tpu as pltpu

# ----------------------------- constants ------------------------------------
Z = 16            # latent dim
IMG_CHANNELS = 3  # n_out
IMG_SIZE = 8      # feature_map
KSIZE = 4
BN_EPS = 1e-5

LANES = 128       # output channels padded to a single 128-lane tile
TM_MAX = 2048     # max rows per grid tile (tanh layer)
CHUNK_ROWS = 256  # rows per in-kernel matmul chunk (32 f32 vregs per chunk)


def _row_tile(m, cap):
    """Largest divisor of m that is <= cap and sublane-aligned (or m itself)."""
    if m <= cap:
        return m
    for d in range(cap, 0, -1):
        if m % d == 0 and d % 8 == 0:
            return d
    return m


# ----------------------------- Pallas kernels -------------------------------
def _convt_bn_relu_kernel(a_ref, w_ref, o_ref, y_scr, *, inv_m, n_chunks, cm):
    """Fused (im2col matmul) -> BatchNorm2d(batch stats, gamma=1/beta=0) -> ReLU.

    Whole layer resident: A (M,K) bf16 and W (K,128) bf16 in VMEM, conv result
    kept only in the f32 VMEM scratch `y_scr`.  Pass 1 streams the matmul in
    `cm`-row chunks while accumulating per-column sum / sum-of-squares in f32;
    pass 2 normalizes + ReLUs from the scratch and stores bf16."""

    def mm_body(c, carry):
        s, ss = carry
        r0 = pl.multiple_of(c * cm, cm)
        y = jnp.dot(a_ref[pl.ds(r0, cm), :], w_ref[...],
                    preferred_element_type=jnp.float32)
        y_scr[pl.ds(r0, cm), :] = y
        s = s + jnp.sum(y, axis=0, keepdims=True)
        ss = ss + jnp.sum(y * y, axis=0, keepdims=True)
        return s, ss

    zeros = jnp.zeros((1, LANES), jnp.float32)
    sums, ssqs = jax.lax.fori_loop(0, n_chunks, mm_body, (zeros, zeros))

    mean = sums * inv_m
    # NOTE: E[x^2] - mean^2 form (f32, clamped at 0); fine at these magnitudes.
    var = jnp.maximum(ssqs * inv_m - mean * mean, 0.0)
    scale = jax.lax.rsqrt(var + BN_EPS)     # gamma = 1 (PyTorch default)
    shift = -mean * scale                   # beta  = 0 (PyTorch default)

    def norm_body(c, carry):
        r0 = pl.multiple_of(c * cm, cm)
        y = y_scr[pl.ds(r0, cm), :]
        o_ref[pl.ds(r0, cm), :] = jnp.maximum(
            y * scale + shift, 0.0).astype(o_ref.dtype)
        return carry

    jax.lax.fori_loop(0, n_chunks, norm_body, 0)


def _convt_tanh_kernel(a_ref, w_ref, o_ref, *, n_chunks, cm):
    """Fused (im2col matmul) -> Tanh, streamed in `cm`-row chunks."""

    def body(c, carry):
        r0 = pl.multiple_of(c * cm, cm)
        y = jnp.dot(a_ref[pl.ds(r0, cm), :], w_ref[...],
                    preferred_element_type=jnp.float32)
        o_ref[pl.ds(r0, cm), :] = jnp.tanh(y).astype(o_ref.dtype)
        return carry

    jax.lax.fori_loop(0, n_chunks, body, 0)


# ----------------------------- kernel wrappers -------------------------------
def fused_convt_bn_relu(a_bf16, w_pad_bf16):
    """A (M,K) bf16 @ W (K,128) bf16 -> BatchNorm(batch stats) -> ReLU.
    One pallas_call; returns (M, 128) bf16 (padded lanes stay exactly zero)."""
    M, K = a_bf16.shape
    cm = _row_tile(M, CHUNK_ROWS)
    n_chunks = M // cm
    kernel = functools.partial(_convt_bn_relu_kernel,
                               inv_m=1.0 / M, n_chunks=n_chunks, cm=cm)
    return pl.pallas_call(
        kernel,
        out_shape=jax.ShapeDtypeStruct((M, LANES), jnp.bfloat16),
        grid_spec=pltpu.PrefetchScalarGridSpec(
            num_scalar_prefetch=0,
            grid=(1,),
            in_specs=[pl.BlockSpec((M, K), lambda i: (0, 0)),
                      pl.BlockSpec((K, LANES), lambda i: (0, 0))],
            out_specs=pl.BlockSpec((M, LANES), lambda i: (0, 0)),
            scratch_shapes=[pltpu.VMEM((M, LANES), jnp.float32)]),
        compiler_params=pltpu.CompilerParams(
            dimension_semantics=("arbitrary",)),
    )(a_bf16, w_pad_bf16)


def fused_convt_tanh(a_bf16, w_pad_bf16):
    """A (M,K) bf16 @ W (K,128) bf16 -> Tanh.  Row-tiled 'parallel' grid so
    v7x's two TensorCores split the largest layer; returns (M, 128) bf16."""
    M, K = a_bf16.shape
    tm = _row_tile(M, TM_MAX)
    n_tiles = M // tm
    cm = _row_tile(tm, CHUNK_ROWS)
    n_chunks = tm // cm
    kernel = functools.partial(_convt_tanh_kernel, n_chunks=n_chunks, cm=cm)
    return pl.pallas_call(
        kernel,
        out_shape=jax.ShapeDtypeStruct((M, LANES), jnp.bfloat16),
        grid_spec=pltpu.PrefetchScalarGridSpec(
            num_scalar_prefetch=0,
            grid=(n_tiles,),
            in_specs=[pl.BlockSpec((tm, K), lambda i: (i, 0)),
                      pl.BlockSpec((K, LANES), lambda i: (0, 0))],
            out_specs=pl.BlockSpec((tm, LANES), lambda i: (i, 0))),
        compiler_params=pltpu.CompilerParams(
            dimension_semantics=("parallel",)),
    )(a_bf16, w_pad_bf16)


# ------------------------ ConvTranspose2d lowering (glue) --------------------
def convtranspose_im2col(x_nhwc, k, stride, padding):
    """ConvTranspose2d == stride-1 correlation of the zero-dilated,
    (k-1-p)-padded input with the spatially flipped kernel.  Returns the
    bf16 patch matrix A (N*Ho*Wo, k*k*Cin), columns ordered (kh, kw, ci)."""
    # TODO(synk): do this shifted-window gather inside the Pallas kernel
    # ((kh,kw) as an in-kernel accumulation over pl.ds windows of the dilated
    # input) so the k^2-times patch matrix is never materialized in HBM.
    N, H, W, Cin = x_nhwc.shape
    x = x_nhwc.astype(jnp.bfloat16)
    Hd = (H - 1) * stride + 1
    Wd = (W - 1) * stride + 1
    y = jnp.zeros((N, Hd, Wd, Cin), jnp.bfloat16)
    y = y.at[:, ::stride, ::stride, :].set(x)
    pad = k - 1 - padding
    y = jnp.pad(y, ((0, 0), (pad, pad), (pad, pad), (0, 0)))
    Hout = (H - 1) * stride - 2 * padding + k
    Wout = (W - 1) * stride - 2 * padding + k
    patches = [y[:, kh:kh + Hout, kw:kw + Wout, :]
               for kh in range(k) for kw in range(k)]
    patches = jnp.stack(patches, axis=3)              # (N, Ho, Wo, k*k, Cin)
    A = patches.reshape(N * Hout * Wout, k * k * Cin)
    return A, Hout, Wout


def convtranspose_weight_matrix(w):
    """PyTorch layout (Cin, Cout, kH, kW) -> (kH*kW*Cin, 128) bf16 matrix,
    spatially flipped and zero-padded along the output-channel (lane) axis."""
    Cin, Cout, kh, kw = w.shape
    wf = w[:, :, ::-1, ::-1]                          # spatial flip
    wm = jnp.transpose(wf, (2, 3, 0, 1)).reshape(kh * kw * Cin, Cout)
    wm = jnp.pad(wm, ((0, 0), (0, LANES - Cout)))     # exact zeros in pad lanes
    return wm.astype(jnp.bfloat16)


# ----------------------------- Generator forward ----------------------------
def init_generator_params(key):
    """Deterministic synthetic weights (bias=False everywhere, as in module)."""
    fm = IMG_SIZE
    layer_channels = [(Z, fm * 8), (fm * 8, fm * 4), (fm * 4, fm * 2),
                      (fm * 2, fm), (fm, IMG_CHANNELS)]
    params = {}
    for i, (cin, cout) in enumerate(layer_channels):
        key, sub = jax.random.split(key)
        params[f"w{i}"] = 0.02 * jax.random.normal(
            sub, (cin, cout, KSIZE, KSIZE), dtype=jnp.float32)
    return params


def generator_forward(z_nchw, params):
    """z_nchw: (N, Z, 1, 1) -> (N, IMG_CHANNELS, 64, 64), f32.  Matches the
    PyTorch Sequential (ConvT -> BN -> ReLU) x4 -> ConvT -> Tanh (training-mode
    BatchNorm batch statistics, gamma=1 / beta=0 defaults)."""
    configs = [(1, 0), (2, 1), (2, 1), (2, 1), (2, 1)]   # (stride, padding)
    x = jnp.transpose(z_nchw, (0, 2, 3, 1))              # NHWC
    n_batch = x.shape[0]
    n_layers = len(configs)

    for i, (stride, padding) in enumerate(configs):
        w = params[f"w{i}"]
        cout = w.shape[1]
        A, Hout, Wout = convtranspose_im2col(x, KSIZE, stride, padding)
        Wm = convtranspose_weight_matrix(w)
        if i < n_layers - 1:
            y = fused_convt_bn_relu(A, Wm)   # (M, 128) bf16, padded cols == 0
        else:
            y = fused_convt_tanh(A, Wm)      # (M, 128) bf16
        x = y[:, :cout].reshape(n_batch, Hout, Wout, cout)

    # Final cast to f32 fuses with the NCHW transpose.
    return jnp.transpose(x, (0, 3, 1, 2)).astype(jnp.float32)


# ---------------------------------- main -------------------------------------
if __name__ == "__main__":
    key = jax.random.PRNGKey(0)
    pkey, zkey = jax.random.split(key)

    params = init_generator_params(pkey)
    z = jax.random.normal(zkey, (2, Z, 1, 1), dtype=jnp.float32)  # latent NCHW

    fwd = jax.jit(generator_forward)
    out = jax.block_until_ready(fwd(z, params))

    assert out.shape == (2, IMG_CHANNELS, 64, 64), out.shape
    assert bool(jnp.all(jnp.isfinite(out)))
    assert bool(jnp.all(jnp.abs(out) <= 1.0 + 1e-6))   # tanh range
    print("KERNEL_OK")
</pallas_src>

<mosaic_0001>
module attributes {stable_mosaic.version = 11 : i64} {
  func.func @_convt_bn_relu_kernel(%arg0: i32, %arg1: memref<32x256xbf16, #tpu.memory_space<vmem>>, %arg2: memref<256x128xbf16, #tpu.memory_space<vmem>>, %arg3: memref<32x128xbf16, #tpu.memory_space<vmem>>, %arg4: memref<32x128xf32, #tpu.memory_space<vmem>>) attributes {dimension_semantics = [#tpu.dimension_semantics<arbitrary>], iteration_bounds = array<i64: 1>, scalar_prefetch = 0 : i64, scratch_operands = 1 : i64, tpu.core_type = #tpu.core_type<tc>, window_params = [{pipeline_mode = #tpu.pipeline_mode<synchronous>, transform_indices = @transform_0, window_bounds = array<i64: 32, 256>}, {pipeline_mode = #tpu.pipeline_mode<synchronous>, transform_indices = @transform_1, window_bounds = array<i64: 256, 128>}, {pipeline_mode = #tpu.pipeline_mode<synchronous>, transform_indices = @transform_2, window_bounds = array<i64: 32, 128>}]} {
    %cst = arith.constant 0.000000e+00 : f32
    %0 = vector.broadcast %cst : f32 to vector<1x128xf32>
    %c0_i32 = arith.constant 0 : i32
    %c32_i32 = arith.constant 32 : i32
    %1 = arith.muli %c0_i32, %c32_i32 : i32
    %2 = tpu.assume_multiple %1, 32 : i32
    %3 = arith.index_cast %2 : i32 to index
    %c0 = arith.constant 0 : index
    %4 = vector.load %arg1[%3, %c0] : memref<32x256xbf16, #tpu.memory_space<vmem>>, vector<32x256xbf16>
    %c0_0 = arith.constant 0 : index
    %c0_1 = arith.constant 0 : index
    %5 = vector.load %arg2[%c0_0, %c0_1] : memref<256x128xbf16, #tpu.memory_space<vmem>>, vector<256x128xbf16>
    %cst_2 = arith.constant dense<0.000000e+00> : vector<32x128xf32>
    %6 = tpu.matmul %4, %5, %cst_2 {dimension_numbers = #tpu.dot_dimension_numbers<[1], [0], [0], [1], [0, 0, 1, 1], [], []>} : vector<32x256xbf16>, vector<256x128xbf16>, vector<32x128xf32> -> vector<32x128xf32>
    %7 = arith.index_cast %2 : i32 to index
    %c0_3 = arith.constant 0 : index
    %8 = vector.load %arg4[%7, %c0_3] : memref<32x128xf32, #tpu.memory_space<vmem>>, vector<32x128xf32>
    tpu.vector_store %arg4[%7, %c0_3], %6 {strides = array<i32>} : memref<32x128xf32, #tpu.memory_space<vmem>>, vector<32x128xf32>,
    %cst_4 = arith.constant dense<0.000000e+00> : vector<128xf32>
    %9 = vector.multi_reduction <add>, %6, %cst_4 [0] : vector<32x128xf32> to vector<128xf32>
    %10 = vector.shape_cast %9 : vector<128xf32> to vector<1x128xf32>
    %11 = arith.addf %0, %10 : vector<1x128xf32>
    %12 = arith.mulf %6, %6 : vector<32x128xf32>
    %cst_5 = arith.constant dense<0.000000e+00> : vector<128xf32>
    %13 = vector.multi_reduction <add>, %12, %cst_5 [0] : vector<32x128xf32> to vector<128xf32>
    %14 = vector.shape_cast %13 : vector<128xf32> to vector<1x128xf32>
    %15 = arith.addf %0, %14 : vector<1x128xf32>
    %c1_i32 = arith.constant 1 : i32
    %cst_6 = arith.constant 3.125000e-02 : f32
    %16 = vector.broadcast %cst_6 : f32 to vector<1x128xf32>
    %17 = arith.mulf %11, %16 : vector<1x128xf32>
    %cst_7 = arith.constant 3.125000e-02 : f32
    %18 = vector.broadcast %cst_7 : f32 to vector<1x128xf32>
    %19 = arith.mulf %15, %18 : vector<1x128xf32>
    %20 = arith.mulf %17, %17 : vector<1x128xf32>
    %21 = arith.subf %19, %20 : vector<1x128xf32>
    %cst_8 = arith.constant 0.000000e+00 : f32
    %22 = vector.broadcast %cst_8 : f32 to vector<1x128xf32>
    %23 = arith.maximumf %21, %22 : vector<1x128xf32>
    %cst_9 = arith.constant 9.99999974E-6 : f32
    %24 = vector.broadcast %cst_9 : f32 to vector<1x128xf32>
    %25 = arith.addf %23, %24 : vector<1x128xf32>
    %26 = math.rsqrt %25 : vector<1x128xf32>
    %cst_10 = arith.constant 0.000000e+00 : f32
    %27 = vector.broadcast %cst_10 : f32 to vector<1x128xf32>
    %28 = arith.subf %27, %17 : vector<1x128xf32>
    %29 = arith.mulf %28, %26 : vector<1x128xf32>
    %c0_i32_11 = arith.constant 0 : i32
    %c32_i32_12 = arith.constant 32 : i32
    %30 = arith.muli %c0_i32_11, %c32_i32_12 : i32
    %31 = tpu.assume_multiple %30, 32 : i32
    %32 = arith.index_cast %31 : i32 to index
    %c0_13 = arith.constant 0 : index
    %33 = vector.load %arg4[%32, %c0_13] : memref<32x128xf32, #tpu.memory_space<vmem>>, vector<32x128xf32>
    %34 = vector.broadcast %26 : vector<1x128xf32> to vector<32x128xf32>
    %35 = arith.mulf %33, %34 : vector<32x128xf32>
    %36 = vector.broadcast %29 : vector<1x128xf32> to vector<32x128xf32>
    %37 = arith.addf %35, %36 : vector<32x128xf32>
    %cst_14 = arith.constant 0.000000e+00 : f32
    %38 = vector.broadcast %cst_14 : f32 to vector<32x128xf32>
    %39 = arith.maximumf %37, %38 : vector<32x128xf32>
    %40 = arith.truncf %39 : vector<32x128xf32> to vector<32x128xbf16>
    %41 = arith.index_cast %31 : i32 to index
    %c0_15 = arith.constant 0 : index
    %42 = vector.load %arg3[%41, %c0_15] : memref<32x128xbf16, #tpu.memory_space<vmem>>, vector<32x128xbf16>
    tpu.vector_store %arg3[%41, %c0_15], %40 {strides = array<i32>} : memref<32x128xbf16, #tpu.memory_space<vmem>>, vector<32x128xbf16>,
    %c1_i32_16 = arith.constant 1 : i32
    return
  }
  func.func @transform_0(%arg0: i32) -> (i32, i32) {
    %c0_i32 = arith.constant 0 : i32
    %c0_i32_0 = arith.constant 0 : i32
    %c0_i32_1 = arith.constant 0 : i32
    return %c0_i32, %c0_i32_0 : i32, i32
  }
  func.func @transform_1(%arg0: i32) -> (i32, i32) {
    %c0_i32 = arith.constant 0 : i32
    %c0_i32_0 = arith.constant 0 : i32
    %c0_i32_1 = arith.constant 0 : i32
    return %c0_i32, %c0_i32_0 : i32, i32
  }
  func.func @transform_2(%arg0: i32) -> (i32, i32) {
    %c0_i32 = arith.constant 0 : i32
    %c0_i32_0 = arith.constant 0 : i32
    %c0_i32_1 = arith.constant 0 : i32
    return %c0_i32, %c0_i32_0 : i32, i32
  }
}

module attributes {stable_mosaic.version = 11 : i64} {
  func.func @_convt_bn_relu_kernel(%arg0: i32, %arg1: memref<128x1024xbf16, #tpu.memory_space<vmem>>, %arg2: memref<1024x128xbf16, #tpu.memory_space<vmem>>, %arg3: memref<128x128xbf16, #tpu.memory_space<vmem>>, %arg4: memref<128x128xf32, #tpu.memory_space<vmem>>) attributes {dimension_semantics = [#tpu.dimension_semantics<arbitrary>], iteration_bounds = array<i64: 1>, scalar_prefetch = 0 : i64, scratch_operands = 1 : i64, tpu.core_type = #tpu.core_type<tc>, window_params = [{pipeline_mode = #tpu.pipeline_mode<synchronous>, transform_indices = @transform_0, window_bounds = array<i64: 128, 1024>}, {pipeline_mode = #tpu.pipeline_mode<synchronous>, transform_indices = @transform_1, window_bounds = array<i64: 1024, 128>}, {pipeline_mode = #tpu.pipeline_mode<synchronous>, transform_indices = @transform_2, window_bounds = array<i64: 128, 128>}]} {
    %cst = arith.constant 0.000000e+00 : f32
    %0 = vector.broadcast %cst : f32 to vector<1x128xf32>
    %c0_i32 = arith.constant 0 : i32
    %c128_i32 = arith.constant 128 : i32
    %1 = arith.muli %c0_i32, %c128_i32 : i32
    %2 = tpu.assume_multiple %1, 128 : i32
    %3 = arith.index_cast %2 : i32 to index
    %c0 = arith.constant 0 : index
    %4 = vector.load %arg1[%3, %c0] : memref<128x1024xbf16, #tpu.memory_space<vmem>>, vector<128x1024xbf16>
    %c0_0 = arith.constant 0 : index
    %c0_1 = arith.constant 0 : index
    %5 = vector.load %arg2[%c0_0, %c0_1] : memref<1024x128xbf16, #tpu.memory_space<vmem>>, vector<1024x128xbf16>
    %cst_2 = arith.constant dense<0.000000e+00> : vector<128x128xf32>
    %6 = tpu.matmul %4, %5, %cst_2 {dimension_numbers = #tpu.dot_dimension_numbers<[1], [0], [0], [1], [0, 0, 1, 1], [], []>} : vector<128x1024xbf16>, vector<1024x128xbf16>, vector<128x128xf32> -> vector<128x128xf32>
    %7 = arith.index_cast %2 : i32 to index
    %c0_3 = arith.constant 0 : index
    %8 = vector.load %arg4[%7, %c0_3] : memref<128x128xf32, #tpu.memory_space<vmem>>, vector<128x128xf32>
    tpu.vector_store %arg4[%7, %c0_3], %6 {strides = array<i32>} : memref<128x128xf32, #tpu.memory_space<vmem>>, vector<128x128xf32>,
    %cst_4 = arith.constant dense<0.000000e+00> : vector<128xf32>
    %9 = vector.multi_reduction <add>, %6, %cst_4 [0] : vector<128x128xf32> to vector<128xf32>
    %10 = vector.shape_cast %9 : vector<128xf32> to vector<1x128xf32>
    %11 = arith.addf %0, %10 : vector<1x128xf32>
    %12 = arith.mulf %6, %6 : vector<128x128xf32>
    %cst_5 = arith.constant dense<0.000000e+00> : vector<128xf32>
    %13 = vector.multi_reduction <add>, %12, %cst_5 [0] : vector<128x128xf32> to vector<128xf32>
    %14 = vector.shape_cast %13 : vector<128xf32> to vector<1x128xf32>
    %15 = arith.addf %0, %14 : vector<1x128xf32>
    %c1_i32 = arith.constant 1 : i32
    %cst_6 = arith.constant 7.812500e-03 : f32
    %16 = vector.broadcast %cst_6 : f32 to vector<1x128xf32>
    %17 = arith.mulf %11, %16 : vector<1x128xf32>
    %cst_7 = arith.constant 7.812500e-03 : f32
    %18 = vector.broadcast %cst_7 : f32 to vector<1x128xf32>
    %19 = arith.mulf %15, %18 : vector<1x128xf32>
    %20 = arith.mulf %17, %17 : vector<1x128xf32>
    %21 = arith.subf %19, %20 : vector<1x128xf32>
    %cst_8 = arith.constant 0.000000e+00 : f32
    %22 = vector.broadcast %cst_8 : f32 to vector<1x128xf32>
    %23 = arith.maximumf %21, %22 : vector<1x128xf32>
    %cst_9 = arith.constant 9.99999974E-6 : f32
    %24 = vector.broadcast %cst_9 : f32 to vector<1x128xf32>
    %25 = arith.addf %23, %24 : vector<1x128xf32>
    %26 = math.rsqrt %25 : vector<1x128xf32>
    %cst_10 = arith.constant 0.000000e+00 : f32
    %27 = vector.broadcast %cst_10 : f32 to vector<1x128xf32>
    %28 = arith.subf %27, %17 : vector<1x128xf32>
    %29 = arith.mulf %28, %26 : vector<1x128xf32>
    %c0_i32_11 = arith.constant 0 : i32
    %c128_i32_12 = arith.constant 128 : i32
    %30 = arith.muli %c0_i32_11, %c128_i32_12 : i32
    %31 = tpu.assume_multiple %30, 128 : i32
    %32 = arith.index_cast %31 : i32 to index
    %c0_13 = arith.constant 0 : index
    %33 = vector.load %arg4[%32, %c0_13] : memref<128x128xf32, #tpu.memory_space<vmem>>, vector<128x128xf32>
    %34 = vector.broadcast %26 : vector<1x128xf32> to vector<128x128xf32>
    %35 = arith.mulf %33, %34 : vector<128x128xf32>
    %36 = vector.broadcast %29 : vector<1x128xf32> to vector<128x128xf32>
    %37 = arith.addf %35, %36 : vector<128x128xf32>
    %cst_14 = arith.constant 0.000000e+00 : f32
    %38 = vector.broadcast %cst_14 : f32 to vector<128x128xf32>
    %39 = arith.maximumf %37, %38 : vector<128x128xf32>
    %40 = arith.truncf %39 : vector<128x128xf32> to vector<128x128xbf16>
    %41 = arith.index_cast %31 : i32 to index
    %c0_15 = arith.constant 0 : index
    %42 = vector.load %arg3[%41, %c0_15] : memref<128x128xbf16, #tpu.memory_space<vmem>>, vector<128x128xbf16>
    tpu.vector_store %arg3[%41, %c0_15], %40 {strides = array<i32>} : memref<128x128xbf16, #tpu.memory_space<vmem>>, vector<128x128xbf16>,
    %c1_i32_16 = arith.constant 1 : i32
    return
  }
  func.func @transform_0(%arg0: i32) -> (i32, i32) {
    %c0_i32 = arith.constant 0 : i32
    %c0_i32_0 = arith.constant 0 : i32
    %c0_i32_1 = arith.constant 0 : i32
    return %c0_i32, %c0_i32_0 : i32, i32
  }
  func.func @transform_1(%arg0: i32) -> (i32, i32) {
    %c0_i32 = arith.constant 0 : i32
    %c0_i32_0 = arith.constant 0 : i32
    %c0_i32_1 = arith.constant 0 : i32
    return %c0_i32, %c0_i32_0 : i32, i32
  }
  func.func @transform_2(%arg0: i32) -> (i32, i32) {
    %c0_i32 = arith.constant 0 : i32
    %c0_i32_0 = arith.constant 0 : i32
    %c0_i32_1 = arith.constant 0 : i32
    return %c0_i32, %c0_i32_0 : i32, i32
  }
}

module attributes {stable_mosaic.version = 11 : i64} {
  func.func @_convt_bn_relu_kernel(%arg0: i32, %arg1: memref<512x512xbf16, #tpu.memory_space<vmem>>, %arg2: memref<512x128xbf16, #tpu.memory_space<vmem>>, %arg3: memref<512x128xbf16, #tpu.memory_space<vmem>>, %arg4: memref<512x128xf32, #tpu.memory_space<vmem>>) attributes {dimension_semantics = [#tpu.dimension_semantics<arbitrary>], iteration_bounds = array<i64: 1>, scalar_prefetch = 0 : i64, scratch_operands = 1 : i64, tpu.core_type = #tpu.core_type<tc>, window_params = [{pipeline_mode = #tpu.pipeline_mode<synchronous>, transform_indices = @transform_0, window_bounds = array<i64: 512, 512>}, {pipeline_mode = #tpu.pipeline_mode<synchronous>, transform_indices = @transform_1, window_bounds = array<i64: 512, 128>}, {pipeline_mode = #tpu.pipeline_mode<synchronous>, transform_indices = @transform_2, window_bounds = array<i64: 512, 128>}]} {
    %cst = arith.constant 0.000000e+00 : f32
    %0 = vector.broadcast %cst : f32 to vector<1x128xf32>
    %c0_i32 = arith.constant 0 : i32
    %c2_i32 = arith.constant 2 : i32
    %1 = arith.addi %c0_i32, %c2_i32 : i32
    %c1_i32 = arith.constant 1 : i32
    %2:2 = scf.for %arg5 = %c0_i32 to %1 step %c1_i32 iter_args(%arg6 = %0, %arg7 = %0) -> (vector<1x128xf32>, vector<1x128xf32>)  : i32 {
      %c256_i32 = arith.constant 256 : i32
      %18 = arith.muli %arg5, %c256_i32 : i32
      %19 = tpu.assume_multiple %18, 256 : i32
      %20 = arith.index_cast %19 : i32 to index
      %c0 = arith.constant 0 : index
      %21 = vector.load %arg1[%20, %c0] : memref<512x512xbf16, #tpu.memory_space<vmem>>, vector<256x512xbf16>
      %c0_10 = arith.constant 0 : index
      %c0_11 = arith.constant 0 : index
      %22 = vector.load %arg2[%c0_10, %c0_11] : memref<512x128xbf16, #tpu.memory_space<vmem>>, vector<512x128xbf16>
      %cst_12 = arith.constant dense<0.000000e+00> : vector<256x128xf32>
      %23 = tpu.matmul %21, %22, %cst_12 {dimension_numbers = #tpu.dot_dimension_numbers<[1], [0], [0], [1], [0, 0, 1, 1], [], []>} : vector<256x512xbf16>, vector<512x128xbf16>, vector<256x128xf32> -> vector<256x128xf32>
      %24 = arith.index_cast %19 : i32 to index
      %c0_13 = arith.constant 0 : index
      %25 = vector.load %arg4[%24, %c0_13] : memref<512x128xf32, #tpu.memory_space<vmem>>, vector<256x128xf32>
      tpu.vector_store %arg4[%24, %c0_13], %23 {strides = array<i32>} : memref<512x128xf32, #tpu.memory_space<vmem>>, vector<256x128xf32>,
      %cst_14 = arith.constant dense<0.000000e+00> : vector<128xf32>
      %26 = vector.multi_reduction <add>, %23, %cst_14 [0] : vector<256x128xf32> to vector<128xf32>
      %27 = vector.shape_cast %26 : vector<128xf32> to vector<1x128xf32>
      %28 = arith.addf %arg6, %27 : vector<1x128xf32>
      %29 = arith.mulf %23, %23 : vector<256x128xf32>
      %cst_15 = arith.constant dense<0.000000e+00> : vector<128xf32>
      %30 = vector.multi_reduction <add>, %29, %cst_15 [0] : vector<256x128xf32> to vector<128xf32>
      %31 = vector.shape_cast %30 : vector<128xf32> to vector<1x128xf32>
      %32 = arith.addf %arg7, %31 : vector<1x128xf32>
      scf.yield %28, %32 : vector<1x128xf32>, vector<1x128xf32>
    }
    %c2_i32_0 = arith.constant 2 : i32
    %cst_1 = arith.constant 0.001953125 : f32
    %3 = vector.broadcast %cst_1 : f32 to vector<1x128xf32>
    %4 = arith.mulf %2#0, %3 : vector<1x128xf32>
    %cst_2 = arith.constant 0.001953125 : f32
    %5 = vector.broadcast %cst_2 : f32 to vector<1x128xf32>
    %6 = arith.mulf %2#1, %5 : vector<1x128xf32>
    %7 = arith.mulf %4, %4 : vector<1x128xf32>
    %8 = arith.subf %6, %7 : vector<1x128xf32>
    %cst_3 = arith.constant 0.000000e+00 : f32
    %9 = vector.broadcast %cst_3 : f32 to vector<1x128xf32>
    %10 = arith.maximumf %8, %9 : vector<1x128xf32>
    %cst_4 = arith.constant 9.99999974E-6 : f32
    %11 = vector.broadcast %cst_4 : f32 to vector<1x128xf32>
    %12 = arith.addf %10, %11 : vector<1x128xf32>
    %13 = math.rsqrt %12 : vector<1x128xf32>
    %cst_5 = arith.constant 0.000000e+00 : f32
    %14 = vector.broadcast %cst_5 : f32 to vector<1x128xf32>
    %15 = arith.subf %14, %4 : vector<1x128xf32>
    %16 = arith.mulf %15, %13 : vector<1x128xf32>
    %c0_i32_6 = arith.constant 0 : i32
    %c2_i32_7 = arith.constant 2 : i32
    %17 = arith.addi %c0_i32_6, %c2_i32_7 : i32
    %c1_i32_8 = arith.constant 1 : i32
    scf.for %arg5 = %c0_i32_6 to %17 step %c1_i32_8  : i32 {
      %c256_i32 = arith.constant 256 : i32
      %18 = arith.muli %arg5, %c256_i32 : i32
      %19 = tpu.assume_multiple %18, 256 : i32
      %20 = arith.index_cast %19 : i32 to index
      %c0 = arith.constant 0 : index
      %21 = vector.load %arg4[%20, %c0] : memref<512x128xf32, #tpu.memory_space<vmem>>, vector<256x128xf32>
      %22 = vector.broadcast %13 : vector<1x128xf32> to vector<256x128xf32>
      %23 = arith.mulf %21, %22 : vector<256x128xf32>
      %24 = vector.broadcast %16 : vector<1x128xf32> to vector<256x128xf32>
      %25 = arith.addf %23, %24 : vector<256x128xf32>
      %cst_10 = arith.constant 0.000000e+00 : f32
      %26 = vector.broadcast %cst_10 : f32 to vector<256x128xf32>
      %27 = arith.maximumf %25, %26 : vector<256x128xf32>
      %28 = arith.truncf %27 : vector<256x128xf32> to vector<256x128xbf16>
      %29 = arith.index_cast %19 : i32 to index
      %c0_11 = arith.constant 0 : index
      %30 = vector.load %arg3[%29, %c0_11] : memref<512x128xbf16, #tpu.memory_space<vmem>>, vector<256x128xbf16>
      tpu.vector_store %arg3[%29, %c0_11], %28 {strides = array<i32>} : memref<512x128xbf16, #tpu.memory_space<vmem>>, vector<256x128xbf16>,
    }
    %c2_i32_9 = arith.constant 2 : i32
    return
  }
  func.func @transform_0(%arg0: i32) -> (i32, i32) {
    %c0_i32 = arith.constant 0 : i32
    %c0_i32_0 = arith.constant 0 : i32
    %c0_i32_1 = arith.constant 0 : i32
    return %c0_i32, %c0_i32_0 : i32, i32
  }
  func.func @transform_1(%arg0: i32) -> (i32, i32) {
    %c0_i32 = arith.constant 0 : i32
    %c0_i32_0 = arith.constant 0 : i32
    %c0_i32_1 = arith.constant 0 : i32
    return %c0_i32, %c0_i32_0 : i32, i32
  }
  func.func @transform_2(%arg0: i32) -> (i32, i32) {
    %c0_i32 = arith.constant 0 : i32
    %c0_i32_0 = arith.constant 0 : i32
    %c0_i32_1 = arith.constant 0 : i32
    return %c0_i32, %c0_i32_0 : i32, i32
  }
}

module attributes {stable_mosaic.version = 11 : i64} {
  func.func @_convt_bn_relu_kernel(%arg0: i32, %arg1: memref<2048x256xbf16, #tpu.memory_space<vmem>>, %arg2: memref<256x128xbf16, #tpu.memory_space<vmem>>, %arg3: memref<2048x128xbf16, #tpu.memory_space<vmem>>, %arg4: memref<2048x128xf32, #tpu.memory_space<vmem>>) attributes {dimension_semantics = [#tpu.dimension_semantics<arbitrary>], iteration_bounds = array<i64: 1>, scalar_prefetch = 0 : i64, scratch_operands = 1 : i64, tpu.core_type = #tpu.core_type<tc>, window_params = [{pipeline_mode = #tpu.pipeline_mode<synchronous>, transform_indices = @transform_0, window_bounds = array<i64: 2048, 256>}, {pipeline_mode = #tpu.pipeline_mode<synchronous>, transform_indices = @transform_1, window_bounds = array<i64: 256, 128>}, {pipeline_mode = #tpu.pipeline_mode<synchronous>, transform_indices = @transform_2, window_bounds = array<i64: 2048, 128>}]} {
    %cst = arith.constant 0.000000e+00 : f32
    %0 = vector.broadcast %cst : f32 to vector<1x128xf32>
    %c0_i32 = arith.constant 0 : i32
    %c8_i32 = arith.constant 8 : i32
    %1 = arith.addi %c0_i32, %c8_i32 : i32
    %c1_i32 = arith.constant 1 : i32
    %2:2 = scf.for %arg5 = %c0_i32 to %1 step %c1_i32 iter_args(%arg6 = %0, %arg7 = %0) -> (vector<1x128xf32>, vector<1x128xf32>)  : i32 {
      %c256_i32 = arith.constant 256 : i32
      %18 = arith.muli %arg5, %c256_i32 : i32
      %19 = tpu.assume_multiple %18, 256 : i32
      %20 = arith.index_cast %19 : i32 to index
      %c0 = arith.constant 0 : index
      %21 = vector.load %arg1[%20, %c0] : memref<2048x256xbf16, #tpu.memory_space<vmem>>, vector<256x256xbf16>
      %c0_10 = arith.constant 0 : index
      %c0_11 = arith.constant 0 : index
      %22 = vector.load %arg2[%c0_10, %c0_11] : memref<256x128xbf16, #tpu.memory_space<vmem>>, vector<256x128xbf16>
      %cst_12 = arith.constant dense<0.000000e+00> : vector<256x128xf32>
      %23 = tpu.matmul %21, %22, %cst_12 {dimension_numbers = #tpu.dot_dimension_numbers<[1], [0], [0], [1], [0, 0, 1, 1], [], []>} : vector<256x256xbf16>, vector<256x128xbf16>, vector<256x128xf32> -> vector<256x128xf32>
      %24 = arith.index_cast %19 : i32 to index
      %c0_13 = arith.constant 0 : index
      %25 = vector.load %arg4[%24, %c0_13] : memref<2048x128xf32, #tpu.memory_space<vmem>>, vector<256x128xf32>
      tpu.vector_store %arg4[%24, %c0_13], %23 {strides = array<i32>} : memref<2048x128xf32, #tpu.memory_space<vmem>>, vector<256x128xf32>,
      %cst_14 = arith.constant dense<0.000000e+00> : vector<128xf32>
      %26 = vector.multi_reduction <add>, %23, %cst_14 [0] : vector<256x128xf32> to vector<128xf32>
      %27 = vector.shape_cast %26 : vector<128xf32> to vector<1x128xf32>
      %28 = arith.addf %arg6, %27 : vector<1x128xf32>
      %29 = arith.mulf %23, %23 : vector<256x128xf32>
      %cst_15 = arith.constant dense<0.000000e+00> : vector<128xf32>
      %30 = vector.multi_reduction <add>, %29, %cst_15 [0] : vector<256x128xf32> to vector<128xf32>
      %31 = vector.shape_cast %30 : vector<128xf32> to vector<1x128xf32>
      %32 = arith.addf %arg7, %31 : vector<1x128xf32>
      scf.yield %28, %32 : vector<1x128xf32>, vector<1x128xf32>
    }
    %c8_i32_0 = arith.constant 8 : i32
    %cst_1 = arith.constant 4.8828125E-4 : f32
    %3 = vector.broadcast %cst_1 : f32 to vector<1x128xf32>
    %4 = arith.mulf %2#0, %3 : vector<1x128xf32>
    %cst_2 = arith.constant 4.8828125E-4 : f32
    %5 = vector.broadcast %cst_2 : f32 to vector<1x128xf32>
    %6 = arith.mulf %2#1, %5 : vector<1x128xf32>
    %7 = arith.mulf %4, %4 : vector<1x128xf32>
    %8 = arith.subf %6, %7 : vector<1x128xf32>
    %cst_3 = arith.constant 0.000000e+00 : f32
    %9 = vector.broadcast %cst_3 : f32 to vector<1x128xf32>
    %10 = arith.maximumf %8, %9 : vector<1x128xf32>
    %cst_4 = arith.constant 9.99999974E-6 : f32
    %11 = vector.broadcast %cst_4 : f32 to vector<1x128xf32>
    %12 = arith.addf %10, %11 : vector<1x128xf32>
    %13 = math.rsqrt %12 : vector<1x128xf32>
    %cst_5 = arith.constant 0.000000e+00 : f32
    %14 = vector.broadcast %cst_5 : f32 to vector<1x128xf32>
    %15 = arith.subf %14, %4 : vector<1x128xf32>
    %16 = arith.mulf %15, %13 : vector<1x128xf32>
    %c0_i32_6 = arith.constant 0 : i32
    %c8_i32_7 = arith.constant 8 : i32
    %17 = arith.addi %c0_i32_6, %c8_i32_7 : i32
    %c1_i32_8 = arith.constant 1 : i32
    scf.for %arg5 = %c0_i32_6 to %17 step %c1_i32_8  : i32 {
      %c256_i32 = arith.constant 256 : i32
      %18 = arith.muli %arg5, %c256_i32 : i32
      %19 = tpu.assume_multiple %18, 256 : i32
      %20 = arith.index_cast %19 : i32 to index
      %c0 = arith.constant 0 : index
      %21 = vector.load %arg4[%20, %c0] : memref<2048x128xf32, #tpu.memory_space<vmem>>, vector<256x128xf32>
      %22 = vector.broadcast %13 : vector<1x128xf32> to vector<256x128xf32>
      %23 = arith.mulf %21, %22 : vector<256x128xf32>
      %24 = vector.broadcast %16 : vector<1x128xf32> to vector<256x128xf32>
      %25 = arith.addf %23, %24 : vector<256x128xf32>
      %cst_10 = arith.constant 0.000000e+00 : f32
      %26 = vector.broadcast %cst_10 : f32 to vector<256x128xf32>
      %27 = arith.maximumf %25, %26 : vector<256x128xf32>
      %28 = arith.truncf %27 : vector<256x128xf32> to vector<256x128xbf16>
      %29 = arith.index_cast %19 : i32 to index
      %c0_11 = arith.constant 0 : index
      %30 = vector.load %arg3[%29, %c0_11] : memref<2048x128xbf16, #tpu.memory_space<vmem>>, vector<256x128xbf16>
      tpu.vector_store %arg3[%29, %c0_11], %28 {strides = array<i32>} : memref<2048x128xbf16, #tpu.memory_space<vmem>>, vector<256x128xbf16>,
    }
    %c8_i32_9 = arith.constant 8 : i32
    return
  }
  func.func @transform_0(%arg0: i32) -> (i32, i32) {
    %c0_i32 = arith.constant 0 : i32
    %c0_i32_0 = arith.constant 0 : i32
    %c0_i32_1 = arith.constant 0 : i32
    return %c0_i32, %c0_i32_0 : i32, i32
  }
  func.func @transform_1(%arg0: i32) -> (i32, i32) {
    %c0_i32 = arith.constant 0 : i32
    %c0_i32_0 = arith.constant 0 : i32
    %c0_i32_1 = arith.constant 0 : i32
    return %c0_i32, %c0_i32_0 : i32, i32
  }
  func.func @transform_2(%arg0: i32) -> (i32, i32) {
    %c0_i32 = arith.constant 0 : i32
    %c0_i32_0 = arith.constant 0 : i32
    %c0_i32_1 = arith.constant 0 : i32
    return %c0_i32, %c0_i32_0 : i32, i32
  }
}

module attributes {stable_mosaic.version = 11 : i64} {
  func.func @_convt_tanh_kernel(%arg0: i32, %arg1: memref<2048x128xbf16, #tpu.memory_space<vmem>>, %arg2: memref<128x128xbf16, #tpu.memory_space<vmem>>, %arg3: memref<2048x128xbf16, #tpu.memory_space<vmem>>) attributes {dimension_semantics = [#tpu.dimension_semantics<parallel>], iteration_bounds = array<i64: 4>, scalar_prefetch = 0 : i64, scratch_operands = 0 : i64, tpu.core_type = #tpu.core_type<tc>, window_params = [{transform_indices = @transform_0, window_bounds = array<i64: 2048, 128>}, {pipeline_mode = #tpu.pipeline_mode<synchronous>, transform_indices = @transform_1, window_bounds = array<i64: 128, 128>}, {transform_indices = @transform_2, window_bounds = array<i64: 2048, 128>}]} {
    %c0_i32 = arith.constant 0 : i32
    %c8_i32 = arith.constant 8 : i32
    %0 = arith.addi %c0_i32, %c8_i32 : i32
    %c1_i32 = arith.constant 1 : i32
    scf.for %arg4 = %c0_i32 to %0 step %c1_i32  : i32 {
      %c256_i32 = arith.constant 256 : i32
      %1 = arith.muli %arg4, %c256_i32 : i32
      %2 = tpu.assume_multiple %1, 256 : i32
      %3 = arith.index_cast %2 : i32 to index
      %c0 = arith.constant 0 : index
      %4 = vector.load %arg1[%3, %c0] : memref<2048x128xbf16, #tpu.memory_space<vmem>>, vector<256x128xbf16>
      %c0_1 = arith.constant 0 : index
      %c0_2 = arith.constant 0 : index
      %5 = vector.load %arg2[%c0_1, %c0_2] : memref<128x128xbf16, #tpu.memory_space<vmem>>, vector<128x128xbf16>
      %cst = arith.constant dense<0.000000e+00> : vector<256x128xf32>
      %6 = tpu.matmul %4, %5, %cst {dimension_numbers = #tpu.dot_dimension_numbers<[1], [0], [0], [1], [0, 0, 1, 1], [], []>} : vector<256x128xbf16>, vector<128x128xbf16>, vector<256x128xf32> -> vector<256x128xf32>
      %7 = math.tanh %6 : vector<256x128xf32>
      %8 = arith.truncf %7 : vector<256x128xf32> to vector<256x128xbf16>
      %9 = arith.index_cast %2 : i32 to index
      %c0_3 = arith.constant 0 : index
      %10 = vector.load %arg3[%9, %c0_3] : memref<2048x128xbf16, #tpu.memory_space<vmem>>, vector<256x128xbf16>
      tpu.vector_store %arg3[%9, %c0_3], %8 {strides = array<i32>} : memref<2048x128xbf16, #tpu.memory_space<vmem>>, vector<256x128xbf16>,
    }
    %c8_i32_0 = arith.constant 8 : i32
    return
  }
  func.func @transform_0(%arg0: i32) -> (i32, i32) {
    %c0_i32 = arith.constant 0 : i32
    %c0_i32_0 = arith.constant 0 : i32
    return %arg0, %c0_i32 : i32, i32
  }
  func.func @transform_1(%arg0: i32) -> (i32, i32) {
    %c0_i32 = arith.constant 0 : i32
    %c0_i32_0 = arith.constant 0 : i32
    %c0_i32_1 = arith.constant 0 : i32
    return %c0_i32, %c0_i32_0 : i32, i32
  }
  func.func @transform_2(%arg0: i32) -> (i32, i32) {
    %c0_i32 = arith.constant 0 : i32
    %c0_i32_0 = arith.constant 0 : i32
    return %arg0, %c0_i32 : i32, i32
  }
}

</mosaic_0001>

<llo_original>
// kernel: generator_forward.5
$region0: #{generator_forward.5}
  #allocation0 [shape = 'u32[]', space=smem, size = 0x4, offset = 0x4, fixed_abs, tag = 'smem constant byte address 0x4 - core index']
  #allocation1 [shape = 'u32[144,128]{1,0:T(1,128)}', space=vmem, size = 0x12000, scoped, tag = 'internal scratch']
  #allocation2 [shape = 'f32[32,128]{1,0:T(8,128)}', space=vmem, size = 0x4000, scoped, tag = 'scratch operand']
  %s0 = inlined_call_operand.vmem [shape: bf16[32,256], index: 0, kind: input, shape index: {}]
  %s1 = inlined_call_operand.vmem [shape: bf16[256,128], index: 1, kind: input, shape index: {}]
  %s2 = inlined_call_operand.vmem [shape: bf16[32,128], index: 2, kind: output, shape index: {}]
  %s3 = sld [smem:[#allocation0]]
  $region18: #{generator_forward.5} parent=0
    _
  %s5 = ssub.s32 1, %s3
  %s6 = scalar_select 0, %s5, %s3
  // Predicated region
  $region2: #{generator_forward.5} parent=0 // pred_check
    _
  $region3: #{generator_forward.5} parent=0 // pred_check_branch
    %8 = sbr.rel (0) target = $region5
  $region4: #{generator_forward.5} parent=0 // pred_region
    _
  $region5: #{generator_forward.5} parent=0 // pred_fallthru
    _
  // Predicated region
  $region6: #{generator_forward.5} parent=0 // pred_check
    _
  $region7: #{generator_forward.5} parent=0 // pred_check_branch
    %10 = sbr.rel (0) target = $region9
  $region8: #{generator_forward.5} parent=0 // pred_region
    _
  $region9: #{generator_forward.5} parent=0 // pred_fallthru
    _
  %s12 = smul.u32 0, 2
  %s13 = smul.addr %s12, 4
  %s14 = scalar_lea.vmem %s0, %s13
  %v15 = vld [vmem:[%s14] sm:$0xff]
  %v16 = vld [vmem:[%s14 + $0x8] sm:$0xff]
  %v17 = vld [vmem:[%s14 + $0x10] sm:$0xff]
  %v18 = vld [vmem:[%s14 + $0x18] sm:$0xff]
  %v19 = vld [vmem:[%s1] sm:$0xf]
  %v20 = vld [vmem:[%s1 + $0x4] sm:$0xf]
  %v21 = vld [vmem:[%s1 + $0x8] sm:$0xf]
  %v22 = vld [vmem:[%s1 + $0xc] sm:$0xf]
  %v23 = vld [vmem:[%s1 + $0x10] sm:$0xf]
  %v24 = vld [vmem:[%s1 + $0x14] sm:$0xf]
  %v25 = vld [vmem:[%s1 + $0x18] sm:$0xf]
  %v26 = vld [vmem:[%s1 + $0x1c] sm:$0xf]
  %v27 = vld [vmem:[%s1 + $0x20] sm:$0xf]
  %v28 = vld [vmem:[%s1 + $0x24] sm:$0xf]
  %v29 = vld [vmem:[%s1 + $0x28] sm:$0xf]
  %v30 = vld [vmem:[%s1 + $0x2c] sm:$0xf]
  %v31 = vld [vmem:[%s1 + $0x30] sm:$0xf]
  %v32 = vld [vmem:[%s1 + $0x34] sm:$0xf]
  %v33 = vld [vmem:[%s1 + $0x38] sm:$0xf]
  %v34 = vld [vmem:[%s1 + $0x3c] sm:$0xf]
  %v35 = vld [vmem:[%s1 + $0x40] sm:$0xf]
  %v36 = vld [vmem:[%s1 + $0x44] sm:$0xf]
  %v37 = vld [vmem:[%s1 + $0x48] sm:$0xf]
  %v38 = vld [vmem:[%s1 + $0x4c] sm:$0xf]
  %v39 = vld [vmem:[%s1 + $0x50] sm:$0xf]
  %v40 = vld [vmem:[%s1 + $0x54] sm:$0xf]
  %v41 = vld [vmem:[%s1 + $0x58] sm:$0xf]
  %v42 = vld [vmem:[%s1 + $0x5c] sm:$0xf]
  %v43 = vld [vmem:[%s1 + $0x60] sm:$0xf]
  %v44 = vld [vmem:[%s1 + $0x64] sm:$0xf]
  %v45 = vld [vmem:[%s1 + $0x68] sm:$0xf]
  %v46 = vld [vmem:[%s1 + $0x6c] sm:$0xf]
  %v47 = vld [vmem:[%s1 + $0x70] sm:$0xf]
  %v48 = vld [vmem:[%s1 + $0x74] sm:$0xf]
  %v49 = vld [vmem:[%s1 + $0x78] sm:$0xf]
  %v50 = vld [vmem:[%s1 + $0x7c] sm:$0xf]
  %v55 = vunpack.c.l.b16 %v15
  %v56 = vunpack.c.h.b16 %v15
  %v57 = vunpack.c.l.b16 %v16
  %v58 = vunpack.c.h.b16 %v16
  %v59 = vunpack.c.l.b16 %v17
  %v60 = vunpack.c.h.b16 %v17
  %v61 = vunpack.c.l.b16 %v18
  %v62 = vunpack.c.h.b16 %v18
  %v63 = vpack.c.b16 %v57, %v55
  %v64 = vpack.c.b16 %v58, %v56
  %v65 = vpack.c.b16 %v61, %v59
  %v66 = vpack.c.b16 %v62, %v60
  %v103 = vunpack.c.l.b16 %v19
  %v104 = vunpack.c.l.b16 %v20
  %v105 = vunpack.c.l.b16 %v21
  %v106 = vunpack.c.l.b16 %v22
  %v107 = vunpack.c.l.b16 %v23
  %v108 = vunpack.c.l.b16 %v24
  %v109 = vunpack.c.l.b16 %v25
  %v110 = vunpack.c.l.b16 %v26
  %v111 = vunpack.c.l.b16 %v27
  %v112 = vunpack.c.l.b16 %v28
  %v113 = vunpack.c.l.b16 %v29
  %v114 = vunpack.c.l.b16 %v30
  %v115 = vunpack.c.l.b16 %v31
  %v116 = vunpack.c.l.b16 %v32
  %v117 = vunpack.c.l.b16 %v33
  %v118 = vunpack.c.l.b16 %v34
  %v119 = vunpack.c.l.b16 %v35
  %v120 = vunpack.c.l.b16 %v36
  %v121 = vunpack.c.l.b16 %v37
  %v122 = vunpack.c.l.b16 %v38
  %v123 = vunpack.c.l.b16 %v39
  %v124 = vunpack.c.l.b16 %v40
  %v125 = vunpack.c.l.b16 %v41
  %v126 = vunpack.c.l.b16 %v42
  %v127 = vunpack.c.l.b16 %v43
  %v128 = vunpack.c.l.b16 %v44
  %v129 = vunpack.c.l.b16 %v45
  %v130 = vunpack.c.l.b16 %v46
  %v131 = vunpack.c.l.b16 %v47
  %v132 = vunpack.c.l.b16 %v48
  %v133 = vunpack.c.l.b16 %v49
  %v134 = vunpack.c.l.b16 %v50
  %v135 = vpack.c.b16 %v104, %v103
  %v136 = vpack.c.b16 %v106, %v105
  %v137 = vpack.c.b16 %v108, %v107
  %v138 = vpack.c.b16 %v110, %v109
  %v139 = vpack.c.b16 %v112, %v111
  %v140 = vpack.c.b16 %v114, %v113
  %v141 = vpack.c.b16 %v116, %v115
  %v142 = vpack.c.b16 %v118, %v117
  %v143 = vpack.c.b16 %v120, %v119
  %v144 = vpack.c.b16 %v122, %v121
  %v145 = vpack.c.b16 %v124, %v123
  %v146 = vpack.c.b16 %v126, %v125
  %v147 = vpack.c.b16 %v128, %v127
  %v148 = vpack.c.b16 %v130, %v129
  %v149 = vpack.c.b16 %v132, %v131
  %v150 = vpack.c.b16 %v134, %v133
  %167 = vmatprep.subr.bf16.mxu0 0
  %168 = vmatpush1.bf16.msra.mxu0 %v135
  %169 = vmatprep.subr.bf16.mxu0 0
  %170 = vmatpush1.bf16.msra.mxu0 %v136
  %171 = vmatprep.subr.bf16.mxu0 0
  %172 = vmatpush1.bf16.msra.mxu0 %v137
  %173 = vmatprep.subr.bf16.mxu0 0
  %174 = vmatpush1.bf16.msra.mxu0 %v138
  %175 = vmatprep.subr.bf16.mxu0 0
  %176 = vmatpush1.bf16.msra.mxu0 %v139
  %177 = vmatprep.subr.bf16.mxu0 0
  %178 = vmatpush1.bf16.msra.mxu0 %v140
  %179 = vmatprep.subr.bf16.mxu0 0
  %180 = vmatpush1.bf16.msra.mxu0 %v141
  %181 = vmatprep.subr.bf16.mxu0 0
  %182 = vmatpush1.bf16.msra.mxu0 %v142
  %183 = vmatprep.subr.bf16.mxu0 0
  %184 = vmatpush1.bf16.msra.mxu0 %v143
  %185 = vmatprep.subr.bf16.mxu0 0
  %186 = vmatpush1.bf16.msra.mxu0 %v144
  %187 = vmatprep.subr.bf16.mxu0 0
  %188 = vmatpush1.bf16.msra.mxu0 %v145
  %189 = vmatprep.subr.bf16.mxu0 0
  %190 = vmatpush1.bf16.msra.mxu0 %v146
  %191 = vmatprep.subr.bf16.mxu0 0
  %192 = vmatpush1.bf16.msra.mxu0 %v147
  %193 = vmatprep.subr.bf16.mxu0 0
  %194 = vmatpush1.bf16.msra.mxu0 %v148
  %195 = vmatprep.subr.bf16.mxu0 0
  %196 = vmatpush1.bf16.msra.mxu0 %v149
  %197 = vmatprep.subr.bf16.mxu0 0
  %198 = vmatpush1.bf16.msra.mxu0 %v150
  %199 = vmatprep.mubr.bf16.mxu0 %v64
  %200 = vmatmul.mubr.bf16.gmra.mrb[0].mxu0 %v63
  %v201 = vpop.f32.mrb[0].mxu0
  %v202 = vadd.f32 0.0, %v201
  %v203 = vpop.f32.mrb[0].mxu0
  %v204 = vpop.f32.mrb[0].mxu0
  %v205 = vadd.f32 0.0, %v204
  %v206 = vpop.f32.mrb[0].mxu0
  %207 = vmatprep.mubr.bf16.mxu0 %v66
  %208 = vmatmul.mubr.bf16.gmra.mrb[0].mxu0 %v65
  %v209 = vpop.f32.mrb[0].mxu0
  %v210 = vadd.f32 0.0, %v209
  %v211 = vpop.f32.mrb[0].mxu0
  %v212 = vpop.f32.mrb[0].mxu0
  %v213 = vadd.f32 0.0, %v212
  %v214 = vpop.f32.mrb[0].mxu0
  %215 = vdwg.mxu0
  %216 = vst [vmem:[#allocation2] sm:$0xff] %v202
  %217 = vst [vmem:[#allocation2 + $0x8] sm:$0xff] %v205
  %218 = vst [vmem:[#allocation2 + $0x10] sm:$0xff] %v210
  %219 = vst [vmem:[#allocation2 + $0x18] sm:$0xff] %v213
  %v220 = vadd.f32 %v202, %v205
  %v221 = vadd.f32 %v220, %v210
  %v222 = vadd.f32 %v221, %v213
  %v223 = vrot.slane %v222, 4
  %v224 = vadd.f32 %v222, %v223
  %v225 = vrot.slane %v224, 2
  %v226 = vadd.f32 %v224, %v225
  %v227 = vrot.slane %v226, 1
  %v228 = vadd.f32 %v226, %v227
  %v229 = vadd.f32 %v228, 0.0
  %v230 = vmul.f32 %v202, %v202
  %v231 = vmul.f32 %v205, %v205
  %v232 = vmul.f32 %v210, %v210
  %v233 = vmul.f32 %v213, %v213
  %v234 = vadd.f32 %v230, %v231
  %v235 = vadd.f32 %v234, %v232
  %v236 = vadd.f32 %v235, %v233
  %v237 = vrot.slane %v236, 4
  %v238 = vadd.f32 %v236, %v237
  %v239 = vrot.slane %v238, 2
  %v240 = vadd.f32 %v238, %v239
  %v241 = vrot.slane %v240, 1
  %v242 = vadd.f32 %v240, %v241
  %v243 = vadd.f32 %v242, 0.0
  %v244 = vmul.f32 %v229, 0.03125
  %v245 = vmul.f32 %v243, 0.03125
  %v246 = vmul.f32 %v244, %v244
  %v247 = vsub.f32 %v245, %v246
  %v248 = vmax.f32 %v247, 0.0
  %v249 = vadd.f32 %v248, 1e-05
  %v250 = vrsqrt.pop %v249
  %v251 = vsub.f32 0.0, %v244
  %v252 = vmul.f32 %v251, %v250
  %v253 = vld [vmem:[#allocation2] sm:$0xff]
  %v254 = vld [vmem:[#allocation2 + $0x8] sm:$0xff]
  %v255 = vld [vmem:[#allocation2 + $0x10] sm:$0xff]
  %v256 = vld [vmem:[#allocation2 + $0x18] sm:$0xff]
  %v257 = vmul.f32 %v253, %v250
  %v258 = vmul.f32 %v254, %v250
  %v259 = vmul.f32 %v255, %v250
  %v260 = vmul.f32 %v256, %v250
  %v261 = vadd.f32 %v257, %v252
  %v262 = vadd.f32 %v258, %v252
  %v263 = vadd.f32 %v259, %v252
  %v264 = vadd.f32 %v260, %v252
  %v265 = vmax.f32 %v261, 0.0
  %v266 = vmax.f32 %v262, 0.0
  %v267 = vmax.f32 %v263, 0.0
  %v268 = vmax.f32 %v264, 0.0
  %v269 = vpack.c.bf16 %v266, %v265
  %v270 = vpack.c.bf16 %v268, %v267
  %v273 = vunpack.c.l.b16 %v269
  %v274 = vunpack.c.h.b16 %v269
  %v275 = vunpack.c.l.b16 %v270
  %v276 = vunpack.c.h.b16 %v270
  %v277 = vpack.c.b16 %v273, %v273
  %v278 = vpack.c.b16 %v274, %v274
  %v279 = vpack.c.b16 %v275, %v275
  %v280 = vpack.c.b16 %v276, %v276
  %285 = vst [vmem:[%s2] sm:$0xf] %v277
  %286 = vst [vmem:[%s2 + $0x4] sm:$0xf] %v278
  %287 = vst [vmem:[%s2 + $0x8] sm:$0xf] %v279
  %288 = vst [vmem:[%s2 + $0xc] sm:$0xf] %v280
  // Predicated region
  $region10: #{generator_forward.5} parent=0 // pred_check
    _
  $region11: #{generator_forward.5} parent=0 // pred_check_branch
    %290 = sbr.rel (0) target = $region13
  $region12: #{generator_forward.5} parent=0 // pred_region
    _
  $region13: #{generator_forward.5} parent=0 // pred_fallthru
    _
  // Predicated region
  $region14: #{generator_forward.5} parent=0 // pred_check
    _
  $region15: #{generator_forward.5} parent=0 // pred_check_branch
    %292 = sbr.rel (0) target = $region17
  $region16: #{generator_forward.5} parent=0 // pred_region
    _
  $region17: #{generator_forward.5} parent=0 // pred_fallthru
    _

// kernel: generator_forward.6
$region0: #{generator_forward.6}
  #allocation0 [shape = 'u32[]', space=smem, size = 0x4, offset = 0x4, fixed_abs, tag = 'smem constant byte address 0x4 - core index']
  #allocation1 [shape = 'u32[144,128]{1,0:T(1,128)}', space=vmem, size = 0x12000, scoped, tag = 'internal scratch']
  #allocation2 [shape = 'f32[128,128]{1,0:T(8,128)}', space=vmem, size = 0x10000, scoped, tag = 'scratch operand']
  %s0 = inlined_call_operand.vmem [shape: bf16[128,1024], index: 0, kind: input, shape index: {}]
  %s1 = inlined_call_operand.vmem [shape: bf16[1024,128], index: 1, kind: input, shape index: {}]
  %s2 = inlined_call_operand.vmem [shape: bf16[128,128], index: 2, kind: output, shape index: {}]
  %s3 = sld [smem:[#allocation0]]
  $region18: #{generator_forward.6} parent=0
    _
  %s5 = ssub.s32 1, %s3
  %s6 = scalar_select 0, %s5, %s3
  // Predicated region
  $region2: #{generator_forward.6} parent=0 // pred_check
    _
  $region3: #{generator_forward.6} parent=0 // pred_check_branch
    %8 = sbr.rel (0) target = $region5
  $region4: #{generator_forward.6} parent=0 // pred_region
    _
  $region5: #{generator_forward.6} parent=0 // pred_fallthru
    _
  // Predicated region
  $region6: #{generator_forward.6} parent=0 // pred_check
    _
  $region7: #{generator_forward.6} parent=0 // pred_check_branch
    %10 = sbr.rel (0) target = $region9
  $region8: #{generator_forward.6} parent=0 // pred_region
    _
  $region9: #{generator_forward.6} parent=0 // pred_fallthru
    _
  %s12 = smul.u32 0, 8
  %s13 = smul.addr %s12, 4
  %s14 = scalar_lea.vmem %s0, %s13
  %v15 = vld [vmem:[%s14] sm:$0xff]
  %v16 = vld [vmem:[%s14 + $0x8] sm:$0xff]
  %v17 = vld [vmem:[%s14 + $0x10] sm:$0xff]
  %v18 = vld [vmem:[%s14 + $0x18] sm:$0xff]
  %v19 = vld [vmem:[%s14 + $0x20] sm:$0xff]
  %v20 = vld [vmem:[%s14 + $0x28] sm:$0xff]
  %v21 = vld [vmem:[%s14 + $0x30] sm:$0xff]
  %v22 = vld [vmem:[%s14 + $0x38] sm:$0xff]
  %v23 = vld [vmem:[%s14 + $0x40] sm:$0xff]
  %v24 = vld [vmem:[%s14 + $0x48] sm:$0xff]
  %v25 = vld [vmem:[%s14 + $0x50] sm:$0xff]
  %v26 = vld [vmem:[%s14 + $0x58] sm:$0xff]
  %v27 = vld [vmem:[%s14 + $0x60] sm:$0xff]
  %v28 = vld [vmem:[%s14 + $0x68] sm:$0xff]
  %v29 = vld [vmem:[%s14 + $0x70] sm:$0xff]
  %v30 = vld [vmem:[%s14 + $0x78] sm:$0xff]
  %v31 = vld [vmem:[%s14 + $0x80] sm:$0xff]
  %v32 = vld [vmem:[%s14 + $0x88] sm:$0xff]
  %v33 = vld [vmem:[%s14 + $0x90] sm:$0xff]
  %v34 = vld [vmem:[%s14 + $0x98] sm:$0xff]
  %v35 = vld [vmem:[%s14 + $0xa0] sm:$0xff]
  %v36 = vld [vmem:[%s14 + $0xa8] sm:$0xff]
  %v37 = vld [vmem:[%s14 + $0xb0] sm:$0xff]
  %v38 = vld [vmem:[%s14 + $0xb8] sm:$0xff]
  %v39 = vld [vmem:[%s14 + $0xc0] sm:$0xff]
  %v40 = vld [vmem:[%s14 + $0xc8] sm:$0xff]
  %v41 = vld [vmem:[%s14 + $0xd0] sm:$0xff]
  %v42 = vld [vmem:[%s14 + $0xd8] sm:$0xff]
  %v43 = vld [vmem:[%s14 + $0xe0] sm:$0xff]
  %v44 = vld [vmem:[%s14 + $0xe8] sm:$0xff]
  %v45 = vld [vmem:[%s14 + $0xf0] sm:$0xff]
  %v46 = vld [vmem:[%s14 + $0xf8] sm:$0xff]
  %v47 = vld [vmem:[%s14 + $0x100] sm:$0xff]
  %v48 = vld [vmem:[%s14 + $0x108] sm:$0xff]
  %v49 = vld [vmem:[%s14 + $0x110] sm:$0xff]
  %v50 = vld [vmem:[%s14 + $0x118] sm:$0xff]
  %v51 = vld [vmem:[%s14 + $0x120] sm:$0xff]
  %v52 = vld [vmem:[%s14 + $0x128] sm:$0xff]
  %v53 = vld [vmem:[%s14 + $0x130] sm:$0xff]
  %v54 = vld [vmem:[%s14 + $0x138] sm:$0xff]
  %v55 = vld [vmem:[%s14 + $0x140] sm:$0xff]
  %v56 = vld [vmem:[%s14 + $0x148] sm:$0xff]
  %v57 = vld [vmem:[%s14 + $0x150] sm:$0xff]
  %v58 = vld [vmem:[%s14 + $0x158] sm:$0xff]
  %v59 = vld [vmem:[%s14 + $0x160] sm:$0xff]
  %v60 = vld [vmem:[%s14 + $0x168] sm:$0xff]
  %v61 = vld [vmem:[%s14 + $0x170] sm:$0xff]
  %v62 = vld [vmem:[%s14 + $0x178] sm:$0xff]
  %v63 = vld [vmem:[%s14 + $0x180] sm:$0xff]
  %v64 = vld [vmem:[%s14 + $0x188] sm:$0xff]
  %v65 = vld [vmem:[%s14 + $0x190] sm:$0xff]
  %v66 = vld [vmem:[%s14 + $0x198] sm:$0xff]
  %v67 = vld [vmem:[%s14 + $0x1a0] sm:$0xff]
  %v68 = vld [vmem:[%s14 + $0x1a8] sm:$0xff]
  %v69 = vld [vmem:[%s14 + $0x1b0] sm:$0xff]
  %v70 = vld [vmem:[%s14 + $0x1b8] sm:$0xff]
  %v71 = vld [vmem:[%s14 + $0x1c0] sm:$0xff]
  %v72 = vld [vmem:[%s14 + $0x1c8] sm:$0xff]
  %v73 = vld [vmem:[%s14 + $0x1d0] sm:$0xff]
  %v74 = vld [vmem:[%s14 + $0x1d8] sm:$0xff]
  %v75 = vld [vmem:[%s14 + $0x1e0] sm:$0xff]
  %v76 = vld [vmem:[%s14 + $0x1e8] sm:$0xff]
  %v77 = vld [vmem:[%s14 + $0x1f0] sm:$0xff]
  %v78 = vld [vmem:[%s14 + $0x1f8] sm:$0xff]
  %v79 = vld [vmem:[%s1] sm:$0xf]
  %v80 = vld [vmem:[%s1 + $0x4] sm:$0xf]
  %v81 = vld [vmem:[%s1 + $0x8] sm:$0xf]
  %v82 = vld [vmem:[%s1 + $0xc] sm:$0xf]
  %v83 = vld [vmem:[%s1 + $0x10] sm:$0xf]
  %v84 = vld [vmem:[%s1 + $0x14] sm:$0xf]
  %v85 = vld [vmem:[%s1 + $0x18] sm:$0xf]
  %v86 = vld [vmem:[%s1 + $0x1c] sm:$0xf]
  %v87 = vld [vmem:[%s1 + $0x20] sm:$0xf]
  %v88 = vld [vmem:[%s1 + $0x24] sm:$0xf]
  %v89 = vld [vmem:[%s1 + $0x28] sm:$0xf]
  %v90 = vld [vmem:[%s1 + $0x2c] sm:$0xf]
  %v91 = vld [vmem:[%s1 + $0x30] sm:$0xf]
  %v92 = vld [vmem:[%s1 + $0x34] sm:$0xf]
  %v93 = vld [vmem:[%s1 + $0x38] sm:$0xf]
  %v94 = vld [vmem:[%s1 + $0x3c] sm:$0xf]
  %v95 = vld [vmem:[%s1 + $0x40] sm:$0xf]
  %v96 = vld [vmem:[%s1 + $0x44] sm:$0xf]
  %v97 = vld [vmem:[%s1 + $0x48] sm:$0xf]
  %v98 = vld [vmem:[%s1 + $0x4c] sm:$0xf]
  %v99 = vld [vmem:[%s1 + $0x50] sm:$0xf]
  %v100 = vld [vmem:[%s1 + $0x54] sm:$0xf]
  %v101 = vld [vmem:[%s1 + $0x58] sm:$0xf]
  %v102 = vld [vmem:[%s1 + $0x5c] sm:$0xf]
  %v103 = vld [vmem:[%s1 + $0x60] sm:$0xf]
  %v104 = vld [vmem:[%s1 + $0x64] sm:$0xf]
  %v105 = vld [vmem:[%s1 + $0x68] sm:$0xf]
  %v106 = vld [vmem:[%s1 + $0x6c] sm:$0xf]
  %v107 = vld [vmem:[%s1 + $0x70] sm:$0xf]
  %v108 = vld [vmem:[%s1 + $0x74] sm:$0xf]
  %v109 = vld [vmem:[%s1 + $0x78] sm:$0xf]
  %v110 = vld [vmem:[%s1 + $0x7c] sm:$0xf]
  %v111 = vld [vmem:[%s1 + $0x80] sm:$0xf]
  %v112 = vld [vmem:[%s1 + $0x84] sm:$0xf]
  %v113 = vld [vmem:[%s1 + $0x88] sm:$0xf]
  %v114 = vld [vmem:[%s1 + $0x8c] sm:$0xf]
  %v115 = vld [vmem:[%s1 + $0x90] sm:$0xf]
  %v116 = vld [vmem:[%s1 + $0x94] sm:$0xf]
  %v117 = vld [vmem:[%s1 + $0x98] sm:$0xf]
  %v118 = vld [vmem:[%s1 + $0x9c] sm:$0xf]
  %v119 = vld [vmem:[%s1 + $0xa0] sm:$0xf]
  %v120 = vld [vmem:[%s1 + $0xa4] sm:$0xf]
  %v121 = vld [vmem:[%s1 + $0xa8] sm:$0xf]
  %v122 = vld [vmem:[%s1 + $0xac] sm:$0xf]
  %v123 = vld [vmem:[%s1 + $0xb0] sm:$0xf]
  %v124 = vld [vmem:[%s1 + $0xb4] sm:$0xf]
  %v125 = vld [vmem:[%s1 + $0xb8] sm:$0xf]
  %v126 = vld [vmem:[%s1 + $0xbc] sm:$0xf]
  %v127 = vld [vmem:[%s1 + $0xc0] sm:$0xf]
  %v128 = vld [vmem:[%s1 + $0xc4] sm:$0xf]
  %v129 = vld [vmem:[%s1 + $0xc8] sm:$0xf]
  %v130 = vld [vmem:[%s1 + $0xcc] sm:$0xf]
  %v131 = vld [vmem:[%s1 + $0xd0] sm:$0xf]
  %v132 = vld [vmem:[%s1 + $0xd4] sm:$0xf]
  %v133 = vld [vmem:[%s1 + $0xd8] sm:$0xf]
  %v134 = vld [vmem:[%s1 + $0xdc] sm:$0xf]
  %v135 = vld [vmem:[%s1 + $0xe0] sm:$0xf]
  %v136 = vld [vmem:[%s1 + $0xe4] sm:$0xf]
  %v137 = vld [vmem:[%s1 + $0xe8] sm:$0xf]
  %v138 = vld [vmem:[%s1 + $0xec] sm:$0xf]
  %v139 = vld [vmem:[%s1 + $0xf0] sm:$0xf]
  %v140 = vld [vmem:[%s1 + $0xf4] sm:$0xf]
  %v141 = vld [vmem:[%s1 + $0xf8] sm:$0xf]
  %v142 = vld [vmem:[%s1 + $0xfc] sm:$0xf]
  %v143 = vld [vmem:[%s1 + $0x100] sm:$0xf]
  %v144 = vld [vmem:[%s1 + $0x104] sm:$0xf]
  %v145 = vld [vmem:[%s1 + $0x108] sm:$0xf]
  %v146 = vld [vmem:[%s1 + $0x10c] sm:$0xf]
  %v147 = vld [vmem:[%s1 + $0x110] sm:$0xf]
  %v148 = vld [vmem:[%s1 + $0x114] sm:$0xf]
  %v149 = vld [vmem:[%s1 + $0x118] sm:$0xf]
  %v150 = vld [vmem:[%s1 + $0x11c] sm:$0xf]
  %v151 = vld [vmem:[%s1 + $0x120] sm:$0xf]
  %v152 = vld [vmem:[%s1 + $0x124] sm:$0xf]
  %v153 = vld [vmem:[%s1 + $0x128] sm:$0xf]
  %v154 = vld [vmem:[%s1 + $0x12c] sm:$0xf]
  %v155 = vld [vmem:[%s1 + $0x130] sm:$0xf]
  %v156 = vld [vmem:[%s1 + $0x134] sm:$0xf]
  %v157 = vld [vmem:[%s1 + $0x138] sm:$0xf]
  %v158 = vld [vmem:[%s1 + $0x13c] sm:$0xf]
  %v159 = vld [vmem:[%s1 + $0x140] sm:$0xf]
  %v160 = vld [vmem:[%s1 + $0x144] sm:$0xf]
  %v161 = vld [vmem:[%s1 + $0x148] sm:$0xf]
  %v162 = vld [vmem:[%s1 + $0x14c] sm:$0xf]
  %v163 = vld [vmem:[%s1 + $0x150] sm:$0xf]
  %v164 = vld [vmem:[%s1 + $0x154] sm:$0xf]
  %v165 = vld [vmem:[%s1 + $0x158] sm:$0xf]
  %v166 = vld [vmem:[%s1 + $0x15c] sm:$0xf]
  %v167 = vld [vmem:[%s1 + $0x160] sm:$0xf]
  %v168 = vld [vmem:[%s1 + $0x164] sm:$0xf]
  %v169 = vld [vmem:[%s1 + $0x168] sm:$0xf]
  %v170 = vld [vmem:[%s1 + $0x16c] sm:$0xf]
  %v171 = vld [vmem:[%s1 + $0x170] sm:$0xf]
  %v172 = vld [vmem:[%s1 + $0x174] sm:$0xf]
  %v173 = vld [vmem:[%s1 + $0x178] sm:$0xf]
  %v174 = vld [vmem:[%s1 + $0x17c] sm:$0xf]
  %v175 = vld [vmem:[%s1 + $0x180] sm:$0xf]
  %v176 = vld [vmem:[%s1 + $0x184] sm:$0xf]
  %v177 = vld [vmem:[%s1 + $0x188] sm:$0xf]
  %v178 = vld [vmem:[%s1 + $0x18c] sm:$0xf]
  %v179 = vld [vmem:[%s1 + $0x190] sm:$0xf]
  %v180 = vld [vmem:[%s1 + $0x194] sm:$0xf]
  %v181 = vld [vmem:[%s1 + $0x198] sm:$0xf]
  %v182 = vld [vmem:[%s1 + $0x19c] sm:$0xf]
  %v183 = vld [vmem:[%s1 + $0x1a0] sm:$0xf]
  %v184 = vld [vmem:[%s1 + $0x1a4] sm:$0xf]
  %v185 = vld [vmem:[%s1 + $0x1a8] sm:$0xf]
  %v186 = vld [vmem:[%s1 + $0x1ac] sm:$0xf]
  %v187 = vld [vmem:[%s1 + $0x1b0] sm:$0xf]
  %v188 = vld [vmem:[%s1 + $0x1b4] sm:$0xf]
  %v189 = vld [vmem:[%s1 + $0x1b8] sm:$0xf]
  %v190 = vld [vmem:[%s1 + $0x1bc] sm:$0xf]
  %v191 = vld [vmem:[%s1 + $0x1c0] sm:$0xf]
  %v192 = vld [vmem:[%s1 + $0x1c4] sm:$0xf]
  %v193 = vld [vmem:[%s1 + $0x1c8] sm:$0xf]
  %v194 = vld [vmem:[%s1 + $0x1cc] sm:$0xf]
  %v195 = vld [vmem:[%s1 + $0x1d0] sm:$0xf]
  %v196 = vld [vmem:[%s1 + $0x1d4] sm:$0xf]
  %v197 = vld [vmem:[%s1 + $0x1d8] sm:$0xf]
  %v198 = vld [vmem:[%s1 + $0x1dc] sm:$0xf]
  %v199 = vld [vmem:[%s1 + $0x1e0] sm:$0xf]
  %v200 = vld [vmem:[%s1 + $0x1e4] sm:$0xf]
  %v201 = vld [vmem:[%s1 + $0x1e8] sm:$0xf]
  %v202 = vld [vmem:[%s1 + $0x1ec] sm:$0xf]
  %v203 = vld [vmem:[%s1 + $0x1f0] sm:$0xf]
  %v204 = vld [vmem:[%s1 + $0x1f4] sm:$0xf]
  %v205 = vld [vmem:[%s1 + $0x1f8] sm:$0xf]
  %v206 = vld [vmem:[%s1 + $0x1fc] sm:$0xf]
  %v271 = vunpack.c.l.b16 %v15
  %v272 = vunpack.c.h.b16 %v15
  %v273 = vunpack.c.l.b16 %v16
  %v274 = vunpack.c.h.b16 %v16
  %v275 = vunpack.c.l.b16 %v17
  %v276 = vunpack.c.h.b16 %v17
  %v277 = vunpack.c.l.b16 %v18
  %v278 = vunpack.c.h.b16 %v18
  %v279 = vunpack.c.l.b16 %v19
  %v280 = vunpack.c.h.b16 %v19
  %v281 = vunpack.c.l.b16 %v20
  %v282 = vunpack.c.h.b16 %v20
  %v283 = vunpack.c.l.b16 %v21
  %v284 = vunpack.c.h.b16 %v21
  %v285 = vunpack.c.l.b16 %v22
  %v286 = vunpack.c.h.b16 %v22
  %v287 = vunpack.c.l.b16 %v23
  %v288 = vunpack.c.h.b16 %v23
  %v289 = vunpack.c.l.b16 %v24
  %v290 = vunpack.c.h.b16 %v24
  %v291 = vunpack.c.l.b16 %v25
  %v292 = vunpack.c.h.b16 %v25
  %v293 = vunpack.c.l.b16 %v26
  %v294 = vunpack.c.h.b16 %v26
  %v295 = vunpack.c.l.b16 %v27
  %v296 = vunpack.c.h.b16 %v27
  %v297 = vunpack.c.l.b16 %v28
  %v298 = vunpack.c.h.b16 %v28
  %v299 = vunpack.c.l.b16 %v29
  %v300 = vunpack.c.h.b16 %v29
  %v301 = vunpack.c.l.b16 %v30
  %v302 = vunpack.c.h.b16 %v30
  %v303 = vunpack.c.l.b16 %v31
  %v304 = vunpack.c.h.b16 %v31
  %v305 = vunpack.c.l.b16 %v32
  %v306 = vunpack.c.h.b16 %v32
  %v307 = vunpack.c.l.b16 %v33
  %v308 = vunpack.c.h.b16 %v33
  %v309 = vunpack.c.l.b16 %v34
  %v310 = vunpack.c.h.b16 %v34
  %v311 = vunpack.c.l.b16 %v35
  %v312 = vunpack.c.h.b16 %v35
  %v313 = vunpack.c.l.b16 %v36
  %v314 = vunpack.c.h.b16 %v36
  %v315 = vunpack.c.l.b16 %v37
  %v316 = vunpack.c.h.b16 %v37
  %v317 = vunpack.c.l.b16 %v38
  %v318 = vunpack.c.h.b16 %v38
  %v319 = vunpack.c.l.b16 %v39
  %v320 = vunpack.c.h.b16 %v39
  %v321 = vunpack.c.l.b16 %v40
  %v322 = vunpack.c.h.b16 %v40
  %v323 = vunpack.c.l.b16 %v41
  %v324 = vunpack.c.h.b16 %v41
  %v325 = vunpack.c.l.b16 %v42
  %v326 = vunpack.c.h.b16 %v42
  %v327 = vunpack.c.l.b16 %v43
  %v328 = vunpack.c.h.b16 %v43
  %v329 = vunpack.c.l.b16 %v44
  %v330 = vunpack.c.h.b16 %v44
  %v331 = vunpack.c.l.b16 %v45
  %v332 = vunpack.c.h.b16 %v45
  %v333 = vunpack.c.l.b16 %v46
  %v334 = vunpack.c.h.b16 %v46
  %v335 = vunpack.c.l.b16 %v47
  %v336 = vunpack.c.h.b16 %v47
  %v337 = vunpack.c.l.b16 %v48
  %v338 = vunpack.c.h.b16 %v48
  %v339 = vunpack.c.l.b16 %v49
  %v340 = vunpack.c.h.b16 %v49
  %v341 = vunpack.c.l.b16 %v50
  %v342 = vunpack.c.h.b16 %v50
  %v343 = vunpack.c.l.b16 %v51
  %v344 = vunpack.c.h.b16 %v51
  %v345 = vunpack.c.l.b16 %v52
  %v346 = vunpack.c.h.b16 %v52
  %v347 = vunpack.c.l.b16 %v53
  %v348 = vunpack.c.h.b16 %v53
  %v349 = vunpack.c.l.b16 %v54
  %v350 = vunpack.c.h.b16 %v54
  %v351 = vunpack.c.l.b16 %v55
  %v352 = vunpack.c.h.b16 %v55
  %v353 = vunpack.c.l.b16 %v56
  %v354 = vunpack.c.h.b16 %v56
  %v355 = vunpack.c.l.b16 %v57
  %v356 = vunpack.c.h.b16 %v57
  %v357 = vunpack.c.l.b16 %v58
  %v358 = vunpack.c.h.b16 %v58
  %v359 = vunpack.c.l.b16 %v59
  %v360 = vunpack.c.h.b16 %v59
  %v361 = vunpack.c.l.b16 %v60
  %v362 = vunpack.c.h.b16 %v60
  %v363 = vunpack.c.l.b16 %v61
  %v364 = vunpack.c.h.b16 %v61
  %v365 = vunpack.c.l.b16 %v62
  %v366 = vunpack.c.h.b16 %v62
  %v367 = vunpack.c.l.b16 %v63
  %v368 = vunpack.c.h.b16 %v63
  %v369 = vunpack.c.l.b16 %v64
  %v370 = vunpack.c.h.b16 %v64
  %v371 = vunpack.c.l.b16 %v65
  %v372 = vunpack.c.h.b16 %v65
  %v373 = vunpack.c.l.b16 %v66
  %v374 = vunpack.c.h.b16 %v66
  %v375 = vunpack.c.l.b16 %v67
  %v376 = vunpack.c.h.b16 %v67
  %v377 = vunpack.c.l.b16 %v68
  %v378 = vunpack.c.h.b16 %v68
  %v379 = vunpack.c.l.b16 %v69
  %v380 = vunpack.c.h.b16 %v69
  %v381 = vunpack.c.l.b16 %v70
  %v382 = vunpack.c.h.b16 %v70
  %v383 = vunpack.c.l.b16 %v71
  %v384 = vunpack.c.h.b16 %v71
  %v385 = vunpack.c.l.b16 %v72
  %v386 = vunpack.c.h.b16 %v72
  %v387 = vunpack.c.l.b16 %v73
  %v388 = vunpack.c.h.b16 %v73
  %v389 = vunpack.c.l.b16 %v74
  %v390 = vunpack.c.h.b16 %v74
  %v391 = vunpack.c.l.b16 %v75
  %v392 = vunpack.c.h.b16 %v75
  %v393 = vunpack.c.l.b16 %v76
  %v394 = vunpack.c.h.b16 %v76
  %v395 = vunpack.c.l.b16 %v77
  %v396 = vunpack.c.h.b16 %v77
  %v397 = vunpack.c.l.b16 %v78
  %v398 = vunpack.c.h.b16 %v78
  %v399 = vpack.c.b16 %v279, %v271
  %v400 = vpack.c.b16 %v280, %v272
  %v401 = vpack.c.b16 %v281, %v273
  %v402 = vpack.c.b16 %v282, %v274
  %v403 = vpack.c.b16 %v283, %v275
  %v404 = vpack.c.b16 %v284, %v276
  %v405 = vpack.c.b16 %v285, %v277
  %v406 = vpack.c.b16 %v286, %v278
  %v407 = vpack.c.b16 %v295, %v287
  %v408 = vpack.c.b16 %v296, %v288
  %v409 = vpack.c.b16 %v297, %v289
  %v410 = vpack.c.b16 %v298, %v290
  %v411 = vpack.c.b16 %v299, %v291
  %v412 = vpack.c.b16 %v300, %v292
  %v413 = vpack.c.b16 %v301, %v293
  %v414 = vpack.c.b16 %v302, %v294
  %v415 = vpack.c.b16 %v311, %v303
  %v416 = vpack.c.b16 %v312, %v304
  %v417 = vpack.c.b16 %v313, %v305
  %v418 = vpack.c.b16 %v314, %v306
  %v419 = vpack.c.b16 %v315, %v307
  %v420 = vpack.c.b16 %v316, %v308
  %v421 = vpack.c.b16 %v317, %v309
  %v422 = vpack.c.b16 %v318, %v310
  %v423 = vpack.c.b16 %v327, %v319
  %v424 = vpack.c.b16 %v328, %v320
  %v425 = vpack.c.b16 %v329, %v321
  %v426 = vpack.c.b16 %v330, %v322
  %v427 = vpack.c.b16 %v331, %v323
  %v428 = vpack.c.b16 %v332, %v324
  %v429 = vpack.c.b16 %v333, %v325
  %v430 = vpack.c.b16 %v334, %v326
  %v431 = vpack.c.b16 %v343, %v335
  %v432 = vpack.c.b16 %v344, %v336
  %v433 = vpack.c.b16 %v345, %v337
  %v434 = vpack.c.b16 %v346, %v338
  %v435 = vpack.c.b16 %v347, %v339
  %v436 = vpack.c.b16 %v348, %v340
  %v437 = vpack.c.b16 %v349, %v341
  %v438 = vpack.c.b16 %v350, %v342
  %v439 = vpack.c.b16 %v359, %v351
  %v440 = vpack.c.b16 %v360, %v352
  %v441 = vpack.c.b16 %v361, %v353
  %v442 = vpack.c.b16 %v362, %v354
  %v443 = vpack.c.b16 %v363, %v355
  %v444 = vpack.c.b16 %v364, %v356
  %v445 = vpack.c.b16 %v365, %v357
  %v446 = vpack.c.b16 %v366, %v358
  %v447 = vpack.c.b16 %v375, %v367
  %v448 = vpack.c.b16 %v376, %v368
  %v449 = vpack.c.b16 %v377, %v369
  %v450 = vpack.c.b16 %v378, %v370
  %v451 = vpack.c.b16 %v379, %v371
  %v452 = vpack.c.b16 %v380, %v372
  %v453 = vpack.c.b16 %v381, %v373
  %v454 = vpack.c.b16 %v382, %v374
  %v455 = vpack.c.b16 %v391, %v383
  %v456 = vpack.c.b16 %v392, %v384
  %v457 = vpack.c.b16 %v393, %v385
  %v458 = vpack.c.b16 %v394, %v386
  %v459 = vpack.c.b16 %v395, %v387
  %v460 = vpack.c.b16 %v396, %v388
  %v461 = vpack.c.b16 %v397, %v389
  %v462 = vpack.c.b16 %v398, %v390
  %v655 = vunpack.c.l.b16 %v79
  %v656 = vunpack.c.l.b16 %v80
  %v657 = vunpack.c.l.b16 %v81
  %v658 = vunpack.c.l.b16 %v82
  %v659 = vunpack.c.l.b16 %v83
  %v660 = vunpack.c.l.b16 %v84
  %v661 = vunpack.c.l.b16 %v85
  %v662 = vunpack.c.l.b16 %v86
  %v663 = vunpack.c.l.b16 %v87
  %v664 = vunpack.c.l.b16 %v88
  %v665 = vunpack.c.l.b16 %v89
  %v666 = vunpack.c.l.b16 %v90
  %v667 = vunpack.c.l.b16 %v91
  %v668 = vunpack.c.l.b16 %v92
  %v669 = vunpack.c.l.b16 %v93
  %v670 = vunpack.c.l.b16 %v94
  %v671 = vunpack.c.l.b16 %v95
  %v672 = vunpack.c.l.b16 %v96
  %v673 = vunpack.c.l.b16 %v97
  %v674 = vunpack.c.l.b16 %v98
  %v675 = vunpack.c.l.b16 %v99
  %v676 = vunpack.c.l.b16 %v100
  %v677 = vunpack.c.l.b16 %v101
  %v678 = vunpack.c.l.b16 %v102
  %v679 = vunpack.c.l.b16 %v103
  %v680 = vunpack.c.l.b16 %v104
  %v681 = vunpack.c.l.b16 %v105
  %v682 = vunpack.c.l.b16 %v106
  %v683 = vunpack.c.l.b16 %v107
  %v684 = vunpack.c.l.b16 %v108
  %v685 = vunpack.c.l.b16 %v109
  %v686 = vunpack.c.l.b16 %v110
  %v687 = vunpack.c.l.b16 %v111
  %v688 = vunpack.c.l.b16 %v112
  %v689 = vunpack.c.l.b16 %v113
  %v690 = vunpack.c.l.b16 %v114
  %v691 = vunpack.c.l.b16 %v115
  %v692 = vunpack.c.l.b16 %v116
  %v693 = vunpack.c.l.b16 %v117
  %v694 = vunpack.c.l.b16 %v118
  %v695 = vunpack.c.l.b16 %v119
  %v696 = vunpack.c.l.b16 %v120
  %v697 = vunpack.c.l.b16 %v121
  %v698 = vunpack.c.l.b16 %v122
  %v699 = vunpack.c.l.b16 %v123
  %v700 = vunpack.c.l.b16 %v124
  %v701 = vunpack.c.l.b16 %v125
  %v702 = vunpack.c.l.b16 %v126
  %v703 = vunpack.c.l.b16 %v127
  %v704 = vunpack.c.l.b16 %v128
  %v705 = vunpack.c.l.b16 %v129
  %v706 = vunpack.c.l.b16 %v130
  %v707 = vunpack.c.l.b16 %v131
  %v708 = vunpack.c.l.b16 %v132
  %v709 = vunpack.c.l.b16 %v133
  %v710 = vunpack.c.l.b16 %v134
  %v711 = vunpack.c.l.b16 %v135
  %v712 = vunpack.c.l.b16 %v136
  %v713 = vunpack.c.l.b16 %v137
  %v714 = vunpack.c.l.b16 %v138
  %v715 = vunpack.c.l.b16 %v139
  %v716 = vunpack.c.l.b16 %v140
  %v717 = vunpack.c.l.b16 %v141
  %v718 = vunpack.c.l.b16 %v142
  %v719 = vunpack.c.l.b16 %v143
  %v720 = vunpack.c.l.b16 %v144
  %v721 = vunpack.c.l.b16 %v145
  %v722 = vunpack.c.l.b16 %v146
  %v723 = vunpack.c.l.b16 %v147
  %v724 = vunpack.c.l.b16 %v148
  %v725 = vunpack.c.l.b16 %v149
  %v726 = vunpack.c.l.b16 %v150
  %v727 = vunpack.c.l.b16 %v151
  %v728 = vunpack.c.l.b16 %v152
  %v729 = vunpack.c.l.b16 %v153
  %v730 = vunpack.c.l.b16 %v154
  %v731 = vunpack.c.l.b16 %v155
  %v732 = vunpack.c.l.b16 %v156
  %v733 = vunpack.c.l.b16 %v157
  %v734 = vunpack.c.l.b16 %v158
  %v735 = vunpack.c.l.b16 %v159
  %v736 = vunpack.c.l.b16 %v160
  %v737 = vunpack.c.l.b16 %v161
  %v738 = vunpack.c.l.b16 %v162
  %v739 = vunpack.c.l.b16 %v163
  %v740 = vunpack.c.l.b16 %v164
  %v741 = vunpack.c.l.b16 %v165
  %v742 = vunpack.c.l.b16 %v166
  %v743 = vunpack.c.l.b16 %v167
  %v744 = vunpack.c.l.b16 %v168
  %v745 = vunpack.c.l.b16 %v169
  %v746 = vunpack.c.l.b16 %v170
  %v747 = vunpack.c.l.b16 %v171
  %v748 = vunpack.c.l.b16 %v172
  %v749 = vunpack.c.l.b16 %v173
  %v750 = vunpack.c.l.b16 %v174
  %v751 = vunpack.c.l.b16 %v175
  %v752 = vunpack.c.l.b16 %v176
  %v753 = vunpack.c.l.b16 %v177
  %v754 = vunpack.c.l.b16 %v178
  %v755 = vunpack.c.l.b16 %v179
  %v756 = vunpack.c.l.b16 %v180
  %v757 = vunpack.c.l.b16 %v181
  %v758 = vunpack.c.l.b16 %v182
  %v759 = vunpack.c.l.b16 %v183
  %v760 = vunpack.c.l.b16 %v184
  %v761 = vunpack.c.l.b16 %v185
  %v762 = vunpack.c.l.b16 %v186
  %v763 = vunpack.c.l.b16 %v187
  %v764 = vunpack.c.l.b16 %v188
  %v765 = vunpack.c.l.b16 %v189
  %v766 = vunpack.c.l.b16 %v190
  %v767 = vunpack.c.l.b16 %v191
  %v768 = vunpack.c.l.b16 %v192
  %v769 = vunpack.c.l.b16 %v193
  %v770 = vunpack.c.l.b16 %v194
  %v771 = vunpack.c.l.b16 %v195
  %v772 = vunpack.c.l.b16 %v196
  %v773 = vunpack.c.l.b16 %v197
  %v774 = vunpack.c.l.b16 %v198
  %v775 = vunpack.c.l.b16 %v199
  %v776 = vunpack.c.l.b16 %v200
  %v777 = vunpack.c.l.b16 %v201
  %v778 = vunpack.c.l.b16 %v202
  %v779 = vunpack.c.l.b16 %v203
  %v780 = vunpack.c.l.b16 %v204
  %v781 = vunpack.c.l.b16 %v205
  %v782 = vunpack.c.l.b16 %v206
  %v783 = vpack.c.b16 %v656, %v655
  %v784 = vpack.c.b16 %v658, %v657
  %v785 = vpack.c.b16 %v660, %v659
  %v786 = vpack.c.b16 %v662, %v661
  %v787 = vpack.c.b16 %v664, %v663
  %v788 = vpack.c.b16 %v666, %v665
  %v789 = vpack.c.b16 %v668, %v667
  %v790 = vpack.c.b16 %v670, %v669
  %v791 = vpack.c.b16 %v672, %v671
  %v792 = vpack.c.b16 %v674, %v673
  %v793 = vpack.c.b16 %v676, %v675
  %v794 = vpack.c.b16 %v678, %v677
  %v795 = vpack.c.b16 %v680, %v679
  %v796 = vpack.c.b16 %v682, %v681
  %v797 = vpack.c.b16 %v684, %v683
  %v798 = vpack.c.b16 %v686, %v685
  %v799 = vpack.c.b16 %v688, %v687
  %v800 = vpack.c.b16 %v690, %v689
  %v801 = vpack.c.b16 %v692, %v691
  %v802 = vpack.c.b16 %v694, %v693
  %v803 = vpack.c.b16 %v696, %v695
  %v804 = vpack.c.b16 %v698, %v697
  %v805 = vpack.c.b16 %v700, %v699
  %v806 = vpack.c.b16 %v702, %v701
  %v807 = vpack.c.b16 %v704, %v703
  %v808 = vpack.c.b16 %v706, %v705
  %v809 = vpack.c.b16 %v708, %v707
  %v810 = vpack.c.b16 %v710, %v709
  %v811 = vpack.c.b16 %v712, %v711
  %v812 = vpack.c.b16 %v714, %v713
  %v813 = vpack.c.b16 %v716, %v715
  %v814 = vpack.c.b16 %v718, %v717
  %v815 = vpack.c.b16 %v720, %v719
  %v816 = vpack.c.b16 %v722, %v721
  %v817 = vpack.c.b16 %v724, %v723
  %v818 = vpack.c.b16 %v726, %v725
  %v819 = vpack.c.b16 %v728, %v727
  %v820 = vpack.c.b16 %v730, %v729
  %v821 = vpack.c.b16 %v732, %v731
  %v822 = vpack.c.b16 %v734, %v733
  %v823 = vpack.c.b16 %v736, %v735
  %v824 = vpack.c.b16 %v738, %v737
  %v825 = vpack.c.b16 %v740, %v739
  %v826 = vpack.c.b16 %v742, %v741
  %v827 = vpack.c.b16 %v744, %v743
  %v828 = vpack.c.b16 %v746, %v745
  %v829 = vpack.c.b16 %v748, %v747
  %v830 = vpack.c.b16 %v750, %v749
  %v831 = vpack.c.b16 %v752, %v751
  %v832 = vpack.c.b16 %v754, %v753
  %v833 = vpack.c.b16 %v756, %v755
  %v834 = vpack.c.b16 %v758, %v757
  %v835 = vpack.c.b16 %v760, %v759
  %v836 = vpack.c.b16 %v762, %v761
  %v837 = vpack.c.b16 %v764, %v763
  %v838 = vpack.c.b16 %v766, %v765
  %v839 = vpack.c.b16 %v768, %v767
  %v840 = vpack.c.b16 %v770, %v769
  %v841 = vpack.c.b16 %v772, %v771
  %v842 = vpack.c.b16 %v774, %v773
  %v843 = vpack.c.b16 %v776, %v775
  %v844 = vpack.c.b16 %v778, %v777
  %v845 = vpack.c.b16 %v780, %v779
  %v846 = vpack.c.b16 %v782, %v781
  %911 = vmatprep.subr.bf16.mxu0 0
  %912 = vmatpush1.bf16.msra.mxu0 %v783
  %913 = vmatprep.subr.bf16.mxu0 0
  %914 = vmatpush1.bf16.msra.mxu0 %v784
  %915 = vmatprep.subr.bf16.mxu0 0
  %916 = vmatpush1.bf16.msra.mxu0 %v785
  %917 = vmatprep.subr.bf16.mxu0 0
  %918 = vmatpush1.bf16.msra.mxu0 %v786
  %919 = vmatprep.subr.bf16.mxu0 0
  %920 = vmatpush1.bf16.msra.mxu0 %v787
  %921 = vmatprep.subr.bf16.mxu0 0
  %922 = vmatpush1.bf16.msra.mxu0 %v788
  %923 = vmatprep.subr.bf16.mxu0 0
  %924 = vmatpush1.bf16.msra.mxu0 %v789
  %925 = vmatprep.subr.bf16.mxu0 0
  %926 = vmatpush1.bf16.msra.mxu0 %v790
  %927 = vmatprep.subr.bf16.mxu0 0
  %928 = vmatpush1.bf16.msra.mxu0 %v791
  %929 = vmatprep.subr.bf16.mxu0 0
  %930 = vmatpush1.bf16.msra.mxu0 %v792
  %931 = vmatprep.subr.bf16.mxu0 0
  %932 = vmatpush1.bf16.msra.mxu0 %v793
  %933 = vmatprep.subr.bf16.mxu0 0
  %934 = vmatpush1.bf16.msra.mxu0 %v794
  %935 = vmatprep.subr.bf16.mxu0 0
  %936 = vmatpush1.bf16.msra.mxu0 %v795
  %937 = vmatprep.subr.bf16.mxu0 0
  %938 = vmatpush1.bf16.msra.mxu0 %v796
  %939 = vmatprep.subr.bf16.mxu0 0
  %940 = vmatpush1.bf16.msra.mxu0 %v797
  %941 = vmatprep.subr.bf16.mxu0 0
  %942 = vmatpush1.bf16.msra.mxu0 %v798
  %943 = vmatprep.mubr.bf16.mxu0 %v400
  %944 = vmatmul.mubr.bf16.gmra.mrb[0].mxu0 %v399
  %v945 = vpop.f32.mrb[0].mxu0
  %v946 = vadd.f32 0.0, %v945
  %v947 = vpop.f32.mrb[0].mxu0
  %v948 = vpop.f32.mrb[0].mxu0
  %v949 = vadd.f32 0.0, %v948
  %v950 = vpop.f32.mrb[0].mxu0
  %951 = vmatprep.mubr.bf16.mxu0 %v408
  %952 = vmatmul.mubr.bf16.gmra.mrb[0].mxu0 %v407
  %v953 = vpop.f32.mrb[0].mxu0
  %v954 = vadd.f32 0.0, %v953
  %v955 = vpop.f32.mrb[0].mxu0
  %v956 = vpop.f32.mrb[0].mxu0
  %v957 = vadd.f32 0.0, %v956
  %v958 = vpop.f32.mrb[0].mxu0
  %959 = vmatprep.mubr.bf16.mxu0 %v416
  %960 = vmatmul.mubr.bf16.gmra.mrb[0].mxu0 %v415
  %v961 = vpop.f32.mrb[0].mxu0
  %v962 = vadd.f32 0.0, %v961
  %v963 = vpop.f32.mrb[0].mxu0
  %v964 = vpop.f32.mrb[0].mxu0
  %v965 = vadd.f32 0.0, %v964
  %v966 = vpop.f32.mrb[0].mxu0
  %967 = vmatprep.mubr.bf16.mxu0 %v424
  %968 = vmatmul.mubr.bf16.gmra.mrb[0].mxu0 %v423
  %v969 = vpop.f32.mrb[0].mxu0
  %v970 = vadd.f32 0.0, %v969
  %v971 = vpop.f32.mrb[0].mxu0
  %v972 = vpop.f32.mrb[0].mxu0
  %v973 = vadd.f32 0.0, %v972
  %v974 = vpop.f32.mrb[0].mxu0
  %975 = vmatprep.mubr.bf16.mxu0 %v432
  %976 = vmatmul.mubr.bf16.gmra.mrb[0].mxu0 %v431
  %v977 = vpop.f32.mrb[0].mxu0
  %v978 = vadd.f32 0.0, %v977
  %v979 = vpop.f32.mrb[0].mxu0
  %v980 = vpop.f32.mrb[0].mxu0
  %v981 = vadd.f32 0.0, %v980
  %v982 = vpop.f32.mrb[0].mxu0
  %983 = vmatprep.mubr.bf16.mxu0 %v440
  %984 = vmatmul.mubr.bf16.gmra.mrb[0].mxu0 %v439
  %v985 = vpop.f32.mrb[0].mxu0
  %v986 = vadd.f32 0.0, %v985
  %v987 = vpop.f32.mrb[0].mxu0
  %v988 = vpop.f32.mrb[0].mxu0
  %v989 = vadd.f32 0.0, %v988
  %v990 = vpop.f32.mrb[0].mxu0
  %991 = vmatprep.mubr.bf16.mxu0 %v448
  %992 = vmatmul.mubr.bf16.gmra.mrb[0].mxu0 %v447
  %v993 = vpop.f32.mrb[0].mxu0
  %v994 = vadd.f32 0.0, %v993
  %v995 = vpop.f32.mrb[0].mxu0
  %v996 = vpop.f32.mrb[0].mxu0
  %v997 = vadd.f32 0.0, %v996
  %v998 = vpop.f32.mrb[0].mxu0
  %999 = vmatprep.mubr.bf16.mxu0 %v456
  %1000 = vmatmul.mubr.bf16.gmra.mrb[0].mxu0 %v455
  %v1001 = vpop.f32.mrb[0].mxu0
  %v1002 = vadd.f32 0.0, %v1001
  %v1003 = vpop.f32.mrb[0].mxu0
  %v1004 = vpop.f32.mrb[0].mxu0
  %v1005 = vadd.f32 0.0, %v1004
  %v1006 = vpop.f32.mrb[0].mxu0
  %1007 = vdwg.mxu0
  %1008 = vmatprep.subr.bf16.mxu0 0
  %1009 = vmatpush1.bf16.msra.mxu0 %v799
  %1010 = vmatprep.subr.bf16.mxu0 0
  %1011 = vmatpush1.bf16.msra.mxu0 %v800
  %1012 = vmatprep.subr.bf16.mxu0 0
  %1013 = vmatpush1.bf16.msra.mxu0 %v801
  %1014 = vmatprep.subr.bf16.mxu0 0
  %1015 = vmatpush1.bf16.msra.mxu0 %v802
  %1016 = vmatprep.subr.bf16.mxu0 0
  %1017 = vmatpush1.bf16.msra.mxu0 %v803
  %1018 = vmatprep.subr.bf16.mxu0 0
  %1019 = vmatpush1.bf16.msra.mxu0 %v804
  %1020 = vmatprep.subr.bf16.mxu0 0
  %1021 = vmatpush1.bf16.msra.mxu0 %v805
  %1022 = vmatprep.subr.bf16.mxu0 0
  %1023 = vmatpush1.bf16.msra.mxu0 %v806
  %1024 = vmatprep.subr.bf16.mxu0 0
  %1025 = vmatpush1.bf16.msra.mxu0 %v807
  %1026 = vmatprep.subr.bf16.mxu0 0
  %1027 = vmatpush1.bf16.msra.mxu0 %v808
  %1028 = vmatprep.subr.bf16.mxu0 0
  %1029 = vmatpush1.bf16.msra.mxu0 %v809
  %1030 = vmatprep.subr.bf16.mxu0 0
  %1031 = vmatpush1.bf16.msra.mxu0 %v810
  %1032 = vmatprep.subr.bf16.mxu0 0
  %1033 = vmatpush1.bf16.msra.mxu0 %v811
  %1034 = vmatprep.subr.bf16.mxu0 0
  %1035 = vmatpush1.bf16.msra.mxu0 %v812
  %1036 = vmatprep.subr.bf16.mxu0 0
  %1037 = vmatpush1.bf16.msra.mxu0 %v813
  %1038 = vmatprep.subr.bf16.mxu0 0
  %1039 = vmatpush1.bf16.msra.mxu0 %v814
  %1040 = vmatprep.mubr.bf16.mxu0 %v402
  %1041 = vmatmul.mubr.bf16.gmra.mrb[0].mxu0 %v401
  %v1042 = vpop.f32.mrb[0].mxu0
  %v1043 = vadd.f32 %v946, %v1042
  %v1044 = vpop.f32.mrb[0].mxu0
  %v1045 = vpop.f32.mrb[0].mxu0
  %v1046 = vadd.f32 %v949, %v1045
  %v1047 = vpop.f32.mrb[0].mxu0
  %1048 = vmatprep.mubr.bf16.mxu0 %v410
  %1049 = vmatmul.mubr.bf16.gmra.mrb[0].mxu0 %v409
  %v1050 = vpop.f32.mrb[0].mxu0
  %v1051 = vadd.f32 %v954, %v1050
  %v1052 = vpop.f32.mrb[0].mxu0
  %v1053 = vpop.f32.mrb[0].mxu0
  %v1054 = vadd.f32 %v957, %v1053
  %v1055 = vpop.f32.mrb[0].mxu0
  %1056 = vmatprep.mubr.bf16.mxu0 %v418
  %1057 = vmatmul.mubr.bf16.gmra.mrb[0].mxu0 %v417
  %v1058 = vpop.f32.mrb[0].mxu0
  %v1059 = vadd.f32 %v962, %v1058
  %v1060 = vpop.f32.mrb[0].mxu0
  %v1061 = vpop.f32.mrb[0].mxu0
  %v1062 = vadd.f32 %v965, %v1061
  %v1063 = vpop.f32.mrb[0].mxu0
  %1064 = vmatprep.mubr.bf16.mxu0 %v426
  %1065 = vmatmul.mubr.bf16.gmra.mrb[0].mxu0 %v425
  %v1066 = vpop.f32.mrb[0].mxu0
  %v1067 = vadd.f32 %v970, %v1066
  %v1068 = vpop.f32.mrb[0].mxu0
  %v1069 = vpop.f32.mrb[0].mxu0
  %v1070 = vadd.f32 %v973, %v1069
  %v1071 = vpop.f32.mrb[0].mxu0
  %1072 = vmatprep.mubr.bf16.mxu0 %v434
  %1073 = vmatmul.mubr.bf16.gmra.mrb[0].mxu0 %v433
  %v1074 = vpop.f32.mrb[0].mxu0
  %v1075 = vadd.f32 %v978, %v1074
  %v1076 = vpop.f32.mrb[0].mxu0
  %v1077 = vpop.f32.mrb[0].mxu0
  %v1078 = vadd.f32 %v981, %v1077
  %v1079 = vpop.f32.mrb[0].mxu0
  %1080 = vmatprep.mubr.bf16.mxu0 %v442
  %1081 = vmatmul.mubr.bf16.gmra.mrb[0].mxu0 %v441
  %v1082 = vpop.f32.mrb[0].mxu0
  %v1083 = vadd.f32 %v986, %v1082
  %v1084 = vpop.f32.mrb[0].mxu0
  %v1085 = vpop.f32.mrb[0].mxu0
  %v1086 = vadd.f32 %v989, %v1085
  %v1087 = vpop.f32.mrb[0].mxu0
  %1088 = vmatprep.mubr.bf16.mxu0 %v450
  %1089 = vmatmul.mubr.bf16.gmra.mrb[0].mxu0 %v449
  %v1090 = vpop.f32.mrb[0].mxu0
  %v1091 = vadd.f32 %v994, %v1090
  %v1092 = vpop.f32.mrb[0].mxu0
  %v1093 = vpop.f32.mrb[0].mxu0
  %v1094 = vadd.f32 %v997, %v1093
  %v1095 = vpop.f32.mrb[0].mxu0
  %1096 = vmatprep.mubr.bf16.mxu0 %v458
  %1097 = vmatmul.mubr.bf16.gmra.mrb[0].mxu0 %v457
  %v1098 = vpop.f32.mrb[0].mxu0
  %v1099 = vadd.f32 %v1002, %v1098
  %v1100 = vpop.f32.mrb[0].mxu0
  %v1101 = vpop.f32.mrb[0].mxu0
  %v1102 = vadd.f32 %v1005, %v1101
  %v1103 = vpop.f32.mrb[0].mxu0
  %1104 = vdwg.mxu0
  %1105 = vmatprep.subr.bf16.mxu0 0
  %1106 = vmatpush1.bf16.msra.mxu0 %v815
  %1107 = vmatprep.subr.bf16.mxu0 0
  %1108 = vmatpush1.bf16.msra.mxu0 %v816
  %1109 = vmatprep.subr.bf16.mxu0 0
  %1110 = vmatpush1.bf16.msra.mxu0 %v817
  %1111 = vmatprep.subr.bf16.mxu0 0
  %1112 = vmatpush1.bf16.msra.mxu0 %v818
  %1113 = vmatprep.subr.bf16.mxu0 0
  %1114 = vmatpush1.bf16.msra.mxu0 %v819
  %1115 = vmatprep.subr.bf16.mxu0 0
  %1116 = vmatpush1.bf16.msra.mxu0 %v820
  %1117 = vmatprep.subr.bf16.mxu0 0
  %1118 = vmatpush1.bf16.msra.mxu0 %v821
  %1119 = vmatprep.subr.bf16.mxu0 0
  %1120 = vmatpush1.bf16.msra.mxu0 %v822
  %1121 = vmatprep.subr.bf16.mxu0 0
  %1122 = vmatpush1.bf16.msra.mxu0 %v823
  %1123 = vmatprep.subr.bf16.mxu0 0
  %1124 = vmatpush1.bf16.msra.mxu0 %v824
  %1125 = vmatprep.subr.bf16.mxu0 0
  %1126 = vmatpush1.bf16.msra.mxu0 %v825
  %1127 = vmatprep.subr.bf16.mxu0 0
  %1128 = vmatpush1.bf16.msra.mxu0 %v826
  %1129 = vmatprep.subr.bf16.mxu0 0
  %1130 = vmatpush1.bf16.msra.mxu0 %v827
  %1131 = vmatprep.subr.bf16.mxu0 0
  %1132 = vmatpush1.bf16.msra.mxu0 %v828
  %1133 = vmatprep.subr.bf16.mxu0 0
  %1134 = vmatpush1.bf16.msra.mxu0 %v829
  %1135 = vmatprep.subr.bf16.mxu0 0
  %1136 = vmatpush1.bf16.msra.mxu0 %v830
  %1137 = vmatprep.mubr.bf16.mxu0 %v404
  %1138 = vmatmul.mubr.bf16.gmra.mrb[0].mxu0 %v403
  %v1139 = vpop.f32.mrb[0].mxu0
  %v1140 = vadd.f32 %v1043, %v1139
  %v1141 = vpop.f32.mrb[0].mxu0
  %v1142 = vpop.f32.mrb[0].mxu0
  %v1143 = vadd.f32 %v1046, %v1142
  %v1144 = vpop.f32.mrb[0].mxu0
  %1145 = vmatprep.mubr.bf16.mxu0 %v412
  %1146 = vmatmul.mubr.bf16.gmra.mrb[0].mxu0 %v411
  %v1147 = vpop.f32.mrb[0].mxu0
  %v1148 = vadd.f32 %v1051, %v1147
  %v1149 = vpop.f32.mrb[0].mxu0
  %v1150 = vpop.f32.mrb[0].mxu0
  %v1151 = vadd.f32 %v1054, %v1150
  %v1152 = vpop.f32.mrb[0].mxu0
  %1153 = vmatprep.mubr.bf16.mxu0 %v420
  %1154 = vmatmul.mubr.bf16.gmra.mrb[0].mxu0 %v419
  %v1155 = vpop.f32.mrb[0].mxu0
  %v1156 = vadd.f32 %v1059, %v1155
  %v1157 = vpop.f32.mrb[0].mxu0
  %v1158 = vpop.f32.mrb[0].mxu0
  %v1159 = vadd.f32 %v1062, %v1158
  %v1160 = vpop.f32.mrb[0].mxu0
  %1161 = vmatprep.mubr.bf16.mxu0 %v428
  %1162 = vmatmul.mubr.bf16.gmra.mrb[0].mxu0 %v427
  %v1163 = vpop.f32.mrb[0].mxu0
  %v1164 = vadd.f32 %v1067, %v1163
  %v1165 = vpop.f32.mrb[0].mxu0
  %v1166 = vpop.f32.mrb[0].mxu0
  %v1167 = vadd.f32 %v1070, %v1166
  %v1168 = vpop.f32.mrb[0].mxu0
  %1169 = vmatprep.mubr.bf16.mxu0 %v436
  %1170 = vmatmul.mubr.bf16.gmra.mrb[0].mxu0 %v435
  %v1171 = vpop.f32.mrb[0].mxu0
  %v1172 = vadd.f32 %v1075, %v1171
  %v1173 = vpop.f32.mrb[0].mxu0
  %v1174 = vpop.f32.mrb[0].mxu0
  %v1175 = vadd.f32 %v1078, %v1174
  %v1176 = vpop.f32.mrb[0].mxu0
  %1177 = vmatprep.mubr.bf16.mxu0 %v444
  %1178 = vmatmul.mubr.bf16.gmra.mrb[0].mxu0 %v443
  %v1179 = vpop.f32.mrb[0].mxu0
  %v1180 = vadd.f32 %v1083, %v1179
  %v1181 = vpop.f32.mrb[0].mxu0
  %v1182 = vpop.f32.mrb[0].mxu0
  %v1183 = vadd.f32 %v1086, %v1182
  %v1184 = vpop.f32.mrb[0].mxu0
  %1185 = vmatprep.mubr.bf16.mxu0 %v452
  %1186 = vmatmul.mubr.bf16.gmra.mrb[0].mxu0 %v451
  %v1187 = vpop.f32.mrb[0].mxu0
  %v1188 = vadd.f32 %v1091, %v1187
  %v1189 = vpop.f32.mrb[0].mxu0
  %v1190 = vpop.f32.mrb[0].mxu0
  %v1191 = vadd.f32 %v1094, %v1190
  %v1192 = vpop.f32.mrb[0].mxu0
  %1193 = vmatprep.mubr.bf16.mxu0 %v460
  %1194 = vmatmul.mubr.bf16.gmra.mrb[0].mxu0 %v459
  %v1195 = vpop.f32.mrb[0].mxu0
  %v1196 = vadd.f32 %v1099, %v1195
  %v1197 = vpop.f32.mrb[0].mxu0
  %v1198 = vpop.f32.mrb[0].mxu0
  %v1199 = vadd.f32 %v1102, %v1198
  %v1200 = vpop.f32.mrb[0].mxu0
  %1201 = vdwg.mxu0
  %1202 = vmatprep.subr.bf16.mxu0 0
  %1203 = vmatpush1.bf16.msra.mxu0 %v831
  %1204 = vmatprep.subr.bf16.mxu0 0
  %1205 = vmatpush1.bf16.msra.mxu0 %v832
  %1206 = vmatprep.subr.bf16.mxu0 0
  %1207 = vmatpush1.bf16.msra.mxu0 %v833
  %1208 = vmatprep.subr.bf16.mxu0 0
  %1209 = vmatpush1.bf16.msra.mxu0 %v834
  %1210 = vmatprep.subr.bf16.mxu0 0
  %1211 = vmatpush1.bf16.msra.mxu0 %v835
  %1212 = vmatprep.subr.bf16.mxu0 0
  %1213 = vmatpush1.bf16.msra.mxu0 %v836
  %1214 = vmatprep.subr.bf16.mxu0 0
  %1215 = vmatpush1.bf16.msra.mxu0 %v837
  %1216 = vmatprep.subr.bf16.mxu0 0
  %1217 = vmatpush1.bf16.msra.mxu0 %v838
  %1218 = vmatprep.subr.bf16.mxu0 0
  %1219 = vmatpush1.bf16.msra.mxu0 %v839
  %1220 = vmatprep.subr.bf16.mxu0 0
  %1221 = vmatpush1.bf16.msra.mxu0 %v840
  %1222 = vmatprep.subr.bf16.mxu0 0
  %1223 = vmatpush1.bf16.msra.mxu0 %v841
  %1224 = vmatprep.subr.bf16.mxu0 0
  %1225 = vmatpush1.bf16.msra.mxu0 %v842
  %1226 = vmatprep.subr.bf16.mxu0 0
  %1227 = vmatpush1.bf16.msra.mxu0 %v843
  %1228 = vmatprep.subr.bf16.mxu0 0
  %1229 = vmatpush1.bf16.msra.mxu0 %v844
  %1230 = vmatprep.subr.bf16.mxu0 0
  %1231 = vmatpush1.bf16.msra.mxu0 %v845
  %1232 = vmatprep.subr.bf16.mxu0 0
  %1233 = vmatpush1.bf16.msra.mxu0 %v846
  %1234 = vmatprep.mubr.bf16.mxu0 %v406
  %1235 = vmatmul.mubr.bf16.gmra.mrb[0].mxu0 %v405
  %v1236 = vpop.f32.mrb[0].mxu0
  %v1237 = vadd.f32 %v1140, %v1236
  %v1238 = vpop.f32.mrb[0].mxu0
  %v1239 = vpop.f32.mrb[0].mxu0
  %v1240 = vadd.f32 %v1143, %v1239
  %v1241 = vpop.f32.mrb[0].mxu0
  %1242 = vmatprep.mubr.bf16.mxu0 %v414
  %1243 = vmatmul.mubr.bf16.gmra.mrb[0].mxu0 %v413
  %v1244 = vpop.f32.mrb[0].mxu0
  %v1245 = vadd.f32 %v1148, %v1244
  %v1246 = vpop.f32.mrb[0].mxu0
  %v1247 = vpop.f32.mrb[0].mxu0
  %v1248 = vadd.f32 %v1151, %v1247
  %v1249 = vpop.f32.mrb[0].mxu0
  %1250 = vmatprep.mubr.bf16.mxu0 %v422
  %1251 = vmatmul.mubr.bf16.gmra.mrb[0].mxu0 %v421
  %v1252 = vpop.f32.mrb[0].mxu0
  %v1253 = vadd.f32 %v1156, %v1252
  %v1254 = vpop.f32.mrb[0].mxu0
  %v1255 = vpop.f32.mrb[0].mxu0
  %v1256 = vadd.f32 %v1159, %v1255
  %v1257 = vpop.f32.mrb[0].mxu0
  %1258 = vmatprep.mubr.bf16.mxu0 %v430
  %1259 = vmatmul.mubr.bf16.gmra.mrb[0].mxu0 %v429
  %v1260 = vpop.f32.mrb[0].mxu0
  %v1261 = vadd.f32 %v1164, %v1260
  %v1262 = vpop.f32.mrb[0].mxu0
  %v1263 = vpop.f32.mrb[0].mxu0
  %v1264 = vadd.f32 %v1167, %v1263
  %v1265 = vpop.f32.mrb[0].mxu0
  %1266 = vmatprep.mubr.bf16.mxu0 %v438
  %1267 = vmatmul.mubr.bf16.gmra.mrb[0].mxu0 %v437
  %v1268 = vpop.f32.mrb[0].mxu0
  %v1269 = vadd.f32 %v1172, %v1268
  %v1270 = vpop.f32.mrb[0].mxu0
  %v1271 = vpop.f32.mrb[0].mxu0
  %v1272 = vadd.f32 %v1175, %v1271
  %v1273 = vpop.f32.mrb[0].mxu0
  %1274 = vmatprep.mubr.bf16.mxu0 %v446
  %1275 = vmatmul.mubr.bf16.gmra.mrb[0].mxu0 %v445
  %v1276 = vpop.f32.mrb[0].mxu0
  %v1277 = vadd.f32 %v1180, %v1276
  %v1278 = vpop.f32.mrb[0].mxu0
  %v1279 = vpop.f32.mrb[0].mxu0
  %v1280 = vadd.f32 %v1183, %v1279
  %v1281 = vpop.f32.mrb[0].mxu0
  %1282 = vmatprep.mubr.bf16.mxu0 %v454
  %1283 = vmatmul.mubr.bf16.gmra.mrb[0].mxu0 %v453
  %v1284 = vpop.f32.mrb[0].mxu0
  %v1285 = vadd.f32 %v1188, %v1284
  %v1286 = vpop.f32.mrb[0].mxu0
  %v1287 = vpop.f32.mrb[0].mxu0
  %v1288 = vadd.f32 %v1191, %v1287
  %v1289 = vpop.f32.mrb[0].mxu0
  %1290 = vmatprep.mubr.bf16.mxu0 %v462
  %1291 = vmatmul.mubr.bf16.gmra.mrb[0].mxu0 %v461
  %v1292 = vpop.f32.mrb[0].mxu0
  %v1293 = vadd.f32 %v1196, %v1292
  %v1294 = vpop.f32.mrb[0].mxu0
  %v1295 = vpop.f32.mrb[0].mxu0
  %v1296 = vadd.f32 %v1199, %v1295
  %v1297 = vpop.f32.mrb[0].mxu0
  %1298 = vdwg.mxu0
  %1299 = vst [vmem:[#allocation2] sm:$0xff] %v1237
  %1300 = vst [vmem:[#allocation2 + $0x8] sm:$0xff] %v1240
  %1301 = vst [vmem:[#allocation2 + $0x10] sm:$0xff] %v1245
  %1302 = vst [vmem:[#allocation2 + $0x18] sm:$0xff] %v1248
  %1303 = vst [vmem:[#allocation2 + $0x20] sm:$0xff] %v1253
  %1304 = vst [vmem:[#allocation2 + $0x28] sm:$0xff] %v1256
  %1305 = vst [vmem:[#allocation2 + $0x30] sm:$0xff] %v1261
  %1306 = vst [vmem:[#allocation2 + $0x38] sm:$0xff] %v1264
  %1307 = vst [vmem:[#allocation2 + $0x40] sm:$0xff] %v1269
  %1308 = vst [vmem:[#allocation2 + $0x48] sm:$0xff] %v1272
  %1309 = vst [vmem:[#allocation2 + $0x50] sm:$0xff] %v1277
  %1310 = vst [vmem:[#allocation2 + $0x58] sm:$0xff] %v1280
  %1311 = vst [vmem:[#allocation2 + $0x60] sm:$0xff] %v1285
  %1312 = vst [vmem:[#allocation2 + $0x68] sm:$0xff] %v1288
  %1313 = vst [vmem:[#allocation2 + $0x70] sm:$0xff] %v1293
  %1314 = vst [vmem:[#allocation2 + $0x78] sm:$0xff] %v1296
  %v1315 = vadd.f32 %v1237, %v1240
  %v1316 = vadd.f32 %v1315, %v1245
  %v1317 = vadd.f32 %v1316, %v1248
  %v1318 = vadd.f32 %v1317, %v1253
  %v1319 = vadd.f32 %v1318, %v1256
  %v1320 = vadd.f32 %v1319, %v1261
  %v1321 = vadd.f32 %v1320, %v1264
  %v1322 = vadd.f32 %v1321, %v1269
  %v1323 = vadd.f32 %v1322, %v1272
  %v1324 = vadd.f32 %v1323, %v1277
  %v1325 = vadd.f32 %v1324, %v1280
  %v1326 = vadd.f32 %v1325, %v1285
  %v1327 = vadd.f32 %v1326, %v1288
  %v1328 = vadd.f32 %v1327, %v1293
  %v1329 = vadd.f32 %v1328, %v1296
  %v1330 = vrot.slane %v1329, 4
  %v1331 = vadd.f32 %v1329, %v1330
  %v1332 = vrot.slane %v1331, 2
  %v1333 = vadd.f32 %v1331, %v1332
  %v1334 = vrot.slane %v1333, 1
  %v1335 = vadd.f32 %v1333, %v1334
  %v1336 = vadd.f32 %v1335, 0.0
  %v1337 = vmul.f32 %v1237, %v1237
  %v1338 = vmul.f32 %v1240, %v1240
  %v1339 = vmul.f32 %v1245, %v1245
  %v1340 = vmul.f32 %v1248, %v1248
  %v1341 = vmul.f32 %v1253, %v1253
  %v1342 = vmul.f32 %v1256, %v1256
  %v1343 = vmul.f32 %v1261, %v1261
  %v1344 = vmul.f32 %v1264, %v1264
  %v1345 = vmul.f32 %v1269, %v1269
  %v1346 = vmul.f32 %v1272, %v1272
  %v1347 = vmul.f32 %v1277, %v1277
  %v1348 = vmul.f32 %v1280, %v1280
  %v1349 = vmul.f32 %v1285, %v1285
  %v1350 = vmul.f32 %v1288, %v1288
  %v1351 = vmul.f32 %v1293, %v1293
  %v1352 = vmul.f32 %v1296, %v1296
  %v1353 = vadd.f32 %v1337, %v1338
  %v1354 = vadd.f32 %v1353, %v1339
  %v1355 = vadd.f32 %v1354, %v1340
  %v1356 = vadd.f32 %v1355, %v1341
  %v1357 = vadd.f32 %v1356, %v1342
  %v1358 = vadd.f32 %v1357, %v1343
  %v1359 = vadd.f32 %v1358, %v1344
  %v1360 = vadd.f32 %v1359, %v1345
  %v1361 = vadd.f32 %v1360, %v1346
  %v1362 = vadd.f32 %v1361, %v1347
  %v1363 = vadd.f32 %v1362, %v1348
  %v1364 = vadd.f32 %v1363, %v1349
  %v1365 = vadd.f32 %v1364, %v1350
  %v1366 = vadd.f32 %v1365, %v1351
  %v1367 = vadd.f32 %v1366, %v1352
  %v1368 = vrot.slane %v1367, 4
  %v1369 = vadd.f32 %v1367, %v1368
  %v1370 = vrot.slane %v1369, 2
  %v1371 = vadd.f32 %v1369, %v1370
  %v1372 = vrot.slane %v1371, 1
  %v1373 = vadd.f32 %v1371, %v1372
  %v1374 = vadd.f32 %v1373, 0.0
  %v1375 = vmul.f32 %v1336, 0.0078125
  %v1376 = vmul.f32 %v1374, 0.0078125
  %v1377 = vmul.f32 %v1375, %v1375
  %v1378 = vsub.f32 %v1376, %v1377
  %v1379 = vmax.f32 %v1378, 0.0
  %v1380 = vadd.f32 %v1379, 1e-05
  %v1381 = vrsqrt.pop %v1380
  %v1382 = vsub.f32 0.0, %v1375
  %v1383 = vmul.f32 %v1382, %v1381
  %v1384 = vld [vmem:[#allocation2] sm:$0xff]
  %v1385 = vld [vmem:[#allocation2 + $0x8] sm:$0xff]
  %v1386 = vld [vmem:[#allocation2 + $0x10] sm:$0xff]
  %v1387 = vld [vmem:[#allocation2 + $0x18] sm:$0xff]
  %v1388 = vld [vmem:[#allocation2 + $0x20] sm:$0xff]
  %v1389 = vld [vmem:[#allocation2 + $0x28] sm:$0xff]
  %v1390 = vld [vmem:[#allocation2 + $0x30] sm:$0xff]
  %v1391 = vld [vmem:[#allocation2 + $0x38] sm:$0xff]
  %v1392 = vld [vmem:[#allocation2 + $0x40] sm:$0xff]
  %v1393 = vld [vmem:[#allocation2 + $0x48] sm:$0xff]
  %v1394 = vld [vmem:[#allocation2 + $0x50] sm:$0xff]
  %v1395 = vld [vmem:[#allocation2 + $0x58] sm:$0xff]
  %v1396 = vld [vmem:[#allocation2 + $0x60] sm:$0xff]
  %v1397 = vld [vmem:[#allocation2 + $0x68] sm:$0xff]
  %v1398 = vld [vmem:[#allocation2 + $0x70] sm:$0xff]
  %v1399 = vld [vmem:[#allocation2 + $0x78] sm:$0xff]
  %v1400 = vmul.f32 %v1384, %v1381
  %v1401 = vmul.f32 %v1385, %v1381
  %v1402 = vmul.f32 %v1386, %v1381
  %v1403 = vmul.f32 %v1387, %v1381
  %v1404 = vmul.f32 %v1388, %v1381
  %v1405 = vmul.f32 %v1389, %v1381
  %v1406 = vmul.f32 %v1390, %v1381
  %v1407 = vmul.f32 %v1391, %v1381
  %v1408 = vmul.f32 %v1392, %v1381
  %v1409 = vmul.f32 %v1393, %v1381
  %v1410 = vmul.f32 %v1394, %v1381
  %v1411 = vmul.f32 %v1395, %v1381
  %v1412 = vmul.f32 %v1396, %v1381
  %v1413 = vmul.f32 %v1397, %v1381
  %v1414 = vmul.f32 %v1398, %v1381
  %v1415 = vmul.f32 %v1399, %v1381
  %v1416 = vadd.f32 %v1400, %v1383
  %v1417 = vadd.f32 %v1401, %v1383
  %v1418 = vadd.f32 %v1402, %v1383
  %v1419 = vadd.f32 %v1403, %v1383
  %v1420 = vadd.f32 %v1404, %v1383
  %v1421 = vadd.f32 %v1405, %v1383
  %v1422 = vadd.f32 %v1406, %v1383
  %v1423 = vadd.f32 %v1407, %v1383
  %v1424 = vadd.f32 %v1408, %v1383
  %v1425 = vadd.f32 %v1409, %v1383
  %v1426 = vadd.f32 %v1410, %v1383
  %v1427 = vadd.f32 %v1411, %v1383
  %v1428 = vadd.f32 %v1412, %v1383
  %v1429 = vadd.f32 %v1413, %v1383
  %v1430 = vadd.f32 %v1414, %v1383
  %v1431 = vadd.f32 %v1415, %v1383
  %v1432 = vmax.f32 %v1416, 0.0
  %v1433 = vmax.f32 %v1417, 0.0
  %v1434 = vmax.f32 %v1418, 0.0
  %v1435 = vmax.f32 %v1419, 0.0
  %v1436 = vmax.f32 %v1420, 0.0
  %v1437 = vmax.f32 %v1421, 0.0
  %v1438 = vmax.f32 %v1422, 0.0
  %v1439 = vmax.f32 %v1423, 0.0
  %v1440 = vmax.f32 %v1424, 0.0
  %v1441 = vmax.f32 %v1425, 0.0
  %v1442 = vmax.f32 %v1426, 0.0
  %v1443 = vmax.f32 %v1427, 0.0
  %v1444 = vmax.f32 %v1428, 0.0
  %v1445 = vmax.f32 %v1429, 0.0
  %v1446 = vmax.f32 %v1430, 0.0
  %v1447 = vmax.f32 %v1431, 0.0
  %v1448 = vpack.c.bf16 %v1433, %v1432
  %v1449 = vpack.c.bf16 %v1435, %v1434
  %v1450 = vpack.c.bf16 %v1437, %v1436
  %v1451 = vpack.c.bf16 %v1439, %v1438
  %v1452 = vpack.c.bf16 %v1441, %v1440
  %v1453 = vpack.c.bf16 %v1443, %v1442
  %v1454 = vpack.c.bf16 %v1445, %v1444
  %v1455 = vpack.c.bf16 %v1447, %v1446
  %v1464 = vunpack.c.l.b16 %v1448
  %v1465 = vunpack.c.h.b16 %v1448
  %v1466 = vunpack.c.l.b16 %v1449
  %v1467 = vunpack.c.h.b16 %v1449
  %v1468 = vunpack.c.l.b16 %v1450
  %v1469 = vunpack.c.h.b16 %v1450
  %v1470 = vunpack.c.l.b16 %v1451
  %v1471 = vunpack.c.h.b16 %v1451
  %v1472 = vunpack.c.l.b16 %v1452
  %v1473 = vunpack.c.h.b16 %v1452
  %v1474 = vunpack.c.l.b16 %v1453
  %v1475 = vunpack.c.h.b16 %v1453
  %v1476 = vunpack.c.l.b16 %v1454
  %v1477 = vunpack.c.h.b16 %v1454
  %v1478 = vunpack.c.l.b16 %v1455
  %v1479 = vunpack.c.h.b16 %v1455
  %v1480 = vpack.c.b16 %v1464, %v1464
  %v1481 = vpack.c.b16 %v1465, %v1465
  %v1482 = vpack.c.b16 %v1466, %v1466
  %v1483 = vpack.c.b16 %v1467, %v1467
  %v1484 = vpack.c.b16 %v1468, %v1468
  %v1485 = vpack.c.b16 %v1469, %v1469
  %v1486 = vpack.c.b16 %v1470, %v1470
  %v1487 = vpack.c.b16 %v1471, %v1471
  %v1488 = vpack.c.b16 %v1472, %v1472
  %v1489 = vpack.c.b16 %v1473, %v1473
  %v1490 = vpack.c.b16 %v1474, %v1474
  %v1491 = vpack.c.b16 %v1475, %v1475
  %v1492 = vpack.c.b16 %v1476, %v1476
  %v1493 = vpack.c.b16 %v1477, %v1477
  %v1494 = vpack.c.b16 %v1478, %v1478
  %v1495 = vpack.c.b16 %v1479, %v1479
  %1512 = vst [vmem:[%s2] sm:$0xf] %v1480
  %1513 = vst [vmem:[%s2 + $0x4] sm:$0xf] %v1481
  %1514 = vst [vmem:[%s2 + $0x8] sm:$0xf] %v1482
  %1515 = vst [vmem:[%s2 + $0xc] sm:$0xf] %v1483
  %1516 = vst [vmem:[%s2 + $0x10] sm:$0xf] %v1484
  %1517 = vst [vmem:[%s2 + $0x14] sm:$0xf] %v1485
  %1518 = vst [vmem:[%s2 + $0x18] sm:$0xf] %v1486
  %1519 = vst [vmem:[%s2 + $0x1c] sm:$0xf] %v1487
  %1520 = vst [vmem:[%s2 + $0x20] sm:$0xf] %v1488
  %1521 = vst [vmem:[%s2 + $0x24] sm:$0xf] %v1489
  %1522 = vst [vmem:[%s2 + $0x28] sm:$0xf] %v1490
  %1523 = vst [vmem:[%s2 + $0x2c] sm:$0xf] %v1491
  %1524 = vst [vmem:[%s2 + $0x30] sm:$0xf] %v1492
  %1525 = vst [vmem:[%s2 + $0x34] sm:$0xf] %v1493
  %1526 = vst [vmem:[%s2 + $0x38] sm:$0xf] %v1494
  %1527 = vst [vmem:[%s2 + $0x3c] sm:$0xf] %v1495
  // Predicated region
  $region10: #{generator_forward.6} parent=0 // pred_check
    _
  $region11: #{generator_forward.6} parent=0 // pred_check_branch
    %1529 = sbr.rel (0) target = $region13
  $region12: #{generator_forward.6} parent=0 // pred_region
    _
  $region13: #{generator_forward.6} parent=0 // pred_fallthru
    _
  // Predicated region
  $region14: #{generator_forward.6} parent=0 // pred_check
    _
  $region15: #{generator_forward.6} parent=0 // pred_check_branch
    %1531 = sbr.rel (0) target = $region17
  $region16: #{generator_forward.6} parent=0 // pred_region
    _
  $region17: #{generator_forward.6} parent=0 // pred_fallthru
    _

// kernel: generator_forward.7
$region0: #{generator_forward.7}
  #allocation0 [shape = 'u32[]', space=smem, size = 0x4, offset = 0x4, fixed_abs, tag = 'smem constant byte address 0x4 - core index']
  #allocation1 [shape = 'u32[144,128]{1,0:T(1,128)}', space=vmem, size = 0x12000, scoped, tag = 'internal scratch']
  #allocation2 [shape = 'f32[512,128]{1,0:T(8,128)}', space=vmem, size = 0x40000, scoped, tag = 'scratch operand']
  %s0 = inlined_call_operand.vmem [shape: bf16[512,512], index: 0, kind: input, shape index: {}]
  %s1 = inlined_call_operand.vmem [shape: bf16[512,128], index: 1, kind: input, shape index: {}]
  %s2 = inlined_call_operand.vmem [shape: bf16[512,128], index: 2, kind: output, shape index: {}]
  %s3 = sld [smem:[#allocation0]]
  $region32: #{generator_forward.7} parent=0
    _
  %s5 = ssub.s32 1, %s3
  %s6 = scalar_select 0, %s5, %s3
  // Predicated region
  $region2: #{generator_forward.7} parent=0 // pred_check
    _
  $region3: #{generator_forward.7} parent=0 // pred_check_branch
    %8 = sbr.rel (0) target = $region5
  $region4: #{generator_forward.7} parent=0 // pred_region
    _
  $region5: #{generator_forward.7} parent=0 // pred_fallthru
    _
  // Predicated region
  $region6: #{generator_forward.7} parent=0 // pred_check
    _
  $region7: #{generator_forward.7} parent=0 // pred_check_branch
    %10 = sbr.rel (0) target = $region9
  $region8: #{generator_forward.7} parent=0 // pred_region
    _
  $region9: #{generator_forward.7} parent=0 // pred_fallthru
    _
  loop: start=0, step=1, limit=2
  $region10: #{generator_forward.7} parent=0 // loop_pre_header
    _
  $region11: #{generator_forward.7} parent=0 // loop_header
    %s13 = sphi 0, %s17
    %p14 = scmp.ge.s32.totalorder %s13, 2
    %v18 = vphi 0.0, %v1058
    %v19 = vphi 0.0, %v1128
  $region12: #{generator_forward.7} parent=0 // loop_header_branch
    %16 = sbr.rel (%p14) target = $region16
  $region13: #{generator_forward.7} parent=0 // loop_body
    %s20 = smul.u32 %s13, 256
    %s21 = sshra.s32 %s20, 3
    %s22 = sand.u32 %s20, 7
    %s23 = smul.u32 %s21, 4
    %s24 = smul.addr %s23, 4
    %s25 = scalar_lea.vmem %s0, %s24
    %v26 = vld [vmem:[%s25] sm:$0xff]
    %v27 = vld [vmem:[%s25 + $0x8] sm:$0xff]
    %v28 = vld [vmem:[%s25 + $0x10] sm:$0xff]
    %v29 = vld [vmem:[%s25 + $0x18] sm:$0xff]
    %v30 = vld [vmem:[%s25 + $0x20] sm:$0xff]
    %v31 = vld [vmem:[%s25 + $0x28] sm:$0xff]
    %v32 = vld [vmem:[%s25 + $0x30] sm:$0xff]
    %v33 = vld [vmem:[%s25 + $0x38] sm:$0xff]
    %v34 = vld [vmem:[%s25 + $0x40] sm:$0xff]
    %v35 = vld [vmem:[%s25 + $0x48] sm:$0xff]
    %v36 = vld [vmem:[%s25 + $0x50] sm:$0xff]
    %v37 = vld [vmem:[%s25 + $0x58] sm:$0xff]
    %v38 = vld [vmem:[%s25 + $0x60] sm:$0xff]
    %v39 = vld [vmem:[%s25 + $0x68] sm:$0xff]
    %v40 = vld [vmem:[%s25 + $0x70] sm:$0xff]
    %v41 = vld [vmem:[%s25 + $0x78] sm:$0xff]
    %v42 = vld [vmem:[%s25 + $0x80] sm:$0xff]
    %v43 = vld [vmem:[%s25 + $0x88] sm:$0xff]
    %v44 = vld [vmem:[%s25 + $0x90] sm:$0xff]
    %v45 = vld [vmem:[%s25 + $0x98] sm:$0xff]
    %v46 = vld [vmem:[%s25 + $0xa0] sm:$0xff]
    %v47 = vld [vmem:[%s25 + $0xa8] sm:$0xff]
    %v48 = vld [vmem:[%s25 + $0xb0] sm:$0xff]
    %v49 = vld [vmem:[%s25 + $0xb8] sm:$0xff]
    %v50 = vld [vmem:[%s25 + $0xc0] sm:$0xff]
    %v51 = vld [vmem:[%s25 + $0xc8] sm:$0xff]
    %v52 = vld [vmem:[%s25 + $0xd0] sm:$0xff]
    %v53 = vld [vmem:[%s25 + $0xd8] sm:$0xff]
    %v54 = vld [vmem:[%s25 + $0xe0] sm:$0xff]
    %v55 = vld [vmem:[%s25 + $0xe8] sm:$0xff]
    %v56 = vld [vmem:[%s25 + $0xf0] sm:$0xff]
    %v57 = vld [vmem:[%s25 + $0xf8] sm:$0xff]
    %v58 = vld [vmem:[%s25 + $0x100] sm:$0xff]
    %v59 = vld [vmem:[%s25 + $0x108] sm:$0xff]
    %v60 = vld [vmem:[%s25 + $0x110] sm:$0xff]
    %v61 = vld [vmem:[%s25 + $0x118] sm:$0xff]
    %v62 = vld [vmem:[%s25 + $0x120] sm:$0xff]
    %v63 = vld [vmem:[%s25 + $0x128] sm:$0xff]
    %v64 = vld [vmem:[%s25 + $0x130] sm:$0xff]
    %v65 = vld [vmem:[%s25 + $0x138] sm:$0xff]
    %v66 = vld [vmem:[%s25 + $0x140] sm:$0xff]
    %v67 = vld [vmem:[%s25 + $0x148] sm:$0xff]
    %v68 = vld [vmem:[%s25 + $0x150] sm:$0xff]
    %v69 = vld [vmem:[%s25 + $0x158] sm:$0xff]
    %v70 = vld [vmem:[%s25 + $0x160] sm:$0xff]
    %v71 = vld [vmem:[%s25 + $0x168] sm:$0xff]
    %v72 = vld [vmem:[%s25 + $0x170] sm:$0xff]
    %v73 = vld [vmem:[%s25 + $0x178] sm:$0xff]
    %v74 = vld [vmem:[%s25 + $0x180] sm:$0xff]
    %v75 = vld [vmem:[%s25 + $0x188] sm:$0xff]
    %v76 = vld [vmem:[%s25 + $0x190] sm:$0xff]
    %v77 = vld [vmem:[%s25 + $0x198] sm:$0xff]
    %v78 = vld [vmem:[%s25 + $0x1a0] sm:$0xff]
    %v79 = vld [vmem:[%s25 + $0x1a8] sm:$0xff]
    %v80 = vld [vmem:[%s25 + $0x1b0] sm:$0xff]
    %v81 = vld [vmem:[%s25 + $0x1b8] sm:$0xff]
    %v82 = vld [vmem:[%s25 + $0x1c0] sm:$0xff]
    %v83 = vld [vmem:[%s25 + $0x1c8] sm:$0xff]
    %v84 = vld [vmem:[%s25 + $0x1d0] sm:$0xff]
    %v85 = vld [vmem:[%s25 + $0x1d8] sm:$0xff]
    %v86 = vld [vmem:[%s25 + $0x1e0] sm:$0xff]
    %v87 = vld [vmem:[%s25 + $0x1e8] sm:$0xff]
    %v88 = vld [vmem:[%s25 + $0x1f0] sm:$0xff]
    %v89 = vld [vmem:[%s25 + $0x1f8] sm:$0xff]
    %v90 = vld [vmem:[%s1] sm:$0xf]
    %v91 = vld [vmem:[%s1 + $0x4] sm:$0xf]
    %v92 = vld [vmem:[%s1 + $0x8] sm:$0xf]
    %v93 = vld [vmem:[%s1 + $0xc] sm:$0xf]
    %v94 = vld [vmem:[%s1 + $0x10] sm:$0xf]
    %v95 = vld [vmem:[%s1 + $0x14] sm:$0xf]
    %v96 = vld [vmem:[%s1 + $0x18] sm:$0xf]
    %v97 = vld [vmem:[%s1 + $0x1c] sm:$0xf]
    %v98 = vld [vmem:[%s1 + $0x20] sm:$0xf]
    %v99 = vld [vmem:[%s1 + $0x24] sm:$0xf]
    %v100 = vld [vmem:[%s1 + $0x28] sm:$0xf]
    %v101 = vld [vmem:[%s1 + $0x2c] sm:$0xf]
    %v102 = vld [vmem:[%s1 + $0x30] sm:$0xf]
    %v103 = vld [vmem:[%s1 + $0x34] sm:$0xf]
    %v104 = vld [vmem:[%s1 + $0x38] sm:$0xf]
    %v105 = vld [vmem:[%s1 + $0x3c] sm:$0xf]
    %v106 = vld [vmem:[%s1 + $0x40] sm:$0xf]
    %v107 = vld [vmem:[%s1 + $0x44] sm:$0xf]
    %v108 = vld [vmem:[%s1 + $0x48] sm:$0xf]
    %v109 = vld [vmem:[%s1 + $0x4c] sm:$0xf]
    %v110 = vld [vmem:[%s1 + $0x50] sm:$0xf]
    %v111 = vld [vmem:[%s1 + $0x54] sm:$0xf]
    %v112 = vld [vmem:[%s1 + $0x58] sm:$0xf]
    %v113 = vld [vmem:[%s1 + $0x5c] sm:$0xf]
    %v114 = vld [vmem:[%s1 + $0x60] sm:$0xf]
    %v115 = vld [vmem:[%s1 + $0x64] sm:$0xf]
    %v116 = vld [vmem:[%s1 + $0x68] sm:$0xf]
    %v117 = vld [vmem:[%s1 + $0x6c] sm:$0xf]
    %v118 = vld [vmem:[%s1 + $0x70] sm:$0xf]
    %v119 = vld [vmem:[%s1 + $0x74] sm:$0xf]
    %v120 = vld [vmem:[%s1 + $0x78] sm:$0xf]
    %v121 = vld [vmem:[%s1 + $0x7c] sm:$0xf]
    %v122 = vld [vmem:[%s1 + $0x80] sm:$0xf]
    %v123 = vld [vmem:[%s1 + $0x84] sm:$0xf]
    %v124 = vld [vmem:[%s1 + $0x88] sm:$0xf]
    %v125 = vld [vmem:[%s1 + $0x8c] sm:$0xf]
    %v126 = vld [vmem:[%s1 + $0x90] sm:$0xf]
    %v127 = vld [vmem:[%s1 + $0x94] sm:$0xf]
    %v128 = vld [vmem:[%s1 + $0x98] sm:$0xf]
    %v129 = vld [vmem:[%s1 + $0x9c] sm:$0xf]
    %v130 = vld [vmem:[%s1 + $0xa0] sm:$0xf]
    %v131 = vld [vmem:[%s1 + $0xa4] sm:$0xf]
    %v132 = vld [vmem:[%s1 + $0xa8] sm:$0xf]
    %v133 = vld [vmem:[%s1 + $0xac] sm:$0xf]
    %v134 = vld [vmem:[%s1 + $0xb0] sm:$0xf]
    %v135 = vld [vmem:[%s1 + $0xb4] sm:$0xf]
    %v136 = vld [vmem:[%s1 + $0xb8] sm:$0xf]
    %v137 = vld [vmem:[%s1 + $0xbc] sm:$0xf]
    %v138 = vld [vmem:[%s1 + $0xc0] sm:$0xf]
    %v139 = vld [vmem:[%s1 + $0xc4] sm:$0xf]
    %v140 = vld [vmem:[%s1 + $0xc8] sm:$0xf]
    %v141 = vld [vmem:[%s1 + $0xcc] sm:$0xf]
    %v142 = vld [vmem:[%s1 + $0xd0] sm:$0xf]
    %v143 = vld [vmem:[%s1 + $0xd4] sm:$0xf]
    %v144 = vld [vmem:[%s1 + $0xd8] sm:$0xf]
    %v145 = vld [vmem:[%s1 + $0xdc] sm:$0xf]
    %v146 = vld [vmem:[%s1 + $0xe0] sm:$0xf]
    %v147 = vld [vmem:[%s1 + $0xe4] sm:$0xf]
    %v148 = vld [vmem:[%s1 + $0xe8] sm:$0xf]
    %v149 = vld [vmem:[%s1 + $0xec] sm:$0xf]
    %v150 = vld [vmem:[%s1 + $0xf0] sm:$0xf]
    %v151 = vld [vmem:[%s1 + $0xf4] sm:$0xf]
    %v152 = vld [vmem:[%s1 + $0xf8] sm:$0xf]
    %v153 = vld [vmem:[%s1 + $0xfc] sm:$0xf]
    %v218 = vunpack.c.l.b16 %v26
    %v219 = vunpack.c.h.b16 %v26
    %v220 = vunpack.c.l.b16 %v27
    %v221 = vunpack.c.h.b16 %v27
    %v222 = vunpack.c.l.b16 %v28
    %v223 = vunpack.c.h.b16 %v28
    %v224 = vunpack.c.l.b16 %v29
    %v225 = vunpack.c.h.b16 %v29
    %v226 = vunpack.c.l.b16 %v30
    %v227 = vunpack.c.h.b16 %v30
    %v228 = vunpack.c.l.b16 %v31
    %v229 = vunpack.c.h.b16 %v31
    %v230 = vunpack.c.l.b16 %v32
    %v231 = vunpack.c.h.b16 %v32
    %v232 = vunpack.c.l.b16 %v33
    %v233 = vunpack.c.h.b16 %v33
    %v234 = vunpack.c.l.b16 %v34
    %v235 = vunpack.c.h.b16 %v34
    %v236 = vunpack.c.l.b16 %v35
    %v237 = vunpack.c.h.b16 %v35
    %v238 = vunpack.c.l.b16 %v36
    %v239 = vunpack.c.h.b16 %v36
    %v240 = vunpack.c.l.b16 %v37
    %v241 = vunpack.c.h.b16 %v37
    %v242 = vunpack.c.l.b16 %v38
    %v243 = vunpack.c.h.b16 %v38
    %v244 = vunpack.c.l.b16 %v39
    %v245 = vunpack.c.h.b16 %v39
    %v246 = vunpack.c.l.b16 %v40
    %v247 = vunpack.c.h.b16 %v40
    %v248 = vunpack.c.l.b16 %v41
    %v249 = vunpack.c.h.b16 %v41
    %v250 = vunpack.c.l.b16 %v42
    %v251 = vunpack.c.h.b16 %v42
    %v252 = vunpack.c.l.b16 %v43
    %v253 = vunpack.c.h.b16 %v43
    %v254 = vunpack.c.l.b16 %v44
    %v255 = vunpack.c.h.b16 %v44
    %v256 = vunpack.c.l.b16 %v45
    %v257 = vunpack.c.h.b16 %v45
    %v258 = vunpack.c.l.b16 %v46
    %v259 = vunpack.c.h.b16 %v46
    %v260 = vunpack.c.l.b16 %v47
    %v261 = vunpack.c.h.b16 %v47
    %v262 = vunpack.c.l.b16 %v48
    %v263 = vunpack.c.h.b16 %v48
    %v264 = vunpack.c.l.b16 %v49
    %v265 = vunpack.c.h.b16 %v49
    %v266 = vunpack.c.l.b16 %v50
    %v267 = vunpack.c.h.b16 %v50
    %v268 = vunpack.c.l.b16 %v51
    %v269 = vunpack.c.h.b16 %v51
    %v270 = vunpack.c.l.b16 %v52
    %v271 = vunpack.c.h.b16 %v52
    %v272 = vunpack.c.l.b16 %v53
    %v273 = vunpack.c.h.b16 %v53
    %v274 = vunpack.c.l.b16 %v54
    %v275 = vunpack.c.h.b16 %v54
    %v276 = vunpack.c.l.b16 %v55
    %v277 = vunpack.c.h.b16 %v55
    %v278 = vunpack.c.l.b16 %v56
    %v279 = vunpack.c.h.b16 %v56
    %v280 = vunpack.c.l.b16 %v57
    %v281 = vunpack.c.h.b16 %v57
    %v282 = vunpack.c.l.b16 %v58
    %v283 = vunpack.c.h.b16 %v58
    %v284 = vunpack.c.l.b16 %v59
    %v285 = vunpack.c.h.b16 %v59
    %v286 = vunpack.c.l.b16 %v60
    %v287 = vunpack.c.h.b16 %v60
    %v288 = vunpack.c.l.b16 %v61
    %v289 = vunpack.c.h.b16 %v61
    %v290 = vunpack.c.l.b16 %v62
    %v291 = vunpack.c.h.b16 %v62
    %v292 = vunpack.c.l.b16 %v63
    %v293 = vunpack.c.h.b16 %v63
    %v294 = vunpack.c.l.b16 %v64
    %v295 = vunpack.c.h.b16 %v64
    %v296 = vunpack.c.l.b16 %v65
    %v297 = vunpack.c.h.b16 %v65
    %v298 = vunpack.c.l.b16 %v66
    %v299 = vunpack.c.h.b16 %v66
    %v300 = vunpack.c.l.b16 %v67
    %v301 = vunpack.c.h.b16 %v67
    %v302 = vunpack.c.l.b16 %v68
    %v303 = vunpack.c.h.b16 %v68
    %v304 = vunpack.c.l.b16 %v69
    %v305 = vunpack.c.h.b16 %v69
    %v306 = vunpack.c.l.b16 %v70
    %v307 = vunpack.c.h.b16 %v70
    %v308 = vunpack.c.l.b16 %v71
    %v309 = vunpack.c.h.b16 %v71
    %v310 = vunpack.c.l.b16 %v72
    %v311 = vunpack.c.h.b16 %v72
    %v312 = vunpack.c.l.b16 %v73
    %v313 = vunpack.c.h.b16 %v73
    %v314 = vunpack.c.l.b16 %v74
    %v315 = vunpack.c.h.b16 %v74
    %v316 = vunpack.c.l.b16 %v75
    %v317 = vunpack.c.h.b16 %v75
    %v318 = vunpack.c.l.b16 %v76
    %v319 = vunpack.c.h.b16 %v76
    %v320 = vunpack.c.l.b16 %v77
    %v321 = vunpack.c.h.b16 %v77
    %v322 = vunpack.c.l.b16 %v78
    %v323 = vunpack.c.h.b16 %v78
    %v324 = vunpack.c.l.b16 %v79
    %v325 = vunpack.c.h.b16 %v79
    %v326 = vunpack.c.l.b16 %v80
    %v327 = vunpack.c.h.b16 %v80
    %v328 = vunpack.c.l.b16 %v81
    %v329 = vunpack.c.h.b16 %v81
    %v330 = vunpack.c.l.b16 %v82
    %v331 = vunpack.c.h.b16 %v82
    %v332 = vunpack.c.l.b16 %v83
    %v333 = vunpack.c.h.b16 %v83
    %v334 = vunpack.c.l.b16 %v84
    %v335 = vunpack.c.h.b16 %v84
    %v336 = vunpack.c.l.b16 %v85
    %v337 = vunpack.c.h.b16 %v85
    %v338 = vunpack.c.l.b16 %v86
    %v339 = vunpack.c.h.b16 %v86
    %v340 = vunpack.c.l.b16 %v87
    %v341 = vunpack.c.h.b16 %v87
    %v342 = vunpack.c.l.b16 %v88
    %v343 = vunpack.c.h.b16 %v88
    %v344 = vunpack.c.l.b16 %v89
    %v345 = vunpack.c.h.b16 %v89
    %v346 = vpack.c.b16 %v222, %v218
    %v347 = vpack.c.b16 %v223, %v219
    %v348 = vpack.c.b16 %v224, %v220
    %v349 = vpack.c.b16 %v225, %v221
    %v350 = vpack.c.b16 %v230, %v226
    %v351 = vpack.c.b16 %v231, %v227
    %v352 = vpack.c.b16 %v232, %v228
    %v353 = vpack.c.b16 %v233, %v229
    %v354 = vpack.c.b16 %v238, %v234
    %v355 = vpack.c.b16 %v239, %v235
    %v356 = vpack.c.b16 %v240, %v236
    %v357 = vpack.c.b16 %v241, %v237
    %v358 = vpack.c.b16 %v246, %v242
    %v359 = vpack.c.b16 %v247, %v243
    %v360 = vpack.c.b16 %v248, %v244
    %v361 = vpack.c.b16 %v249, %v245
    %v362 = vpack.c.b16 %v254, %v250
    %v363 = vpack.c.b16 %v255, %v251
    %v364 = vpack.c.b16 %v256, %v252
    %v365 = vpack.c.b16 %v257, %v253
    %v366 = vpack.c.b16 %v262, %v258
    %v367 = vpack.c.b16 %v263, %v259
    %v368 = vpack.c.b16 %v264, %v260
    %v369 = vpack.c.b16 %v265, %v261
    %v370 = vpack.c.b16 %v270, %v266
    %v371 = vpack.c.b16 %v271, %v267
    %v372 = vpack.c.b16 %v272, %v268
    %v373 = vpack.c.b16 %v273, %v269
    %v374 = vpack.c.b16 %v278, %v274
    %v375 = vpack.c.b16 %v279, %v275
    %v376 = vpack.c.b16 %v280, %v276
    %v377 = vpack.c.b16 %v281, %v277
    %v378 = vpack.c.b16 %v286, %v282
    %v379 = vpack.c.b16 %v287, %v283
    %v380 = vpack.c.b16 %v288, %v284
    %v381 = vpack.c.b16 %v289, %v285
    %v382 = vpack.c.b16 %v294, %v290
    %v383 = vpack.c.b16 %v295, %v291
    %v384 = vpack.c.b16 %v296, %v292
    %v385 = vpack.c.b16 %v297, %v293
    %v386 = vpack.c.b16 %v302, %v298
    %v387 = vpack.c.b16 %v303, %v299
    %v388 = vpack.c.b16 %v304, %v300
    %v389 = vpack.c.b16 %v305, %v301
    %v390 = vpack.c.b16 %v310, %v306
    %v391 = vpack.c.b16 %v311, %v307
    %v392 = vpack.c.b16 %v312, %v308
    %v393 = vpack.c.b16 %v313, %v309
    %v394 = vpack.c.b16 %v318, %v314
    %v395 = vpack.c.b16 %v319, %v315
    %v396 = vpack.c.b16 %v320, %v316
    %v397 = vpack.c.b16 %v321, %v317
    %v398 = vpack.c.b16 %v326, %v322
    %v399 = vpack.c.b16 %v327, %v323
    %v400 = vpack.c.b16 %v328, %v324
    %v401 = vpack.c.b16 %v329, %v325
    %v402 = vpack.c.b16 %v334, %v330
    %v403 = vpack.c.b16 %v335, %v331
    %v404 = vpack.c.b16 %v336, %v332
    %v405 = vpack.c.b16 %v337, %v333
    %v406 = vpack.c.b16 %v342, %v338
    %v407 = vpack.c.b16 %v343, %v339
    %v408 = vpack.c.b16 %v344, %v340
    %v409 = vpack.c.b16 %v345, %v341
    %v538 = vunpack.c.l.b16 %v90
    %v539 = vunpack.c.l.b16 %v91
    %v540 = vunpack.c.l.b16 %v92
    %v541 = vunpack.c.l.b16 %v93
    %v542 = vunpack.c.l.b16 %v94
    %v543 = vunpack.c.l.b16 %v95
    %v544 = vunpack.c.l.b16 %v96
    %v545 = vunpack.c.l.b16 %v97
    %v546 = vunpack.c.l.b16 %v98
    %v547 = vunpack.c.l.b16 %v99
    %v548 = vunpack.c.l.b16 %v100
    %v549 = vunpack.c.l.b16 %v101
    %v550 = vunpack.c.l.b16 %v102
    %v551 = vunpack.c.l.b16 %v103
    %v552 = vunpack.c.l.b16 %v104
    %v553 = vunpack.c.l.b16 %v105
    %v554 = vunpack.c.l.b16 %v106
    %v555 = vunpack.c.l.b16 %v107
    %v556 = vunpack.c.l.b16 %v108
    %v557 = vunpack.c.l.b16 %v109
    %v558 = vunpack.c.l.b16 %v110
    %v559 = vunpack.c.l.b16 %v111
    %v560 = vunpack.c.l.b16 %v112
    %v561 = vunpack.c.l.b16 %v113
    %v562 = vunpack.c.l.b16 %v114
    %v563 = vunpack.c.l.b16 %v115
    %v564 = vunpack.c.l.b16 %v116
    %v565 = vunpack.c.l.b16 %v117
    %v566 = vunpack.c.l.b16 %v118
    %v567 = vunpack.c.l.b16 %v119
    %v568 = vunpack.c.l.b16 %v120
    %v569 = vunpack.c.l.b16 %v121
    %v570 = vunpack.c.l.b16 %v122
    %v571 = vunpack.c.l.b16 %v123
    %v572 = vunpack.c.l.b16 %v124
    %v573 = vunpack.c.l.b16 %v125
    %v574 = vunpack.c.l.b16 %v126
    %v575 = vunpack.c.l.b16 %v127
    %v576 = vunpack.c.l.b16 %v128
    %v577 = vunpack.c.l.b16 %v129
    %v578 = vunpack.c.l.b16 %v130
    %v579 = vunpack.c.l.b16 %v131
    %v580 = vunpack.c.l.b16 %v132
    %v581 = vunpack.c.l.b16 %v133
    %v582 = vunpack.c.l.b16 %v134
    %v583 = vunpack.c.l.b16 %v135
    %v584 = vunpack.c.l.b16 %v136
    %v585 = vunpack.c.l.b16 %v137
    %v586 = vunpack.c.l.b16 %v138
    %v587 = vunpack.c.l.b16 %v139
    %v588 = vunpack.c.l.b16 %v140
    %v589 = vunpack.c.l.b16 %v141
    %v590 = vunpack.c.l.b16 %v142
    %v591 = vunpack.c.l.b16 %v143
    %v592 = vunpack.c.l.b16 %v144
    %v593 = vunpack.c.l.b16 %v145
    %v594 = vunpack.c.l.b16 %v146
    %v595 = vunpack.c.l.b16 %v147
    %v596 = vunpack.c.l.b16 %v148
    %v597 = vunpack.c.l.b16 %v149
    %v598 = vunpack.c.l.b16 %v150
    %v599 = vunpack.c.l.b16 %v151
    %v600 = vunpack.c.l.b16 %v152
    %v601 = vunpack.c.l.b16 %v153
    %v602 = vpack.c.b16 %v539, %v538
    %v603 = vpack.c.b16 %v541, %v540
    %v604 = vpack.c.b16 %v543, %v542
    %v605 = vpack.c.b16 %v545, %v544
    %v606 = vpack.c.b16 %v547, %v546
    %v607 = vpack.c.b16 %v549, %v548
    %v608 = vpack.c.b16 %v551, %v550
    %v609 = vpack.c.b16 %v553, %v552
    %v610 = vpack.c.b16 %v555, %v554
    %v611 = vpack.c.b16 %v557, %v556
    %v612 = vpack.c.b16 %v559, %v558
    %v613 = vpack.c.b16 %v561, %v560
    %v614 = vpack.c.b16 %v563, %v562
    %v615 = vpack.c.b16 %v565, %v564
    %v616 = vpack.c.b16 %v567, %v566
    %v617 = vpack.c.b16 %v569, %v568
    %v618 = vpack.c.b16 %v571, %v570
    %v619 = vpack.c.b16 %v573, %v572
    %v620 = vpack.c.b16 %v575, %v574
    %v621 = vpack.c.b16 %v577, %v576
    %v622 = vpack.c.b16 %v579, %v578
    %v623 = vpack.c.b16 %v581, %v580
    %v624 = vpack.c.b16 %v583, %v582
    %v625 = vpack.c.b16 %v585, %v584
    %v626 = vpack.c.b16 %v587, %v586
    %v627 = vpack.c.b16 %v589, %v588
    %v628 = vpack.c.b16 %v591, %v590
    %v629 = vpack.c.b16 %v593, %v592
    %v630 = vpack.c.b16 %v595, %v594
    %v631 = vpack.c.b16 %v597, %v596
    %v632 = vpack.c.b16 %v599, %v598
    %v633 = vpack.c.b16 %v601, %v600
    %666 = vmatprep.subr.bf16.mxu0 0
    %667 = vmatpush1.bf16.msra.mxu0 %v602
    %668 = vmatprep.subr.bf16.mxu0 0
    %669 = vmatpush1.bf16.msra.mxu0 %v603
    %670 = vmatprep.subr.bf16.mxu0 0
    %671 = vmatpush1.bf16.msra.mxu0 %v604
    %672 = vmatprep.subr.bf16.mxu0 0
    %673 = vmatpush1.bf16.msra.mxu0 %v605
    %674 = vmatprep.subr.bf16.mxu0 0
    %675 = vmatpush1.bf16.msra.mxu0 %v606
    %676 = vmatprep.subr.bf16.mxu0 0
    %677 = vmatpush1.bf16.msra.mxu0 %v607
    %678 = vmatprep.subr.bf16.mxu0 0
    %679 = vmatpush1.bf16.msra.mxu0 %v608
    %680 = vmatprep.subr.bf16.mxu0 0
    %681 = vmatpush1.bf16.msra.mxu0 %v609
    %682 = vmatprep.subr.bf16.mxu0 0
    %683 = vmatpush1.bf16.msra.mxu0 %v610
    %684 = vmatprep.subr.bf16.mxu0 0
    %685 = vmatpush1.bf16.msra.mxu0 %v611
    %686 = vmatprep.subr.bf16.mxu0 0
    %687 = vmatpush1.bf16.msra.mxu0 %v612
    %688 = vmatprep.subr.bf16.mxu0 0
    %689 = vmatpush1.bf16.msra.mxu0 %v613
    %690 = vmatprep.subr.bf16.mxu0 0
    %691 = vmatpush1.bf16.msra.mxu0 %v614
    %692 = vmatprep.subr.bf16.mxu0 0
    %693 = vmatpush1.bf16.msra.mxu0 %v615
    %694 = vmatprep.subr.bf16.mxu0 0
    %695 = vmatpush1.bf16.msra.mxu0 %v616
    %696 = vmatprep.subr.bf16.mxu0 0
    %697 = vmatpush1.bf16.msra.mxu0 %v617
    %698 = vmatprep.mubr.bf16.mxu0 %v347
    %699 = vmatmul.mubr.bf16.gmra.mrb[0].mxu0 %v346
    %v700 = vpop.f32.mrb[0].mxu0
    %v701 = vadd.f32 0.0, %v700
    %v702 = vpop.f32.mrb[0].mxu0
    %v703 = vpop.f32.mrb[0].mxu0
    %v704 = vadd.f32 0.0, %v703
    %v705 = vpop.f32.mrb[0].mxu0
    %706 = vmatprep.mubr.bf16.mxu0 %v351
    %707 = vmatmul.mubr.bf16.gmra.mrb[0].mxu0 %v350
    %v708 = vpop.f32.mrb[0].mxu0
    %v709 = vadd.f32 0.0, %v708
    %v710 = vpop.f32.mrb[0].mxu0
    %v711 = vpop.f32.mrb[0].mxu0
    %v712 = vadd.f32 0.0, %v711
    %v713 = vpop.f32.mrb[0].mxu0
    %714 = vmatprep.mubr.bf16.mxu0 %v355
    %715 = vmatmul.mubr.bf16.gmra.mrb[0].mxu0 %v354
    %v716 = vpop.f32.mrb[0].mxu0
    %v717 = vadd.f32 0.0, %v716
    %v718 = vpop.f32.mrb[0].mxu0
    %v719 = vpop.f32.mrb[0].mxu0
    %v720 = vadd.f32 0.0, %v719
    %v721 = vpop.f32.mrb[0].mxu0
    %722 = vmatprep.mubr.bf16.mxu0 %v359
    %723 = vmatmul.mubr.bf16.gmra.mrb[0].mxu0 %v358
    %v724 = vpop.f32.mrb[0].mxu0
    %v725 = vadd.f32 0.0, %v724
    %v726 = vpop.f32.mrb[0].mxu0
    %v727 = vpop.f32.mrb[0].mxu0
    %v728 = vadd.f32 0.0, %v727
    %v729 = vpop.f32.mrb[0].mxu0
    %730 = vmatprep.mubr.bf16.mxu0 %v363
    %731 = vmatmul.mubr.bf16.gmra.mrb[0].mxu0 %v362
    %v732 = vpop.f32.mrb[0].mxu0
    %v733 = vadd.f32 0.0, %v732
    %v734 = vpop.f32.mrb[0].mxu0
    %v735 = vpop.f32.mrb[0].mxu0
    %v736 = vadd.f32 0.0, %v735
    %v737 = vpop.f32.mrb[0].mxu0
    %738 = vmatprep.mubr.bf16.mxu0 %v367
    %739 = vmatmul.mubr.bf16.gmra.mrb[0].mxu0 %v366
    %v740 = vpop.f32.mrb[0].mxu0
    %v741 = vadd.f32 0.0, %v740
    %v742 = vpop.f32.mrb[0].mxu0
    %v743 = vpop.f32.mrb[0].mxu0
    %v744 = vadd.f32 0.0, %v743
    %v745 = vpop.f32.mrb[0].mxu0
    %746 = vmatprep.mubr.bf16.mxu0 %v371
    %747 = vmatmul.mubr.bf16.gmra.mrb[0].mxu0 %v370
    %v748 = vpop.f32.mrb[0].mxu0
    %v749 = vadd.f32 0.0, %v748
    %v750 = vpop.f32.mrb[0].mxu0
    %v751 = vpop.f32.mrb[0].mxu0
    %v752 = vadd.f32 0.0, %v751
    %v753 = vpop.f32.mrb[0].mxu0
    %754 = vmatprep.mubr.bf16.mxu0 %v375
    %755 = vmatmul.mubr.bf16.gmra.mrb[0].mxu0 %v374
    %v756 = vpop.f32.mrb[0].mxu0
    %v757 = vadd.f32 0.0, %v756
    %v758 = vpop.f32.mrb[0].mxu0
    %v759 = vpop.f32.mrb[0].mxu0
    %v760 = vadd.f32 0.0, %v759
    %v761 = vpop.f32.mrb[0].mxu0
    %762 = vmatprep.mubr.bf16.mxu0 %v379
    %763 = vmatmul.mubr.bf16.gmra.mrb[0].mxu0 %v378
    %v764 = vpop.f32.mrb[0].mxu0
    %v765 = vadd.f32 0.0, %v764
    %v766 = vpop.f32.mrb[0].mxu0
    %v767 = vpop.f32.mrb[0].mxu0
    %v768 = vadd.f32 0.0, %v767
    %v769 = vpop.f32.mrb[0].mxu0
    %770 = vmatprep.mubr.bf16.mxu0 %v383
    %771 = vmatmul.mubr.bf16.gmra.mrb[0].mxu0 %v382
    %v772 = vpop.f32.mrb[0].mxu0
    %v773 = vadd.f32 0.0, %v772
    %v774 = vpop.f32.mrb[0].mxu0
    %v775 = vpop.f32.mrb[0].mxu0
    %v776 = vadd.f32 0.0, %v775
    %v777 = vpop.f32.mrb[0].mxu0
    %778 = vmatprep.mubr.bf16.mxu0 %v387
    %779 = vmatmul.mubr.bf16.gmra.mrb[0].mxu0 %v386
    %v780 = vpop.f32.mrb[0].mxu0
    %v781 = vadd.f32 0.0, %v780
    %v782 = vpop.f32.mrb[0].mxu0
    %v783 = vpop.f32.mrb[0].mxu0
    %v784 = vadd.f32 0.0, %v783
    %v785 = vpop.f32.mrb[0].mxu0
    %786 = vmatprep.mubr.bf16.mxu0 %v391
    %787 = vmatmul.mubr.bf16.gmra.mrb[0].mxu0 %v390
    %v788 = vpop.f32.mrb[0].mxu0
    %v789 = vadd.f32 0.0, %v788
    %v790 = vpop.f32.mrb[0].mxu0
    %v791 = vpop.f32.mrb[0].mxu0
    %v792 = vadd.f32 0.0, %v791
    %v793 = vpop.f32.mrb[0].mxu0
    %794 = vmatprep.mubr.bf16.mxu0 %v395
    %795 = vmatmul.mubr.bf16.gmra.mrb[0].mxu0 %v394
    %v796 = vpop.f32.mrb[0].mxu0
    %v797 = vadd.f32 0.0, %v796
    %v798 = vpop.f32.mrb[0].mxu0
    %v799 = vpop.f32.mrb[0].mxu0
    %v800 = vadd.f32 0.0, %v799
    %v801 = vpop.f32.mrb[0].mxu0
    %802 = vmatprep.mubr.bf16.mxu0 %v399
    %803 = vmatmul.mubr.bf16.gmra.mrb[0].mxu0 %v398
    %v804 = vpop.f32.mrb[0].mxu0
    %v805 = vadd.f32 0.0, %v804
    %v806 = vpop.f32.mrb[0].mxu0
    %v807 = vpop.f32.mrb[0].mxu0
    %v808 = vadd.f32 0.0, %v807
    %v809 = vpop.f32.mrb[0].mxu0
    %810 = vmatprep.mubr.bf16.mxu0 %v403
    %811 = vmatmul.mubr.bf16.gmra.mrb[0].mxu0 %v402
    %v812 = vpop.f32.mrb[0].mxu0
    %v813 = vadd.f32 0.0, %v812
    %v814 = vpop.f32.mrb[0].mxu0
    %v815 = vpop.f32.mrb[0].mxu0
    %v816 = vadd.f32 0.0, %v815
    %v817 = vpop.f32.mrb[0].mxu0
    %818 = vmatprep.mubr.bf16.mxu0 %v407
    %819 = vmatmul.mubr.bf16.gmra.mrb[0].mxu0 %v406
    %v820 = vpop.f32.mrb[0].mxu0
    %v821 = vadd.f32 0.0, %v820
    %v822 = vpop.f32.mrb[0].mxu0
    %v823 = vpop.f32.mrb[0].mxu0
    %v824 = vadd.f32 0.0, %v823
    %v825 = vpop.f32.mrb[0].mxu0
    %826 = vdwg.mxu0
    %827 = vmatprep.subr.bf16.mxu0 0
    %828 = vmatpush1.bf16.msra.mxu0 %v618
    %829 = vmatprep.subr.bf16.mxu0 0
    %830 = vmatpush1.bf16.msra.mxu0 %v619
    %831 = vmatprep.subr.bf16.mxu0 0
    %832 = vmatpush1.bf16.msra.mxu0 %v620
    %833 = vmatprep.subr.bf16.mxu0 0
    %834 = vmatpush1.bf16.msra.mxu0 %v621
    %835 = vmatprep.subr.bf16.mxu0 0
    %836 = vmatpush1.bf16.msra.mxu0 %v622
    %837 = vmatprep.subr.bf16.mxu0 0
    %838 = vmatpush1.bf16.msra.mxu0 %v623
    %839 = vmatprep.subr.bf16.mxu0 0
    %840 = vmatpush1.bf16.msra.mxu0 %v624
    %841 = vmatprep.subr.bf16.mxu0 0
    %842 = vmatpush1.bf16.msra.mxu0 %v625
    %843 = vmatprep.subr.bf16.mxu0 0
    %844 = vmatpush1.bf16.msra.mxu0 %v626
    %845 = vmatprep.subr.bf16.mxu0 0
    %846 = vmatpush1.bf16.msra.mxu0 %v627
    %847 = vmatprep.subr.bf16.mxu0 0
    %848 = vmatpush1.bf16.msra.mxu0 %v628
    %849 = vmatprep.subr.bf16.mxu0 0
    %850 = vmatpush1.bf16.msra.mxu0 %v629
    %851 = vmatprep.subr.bf16.mxu0 0
    %852 = vmatpush1.bf16.msra.mxu0 %v630
    %853 = vmatprep.subr.bf16.mxu0 0
    %854 = vmatpush1.bf16.msra.mxu0 %v631
    %855 = vmatprep.subr.bf16.mxu0 0
    %856 = vmatpush1.bf16.msra.mxu0 %v632
    %857 = vmatprep.subr.bf16.mxu0 0
    %858 = vmatpush1.bf16.msra.mxu0 %v633
    %859 = vmatprep.mubr.bf16.mxu0 %v349
    %860 = vmatmul.mubr.bf16.gmra.mrb[0].mxu0 %v348
    %v861 = vpop.f32.mrb[0].mxu0
    %v862 = vadd.f32 %v701, %v861
    %v863 = vpop.f32.mrb[0].mxu0
    %v864 = vpop.f32.mrb[0].mxu0
    %v865 = vadd.f32 %v704, %v864
    %v866 = vpop.f32.mrb[0].mxu0
    %867 = vmatprep.mubr.bf16.mxu0 %v353
    %868 = vmatmul.mubr.bf16.gmra.mrb[0].mxu0 %v352
    %v869 = vpop.f32.mrb[0].mxu0
    %v870 = vadd.f32 %v709, %v869
    %v871 = vpop.f32.mrb[0].mxu0
    %v872 = vpop.f32.mrb[0].mxu0
    %v873 = vadd.f32 %v712, %v872
    %v874 = vpop.f32.mrb[0].mxu0
    %875 = vmatprep.mubr.bf16.mxu0 %v357
    %876 = vmatmul.mubr.bf16.gmra.mrb[0].mxu0 %v356
    %v877 = vpop.f32.mrb[0].mxu0
    %v878 = vadd.f32 %v717, %v877
    %v879 = vpop.f32.mrb[0].mxu0
    %v880 = vpop.f32.mrb[0].mxu0
    %v881 = vadd.f32 %v720, %v880
    %v882 = vpop.f32.mrb[0].mxu0
    %883 = vmatprep.mubr.bf16.mxu0 %v361
    %884 = vmatmul.mubr.bf16.gmra.mrb[0].mxu0 %v360
    %v885 = vpop.f32.mrb[0].mxu0
    %v886 = vadd.f32 %v725, %v885
    %v887 = vpop.f32.mrb[0].mxu0
    %v888 = vpop.f32.mrb[0].mxu0
    %v889 = vadd.f32 %v728, %v888
    %v890 = vpop.f32.mrb[0].mxu0
    %891 = vmatprep.mubr.bf16.mxu0 %v365
    %892 = vmatmul.mubr.bf16.gmra.mrb[0].mxu0 %v364
    %v893 = vpop.f32.mrb[0].mxu0
    %v894 = vadd.f32 %v733, %v893
    %v895 = vpop.f32.mrb[0].mxu0
    %v896 = vpop.f32.mrb[0].mxu0
    %v897 = vadd.f32 %v736, %v896
    %v898 = vpop.f32.mrb[0].mxu0
    %899 = vmatprep.mubr.bf16.mxu0 %v369
    %900 = vmatmul.mubr.bf16.gmra.mrb[0].mxu0 %v368
    %v901 = vpop.f32.mrb[0].mxu0
    %v902 = vadd.f32 %v741, %v901
    %v903 = vpop.f32.mrb[0].mxu0
    %v904 = vpop.f32.mrb[0].mxu0
    %v905 = vadd.f32 %v744, %v904
    %v906 = vpop.f32.mrb[0].mxu0
    %907 = vmatprep.mubr.bf16.mxu0 %v373
    %908 = vmatmul.mubr.bf16.gmra.mrb[0].mxu0 %v372
    %v909 = vpop.f32.mrb[0].mxu0
    %v910 = vadd.f32 %v749, %v909
    %v911 = vpop.f32.mrb[0].mxu0
    %v912 = vpop.f32.mrb[0].mxu0
    %v913 = vadd.f32 %v752, %v912
    %v914 = vpop.f32.mrb[0].mxu0
    %915 = vmatprep.mubr.bf16.mxu0 %v377
    %916 = vmatmul.mubr.bf16.gmra.mrb[0].mxu0 %v376
    %v917 = vpop.f32.mrb[0].mxu0
    %v918 = vadd.f32 %v757, %v917
    %v919 = vpop.f32.mrb[0].mxu0
    %v920 = vpop.f32.mrb[0].mxu0
    %v921 = vadd.f32 %v760, %v920
    %v922 = vpop.f32.mrb[0].mxu0
    %923 = vmatprep.mubr.bf16.mxu0 %v381
    %924 = vmatmul.mubr.bf16.gmra.mrb[0].mxu0 %v380
    %v925 = vpop.f32.mrb[0].mxu0
    %v926 = vadd.f32 %v765, %v925
    %v927 = vpop.f32.mrb[0].mxu0
    %v928 = vpop.f32.mrb[0].mxu0
    %v929 = vadd.f32 %v768, %v928
    %v930 = vpop.f32.mrb[0].mxu0
    %931 = vmatprep.mubr.bf16.mxu0 %v385
    %932 = vmatmul.mubr.bf16.gmra.mrb[0].mxu0 %v384
    %v933 = vpop.f32.mrb[0].mxu0
    %v934 = vadd.f32 %v773, %v933
    %v935 = vpop.f32.mrb[0].mxu0
    %v936 = vpop.f32.mrb[0].mxu0
    %v937 = vadd.f32 %v776, %v936
    %v938 = vpop.f32.mrb[0].mxu0
    %939 = vmatprep.mubr.bf16.mxu0 %v389
    %940 = vmatmul.mubr.bf16.gmra.mrb[0].mxu0 %v388
    %v941 = vpop.f32.mrb[0].mxu0
    %v942 = vadd.f32 %v781, %v941
    %v943 = vpop.f32.mrb[0].mxu0
    %v944 = vpop.f32.mrb[0].mxu0
    %v945 = vadd.f32 %v784, %v944
    %v946 = vpop.f32.mrb[0].mxu0
    %947 = vmatprep.mubr.bf16.mxu0 %v393
    %948 = vmatmul.mubr.bf16.gmra.mrb[0].mxu0 %v392
    %v949 = vpop.f32.mrb[0].mxu0
    %v950 = vadd.f32 %v789, %v949
    %v951 = vpop.f32.mrb[0].mxu0
    %v952 = vpop.f32.mrb[0].mxu0
    %v953 = vadd.f32 %v792, %v952
    %v954 = vpop.f32.mrb[0].mxu0
    %955 = vmatprep.mubr.bf16.mxu0 %v397
    %956 = vmatmul.mubr.bf16.gmra.mrb[0].mxu0 %v396
    %v957 = vpop.f32.mrb[0].mxu0
    %v958 = vadd.f32 %v797, %v957
    %v959 = vpop.f32.mrb[0].mxu0
    %v960 = vpop.f32.mrb[0].mxu0
    %v961 = vadd.f32 %v800, %v960
    %v962 = vpop.f32.mrb[0].mxu0
    %963 = vmatprep.mubr.bf16.mxu0 %v401
    %964 = vmatmul.mubr.bf16.gmra.mrb[0].mxu0 %v400
    %v965 = vpop.f32.mrb[0].mxu0
    %v966 = vadd.f32 %v805, %v965
    %v967 = vpop.f32.mrb[0].mxu0
    %v968 = vpop.f32.mrb[0].mxu0
    %v969 = vadd.f32 %v808, %v968
    %v970 = vpop.f32.mrb[0].mxu0
    %971 = vmatprep.mubr.bf16.mxu0 %v405
    %972 = vmatmul.mubr.bf16.gmra.mrb[0].mxu0 %v404
    %v973 = vpop.f32.mrb[0].mxu0
    %v974 = vadd.f32 %v813, %v973
    %v975 = vpop.f32.mrb[0].mxu0
    %v976 = vpop.f32.mrb[0].mxu0
    %v977 = vadd.f32 %v816, %v976
    %v978 = vpop.f32.mrb[0].mxu0
    %979 = vmatprep.mubr.bf16.mxu0 %v409
    %980 = vmatmul.mubr.bf16.gmra.mrb[0].mxu0 %v408
    %v981 = vpop.f32.mrb[0].mxu0
    %v982 = vadd.f32 %v821, %v981
    %v983 = vpop.f32.mrb[0].mxu0
    %v984 = vpop.f32.mrb[0].mxu0
    %v985 = vadd.f32 %v824, %v984
    %v986 = vpop.f32.mrb[0].mxu0
    %987 = vdwg.mxu0
    %s988 = scalar_lea.vmem [#allocation2], %s20
    %989 = vst [vmem:[%s988] sm:$0xff] %v862
    %990 = vst [vmem:[%s988 + $0x8] sm:$0xff] %v865
    %991 = vst [vmem:[%s988 + $0x10] sm:$0xff] %v870
    %992 = vst [vmem:[%s988 + $0x18] sm:$0xff] %v873
    %993 = vst [vmem:[%s988 + $0x20] sm:$0xff] %v878
    %994 = vst [vmem:[%s988 + $0x28] sm:$0xff] %v881
    %995 = vst [vmem:[%s988 + $0x30] sm:$0xff] %v886
    %996 = vst [vmem:[%s988 + $0x38] sm:$0xff] %v889
    %997 = vst [vmem:[%s988 + $0x40] sm:$0xff] %v894
    %998 = vst [vmem:[%s988 + $0x48] sm:$0xff] %v897
    %999 = vst [vmem:[%s988 + $0x50] sm:$0xff] %v902
    %1000 = vst [vmem:[%s988 + $0x58] sm:$0xff] %v905
    %1001 = vst [vmem:[%s988 + $0x60] sm:$0xff] %v910
    %1002 = vst [vmem:[%s988 + $0x68] sm:$0xff] %v913
    %1003 = vst [vmem:[%s988 + $0x70] sm:$0xff] %v918
    %1004 = vst [vmem:[%s988 + $0x78] sm:$0xff] %v921
    %1005 = vst [vmem:[%s988 + $0x80] sm:$0xff] %v926
    %1006 = vst [vmem:[%s988 + $0x88] sm:$0xff] %v929
    %1007 = vst [vmem:[%s988 + $0x90] sm:$0xff] %v934
    %1008 = vst [vmem:[%s988 + $0x98] sm:$0xff] %v937
    %1009 = vst [vmem:[%s988 + $0xa0] sm:$0xff] %v942
    %1010 = vst [vmem:[%s988 + $0xa8] sm:$0xff] %v945
    %1011 = vst [vmem:[%s988 + $0xb0] sm:$0xff] %v950
    %1012 = vst [vmem:[%s988 + $0xb8] sm:$0xff] %v953
    %1013 = vst [vmem:[%s988 + $0xc0] sm:$0xff] %v958
    %1014 = vst [vmem:[%s988 + $0xc8] sm:$0xff] %v961
    %1015 = vst [vmem:[%s988 + $0xd0] sm:$0xff] %v966
    %1016 = vst [vmem:[%s988 + $0xd8] sm:$0xff] %v969
    %1017 = vst [vmem:[%s988 + $0xe0] sm:$0xff] %v974
    %1018 = vst [vmem:[%s988 + $0xe8] sm:$0xff] %v977
    %1019 = vst [vmem:[%s988 + $0xf0] sm:$0xff] %v982
    %1020 = vst [vmem:[%s988 + $0xf8] sm:$0xff] %v985
    %v1021 = vadd.f32 %v862, %v865
    %v1022 = vadd.f32 %v1021, %v870
    %v1023 = vadd.f32 %v1022, %v873
    %v1024 = vadd.f32 %v1023, %v878
    %v1025 = vadd.f32 %v1024, %v881
    %v1026 = vadd.f32 %v1025, %v886
    %v1027 = vadd.f32 %v1026, %v889
    %v1028 = vadd.f32 %v1027, %v894
    %v1029 = vadd.f32 %v1028, %v897
    %v1030 = vadd.f32 %v1029, %v902
    %v1031 = vadd.f32 %v1030, %v905
    %v1032 = vadd.f32 %v1031, %v910
    %v1033 = vadd.f32 %v1032, %v913
    %v1034 = vadd.f32 %v1033, %v918
    %v1035 = vadd.f32 %v1034, %v921
    %v1036 = vadd.f32 %v1035, %v926
    %v1037 = vadd.f32 %v1036, %v929
    %v1038 = vadd.f32 %v1037, %v934
    %v1039 = vadd.f32 %v1038, %v937
    %v1040 = vadd.f32 %v1039, %v942
    %v1041 = vadd.f32 %v1040, %v945
    %v1042 = vadd.f32 %v1041, %v950
    %v1043 = vadd.f32 %v1042, %v953
    %v1044 = vadd.f32 %v1043, %v958
    %v1045 = vadd.f32 %v1044, %v961
    %v1046 = vadd.f32 %v1045, %v966
    %v1047 = vadd.f32 %v1046, %v969
    %v1048 = vadd.f32 %v1047, %v974
    %v1049 = vadd.f32 %v1048, %v977
    %v1050 = vadd.f32 %v1049, %v982
    %v1051 = vadd.f32 %v1050, %v985
    %v1052 = vrot.slane %v1051, 4
    %v1053 = vadd.f32 %v1051, %v1052
    %v1054 = vrot.slane %v1053, 2
    %v1055 = vadd.f32 %v1053, %v1054
    %v1056 = vrot.slane %v1055, 1
    %v1057 = vadd.f32 %v1055, %v1056
    %v1058 = vadd.f32 %v18, %v1057
    %v1059 = vmul.f32 %v862, %v862
    %v1060 = vmul.f32 %v865, %v865
    %v1061 = vmul.f32 %v870, %v870
    %v1062 = vmul.f32 %v873, %v873
    %v1063 = vmul.f32 %v878, %v878
    %v1064 = vmul.f32 %v881, %v881
    %v1065 = vmul.f32 %v886, %v886
    %v1066 = vmul.f32 %v889, %v889
    %v1067 = vmul.f32 %v894, %v894
    %v1068 = vmul.f32 %v897, %v897
    %v1069 = vmul.f32 %v902, %v902
    %v1070 = vmul.f32 %v905, %v905
    %v1071 = vmul.f32 %v910, %v910
    %v1072 = vmul.f32 %v913, %v913
    %v1073 = vmul.f32 %v918, %v918
    %v1074 = vmul.f32 %v921, %v921
    %v1075 = vmul.f32 %v926, %v926
    %v1076 = vmul.f32 %v929, %v929
    %v1077 = vmul.f32 %v934, %v934
    %v1078 = vmul.f32 %v937, %v937
    %v1079 = vmul.f32 %v942, %v942
    %v1080 = vmul.f32 %v945, %v945
    %v1081 = vmul.f32 %v950, %v950
    %v1082 = vmul.f32 %v953, %v953
    %v1083 = vmul.f32 %v958, %v958
    %v1084 = vmul.f32 %v961, %v961
    %v1085 = vmul.f32 %v966, %v966
    %v1086 = vmul.f32 %v969, %v969
    %v1087 = vmul.f32 %v974, %v974
    %v1088 = vmul.f32 %v977, %v977
    %v1089 = vmul.f32 %v982, %v982
    %v1090 = vmul.f32 %v985, %v985
    %v1091 = vadd.f32 %v1059, %v1060
    %v1092 = vadd.f32 %v1091, %v1061
    %v1093 = vadd.f32 %v1092, %v1062
    %v1094 = vadd.f32 %v1093, %v1063
    %v1095 = vadd.f32 %v1094, %v1064
    %v1096 = vadd.f32 %v1095, %v1065
    %v1097 = vadd.f32 %v1096, %v1066
    %v1098 = vadd.f32 %v1097, %v1067
    %v1099 = vadd.f32 %v1098, %v1068
    %v1100 = vadd.f32 %v1099, %v1069
    %v1101 = vadd.f32 %v1100, %v1070
    %v1102 = vadd.f32 %v1101, %v1071
    %v1103 = vadd.f32 %v1102, %v1072
    %v1104 = vadd.f32 %v1103, %v1073
    %v1105 = vadd.f32 %v1104, %v1074
    %v1106 = vadd.f32 %v1105, %v1075
    %v1107 = vadd.f32 %v1106, %v1076
    %v1108 = vadd.f32 %v1107, %v1077
    %v1109 = vadd.f32 %v1108, %v1078
    %v1110 = vadd.f32 %v1109, %v1079
    %v1111 = vadd.f32 %v1110, %v1080
    %v1112 = vadd.f32 %v1111, %v1081
    %v1113 = vadd.f32 %v1112, %v1082
    %v1114 = vadd.f32 %v1113, %v1083
    %v1115 = vadd.f32 %v1114, %v1084
    %v1116 = vadd.f32 %v1115, %v1085
    %v1117 = vadd.f32 %v1116, %v1086
    %v1118 = vadd.f32 %v1117, %v1087
    %v1119 = vadd.f32 %v1118, %v1088
    %v1120 = vadd.f32 %v1119, %v1089
    %v1121 = vadd.f32 %v1120, %v1090
    %v1122 = vrot.slane %v1121, 4
    %v1123 = vadd.f32 %v1121, %v1122
    %v1124 = vrot.slane %v1123, 2
    %v1125 = vadd.f32 %v1123, %v1124
    %v1126 = vrot.slane %v1125, 1
    %v1127 = vadd.f32 %v1125, %v1126
    %v1128 = vadd.f32 %v19, %v1127
  $region14: #{generator_forward.7} parent=0 // loop_footer
    %s17 = sadd.s32 1, %s13
  $region15: #{generator_forward.7} parent=0 // loop_footer_branch
    %12 = sbr.rel target = $region11
  $region16: #{generator_forward.7} parent=0 // loop_exit
    _
  %v1129 = vmul.f32 %v18, 0.001953125
  %v1130 = vmul.f32 %v19, 0.001953125
  %v1131 = vmul.f32 %v1129, %v1129
  %v1132 = vsub.f32 %v1130, %v1131
  %v1133 = vmax.f32 %v1132, 0.0
  %v1134 = vadd.f32 %v1133, 1e-05
  %v1135 = vrsqrt.pop %v1134
  %v1136 = vsub.f32 0.0, %v1129
  %v1137 = vmul.f32 %v1136, %v1135
  loop: start=0, step=1, limit=2
  $region17: #{generator_forward.7} parent=0 // loop_pre_header
    _
  $region18: #{generator_forward.7} parent=0 // loop_header
    %s1139 = sphi 0, %s1143
    %p1140 = scmp.ge.s32.totalorder %s1139, 2
  $region19: #{generator_forward.7} parent=0 // loop_header_branch
    %1142 = sbr.rel (%p1140) target = $region23
  $region20: #{generator_forward.7} parent=0 // loop_body
    %s1144 = smul.u32 %s1139, 256
    %s1145 = scalar_lea.vmem [#allocation2], %s1144
    %v1146 = vld [vmem:[%s1145] sm:$0xff]
    %v1147 = vld [vmem:[%s1145 + $0x8] sm:$0xff]
    %v1148 = vld [vmem:[%s1145 + $0x10] sm:$0xff]
    %v1149 = vld [vmem:[%s1145 + $0x18] sm:$0xff]
    %v1150 = vld [vmem:[%s1145 + $0x20] sm:$0xff]
    %v1151 = vld [vmem:[%s1145 + $0x28] sm:$0xff]
    %v1152 = vld [vmem:[%s1145 + $0x30] sm:$0xff]
    %v1153 = vld [vmem:[%s1145 + $0x38] sm:$0xff]
    %v1154 = vld [vmem:[%s1145 + $0x40] sm:$0xff]
    %v1155 = vld [vmem:[%s1145 + $0x48] sm:$0xff]
    %v1156 = vld [vmem:[%s1145 + $0x50] sm:$0xff]
    %v1157 = vld [vmem:[%s1145 + $0x58] sm:$0xff]
    %v1158 = vld [vmem:[%s1145 + $0x60] sm:$0xff]
    %v1159 = vld [vmem:[%s1145 + $0x68] sm:$0xff]
    %v1160 = vld [vmem:[%s1145 + $0x70] sm:$0xff]
    %v1161 = vld [vmem:[%s1145 + $0x78] sm:$0xff]
    %v1162 = vld [vmem:[%s1145 + $0x80] sm:$0xff]
    %v1163 = vld [vmem:[%s1145 + $0x88] sm:$0xff]
    %v1164 = vld [vmem:[%s1145 + $0x90] sm:$0xff]
    %v1165 = vld [vmem:[%s1145 + $0x98] sm:$0xff]
    %v1166 = vld [vmem:[%s1145 + $0xa0] sm:$0xff]
    %v1167 = vld [vmem:[%s1145 + $0xa8] sm:$0xff]
    %v1168 = vld [vmem:[%s1145 + $0xb0] sm:$0xff]
    %v1169 = vld [vmem:[%s1145 + $0xb8] sm:$0xff]
    %v1170 = vld [vmem:[%s1145 + $0xc0] sm:$0xff]
    %v1171 = vld [vmem:[%s1145 + $0xc8] sm:$0xff]
    %v1172 = vld [vmem:[%s1145 + $0xd0] sm:$0xff]
    %v1173 = vld [vmem:[%s1145 + $0xd8] sm:$0xff]
    %v1174 = vld [vmem:[%s1145 + $0xe0] sm:$0xff]
    %v1175 = vld [vmem:[%s1145 + $0xe8] sm:$0xff]
    %v1176 = vld [vmem:[%s1145 + $0xf0] sm:$0xff]
    %v1177 = vld [vmem:[%s1145 + $0xf8] sm:$0xff]
    %v1178 = vmul.f32 %v1146, %v1135
    %v1179 = vmul.f32 %v1147, %v1135
    %v1180 = vmul.f32 %v1148, %v1135
    %v1181 = vmul.f32 %v1149, %v1135
    %v1182 = vmul.f32 %v1150, %v1135
    %v1183 = vmul.f32 %v1151, %v1135
    %v1184 = vmul.f32 %v1152, %v1135
    %v1185 = vmul.f32 %v1153, %v1135
    %v1186 = vmul.f32 %v1154, %v1135
    %v1187 = vmul.f32 %v1155, %v1135
    %v1188 = vmul.f32 %v1156, %v1135
    %v1189 = vmul.f32 %v1157, %v1135
    %v1190 = vmul.f32 %v1158, %v1135
    %v1191 = vmul.f32 %v1159, %v1135
    %v1192 = vmul.f32 %v1160, %v1135
    %v1193 = vmul.f32 %v1161, %v1135
    %v1194 = vmul.f32 %v1162, %v1135
    %v1195 = vmul.f32 %v1163, %v1135
    %v1196 = vmul.f32 %v1164, %v1135
    %v1197 = vmul.f32 %v1165, %v1135
    %v1198 = vmul.f32 %v1166, %v1135
    %v1199 = vmul.f32 %v1167, %v1135
    %v1200 = vmul.f32 %v1168, %v1135
    %v1201 = vmul.f32 %v1169, %v1135
    %v1202 = vmul.f32 %v1170, %v1135
    %v1203 = vmul.f32 %v1171, %v1135
    %v1204 = vmul.f32 %v1172, %v1135
    %v1205 = vmul.f32 %v1173, %v1135
    %v1206 = vmul.f32 %v1174, %v1135
    %v1207 = vmul.f32 %v1175, %v1135
    %v1208 = vmul.f32 %v1176, %v1135
    %v1209 = vmul.f32 %v1177, %v1135
    %v1210 = vadd.f32 %v1178, %v1137
    %v1211 = vadd.f32 %v1179, %v1137
    %v1212 = vadd.f32 %v1180, %v1137
    %v1213 = vadd.f32 %v1181, %v1137
    %v1214 = vadd.f32 %v1182, %v1137
    %v1215 = vadd.f32 %v1183, %v1137
    %v1216 = vadd.f32 %v1184, %v1137
    %v1217 = vadd.f32 %v1185, %v1137
    %v1218 = vadd.f32 %v1186, %v1137
    %v1219 = vadd.f32 %v1187, %v1137
    %v1220 = vadd.f32 %v1188, %v1137
    %v1221 = vadd.f32 %v1189, %v1137
    %v1222 = vadd.f32 %v1190, %v1137
    %v1223 = vadd.f32 %v1191, %v1137
    %v1224 = vadd.f32 %v1192, %v1137
    %v1225 = vadd.f32 %v1193, %v1137
    %v1226 = vadd.f32 %v1194, %v1137
    %v1227 = vadd.f32 %v1195, %v1137
    %v1228 = vadd.f32 %v1196, %v1137
    %v1229 = vadd.f32 %v1197, %v1137
    %v1230 = vadd.f32 %v1198, %v1137
    %v1231 = vadd.f32 %v1199, %v1137
    %v1232 = vadd.f32 %v1200, %v1137
    %v1233 = vadd.f32 %v1201, %v1137
    %v1234 = vadd.f32 %v1202, %v1137
    %v1235 = vadd.f32 %v1203, %v1137
    %v1236 = vadd.f32 %v1204, %v1137
    %v1237 = vadd.f32 %v1205, %v1137
    %v1238 = vadd.f32 %v1206, %v1137
    %v1239 = vadd.f32 %v1207, %v1137
    %v1240 = vadd.f32 %v1208, %v1137
    %v1241 = vadd.f32 %v1209, %v1137
    %v1242 = vmax.f32 %v1210, 0.0
    %v1243 = vmax.f32 %v1211, 0.0
    %v1244 = vmax.f32 %v1212, 0.0
    %v1245 = vmax.f32 %v1213, 0.0
    %v1246 = vmax.f32 %v1214, 0.0
    %v1247 = vmax.f32 %v1215, 0.0
    %v1248 = vmax.f32 %v1216, 0.0
    %v1249 = vmax.f32 %v1217, 0.0
    %v1250 = vmax.f32 %v1218, 0.0
    %v1251 = vmax.f32 %v1219, 0.0
    %v1252 = vmax.f32 %v1220, 0.0
    %v1253 = vmax.f32 %v1221, 0.0
    %v1254 = vmax.f32 %v1222, 0.0
    %v1255 = vmax.f32 %v1223, 0.0
    %v1256 = vmax.f32 %v1224, 0.0
    %v1257 = vmax.f32 %v1225, 0.0
    %v1258 = vmax.f32 %v1226, 0.0
    %v1259 = vmax.f32 %v1227, 0.0
    %v1260 = vmax.f32 %v1228, 0.0
    %v1261 = vmax.f32 %v1229, 0.0
    %v1262 = vmax.f32 %v1230, 0.0
    %v1263 = vmax.f32 %v1231, 0.0
    %v1264 = vmax.f32 %v1232, 0.0
    %v1265 = vmax.f32 %v1233, 0.0
    %v1266 = vmax.f32 %v1234, 0.0
    %v1267 = vmax.f32 %v1235, 0.0
    %v1268 = vmax.f32 %v1236, 0.0
    %v1269 = vmax.f32 %v1237, 0.0
    %v1270 = vmax.f32 %v1238, 0.0
    %v1271 = vmax.f32 %v1239, 0.0
    %v1272 = vmax.f32 %v1240, 0.0
    %v1273 = vmax.f32 %v1241, 0.0
    %v1274 = vpack.c.bf16 %v1243, %v1242
    %v1275 = vpack.c.bf16 %v1245, %v1244
    %v1276 = vpack.c.bf16 %v1247, %v1246
    %v1277 = vpack.c.bf16 %v1249, %v1248
    %v1278 = vpack.c.bf16 %v1251, %v1250
    %v1279 = vpack.c.bf16 %v1253, %v1252
    %v1280 = vpack.c.bf16 %v1255, %v1254
    %v1281 = vpack.c.bf16 %v1257, %v1256
    %v1282 = vpack.c.bf16 %v1259, %v1258
    %v1283 = vpack.c.bf16 %v1261, %v1260
    %v1284 = vpack.c.bf16 %v1263, %v1262
    %v1285 = vpack.c.bf16 %v1265, %v1264
    %v1286 = vpack.c.bf16 %v1267, %v1266
    %v1287 = vpack.c.bf16 %v1269, %v1268
    %v1288 = vpack.c.bf16 %v1271, %v1270
    %v1289 = vpack.c.bf16 %v1273, %v1272
    %v1306 = vunpack.c.l.b16 %v1274
    %v1307 = vunpack.c.h.b16 %v1274
    %v1308 = vunpack.c.l.b16 %v1275
    %v1309 = vunpack.c.h.b16 %v1275
    %v1310 = vunpack.c.l.b16 %v1276
    %v1311 = vunpack.c.h.b16 %v1276
    %v1312 = vunpack.c.l.b16 %v1277
    %v1313 = vunpack.c.h.b16 %v1277
    %v1314 = vunpack.c.l.b16 %v1278
    %v1315 = vunpack.c.h.b16 %v1278
    %v1316 = vunpack.c.l.b16 %v1279
    %v1317 = vunpack.c.h.b16 %v1279
    %v1318 = vunpack.c.l.b16 %v1280
    %v1319 = vunpack.c.h.b16 %v1280
    %v1320 = vunpack.c.l.b16 %v1281
    %v1321 = vunpack.c.h.b16 %v1281
    %v1322 = vunpack.c.l.b16 %v1282
    %v1323 = vunpack.c.h.b16 %v1282
    %v1324 = vunpack.c.l.b16 %v1283
    %v1325 = vunpack.c.h.b16 %v1283
    %v1326 = vunpack.c.l.b16 %v1284
    %v1327 = vunpack.c.h.b16 %v1284
    %v1328 = vunpack.c.l.b16 %v1285
    %v1329 = vunpack.c.h.b16 %v1285
    %v1330 = vunpack.c.l.b16 %v1286
    %v1331 = vunpack.c.h.b16 %v1286
    %v1332 = vunpack.c.l.b16 %v1287
    %v1333 = vunpack.c.h.b16 %v1287
    %v1334 = vunpack.c.l.b16 %v1288
    %v1335 = vunpack.c.h.b16 %v1288
    %v1336 = vunpack.c.l.b16 %v1289
    %v1337 = vunpack.c.h.b16 %v1289
    %v1338 = vpack.c.b16 %v1306, %v1306
    %v1339 = vpack.c.b16 %v1307, %v1307
    %v1340 = vpack.c.b16 %v1308, %v1308
    %v1341 = vpack.c.b16 %v1309, %v1309
    %v1342 = vpack.c.b16 %v1310, %v1310
    %v1343 = vpack.c.b16 %v1311, %v1311
    %v1344 = vpack.c.b16 %v1312, %v1312
    %v1345 = vpack.c.b16 %v1313, %v1313
    %v1346 = vpack.c.b16 %v1314, %v1314
    %v1347 = vpack.c.b16 %v1315, %v1315
    %v1348 = vpack.c.b16 %v1316, %v1316
    %v1349 = vpack.c.b16 %v1317, %v1317
    %v1350 = vpack.c.b16 %v1318, %v1318
    %v1351 = vpack.c.b16 %v1319, %v1319
    %v1352 = vpack.c.b16 %v1320, %v1320
    %v1353 = vpack.c.b16 %v1321, %v1321
    %v1354 = vpack.c.b16 %v1322, %v1322
    %v1355 = vpack.c.b16 %v1323, %v1323
    %v1356 = vpack.c.b16 %v1324, %v1324
    %v1357 = vpack.c.b16 %v1325, %v1325
    %v1358 = vpack.c.b16 %v1326, %v1326
    %v1359 = vpack.c.b16 %v1327, %v1327
    %v1360 = vpack.c.b16 %v1328, %v1328
    %v1361 = vpack.c.b16 %v1329, %v1329
    %v1362 = vpack.c.b16 %v1330, %v1330
    %v1363 = vpack.c.b16 %v1331, %v1331
    %v1364 = vpack.c.b16 %v1332, %v1332
    %v1365 = vpack.c.b16 %v1333, %v1333
    %v1366 = vpack.c.b16 %v1334, %v1334
    %v1367 = vpack.c.b16 %v1335, %v1335
    %v1368 = vpack.c.b16 %v1336, %v1336
    %v1369 = vpack.c.b16 %v1337, %v1337
    %s1402 = sshra.s32 %s1144, 3
    %s1403 = sand.u32 %s1144, 7
    %s1404 = smul.addr %s1402, 4
    %s1405 = scalar_lea.vmem %s2, %s1404
    %1406 = vst [vmem:[%s1405] sm:$0xf] %v1338
    %1407 = vst [vmem:[%s1405 + $0x4] sm:$0xf] %v1339
    %1408 = vst [vmem:[%s1405 + $0x8] sm:$0xf] %v1340
    %1409 = vst [vmem:[%s1405 + $0xc] sm:$0xf] %v1341
    %1410 = vst [vmem:[%s1405 + $0x10] sm:$0xf] %v1342
    %1411 = vst [vmem:[%s1405 + $0x14] sm:$0xf] %v1343
    %1412 = vst [vmem:[%s1405 + $0x18] sm:$0xf] %v1344
    %1413 = vst [vmem:[%s1405 + $0x1c] sm:$0xf] %v1345
    %1414 = vst [vmem:[%s1405 + $0x20] sm:$0xf] %v1346
    %1415 = vst [vmem:[%s1405 + $0x24] sm:$0xf] %v1347
    %1416 = vst [vmem:[%s1405 + $0x28] sm:$0xf] %v1348
    %1417 = vst [vmem:[%s1405 + $0x2c] sm:$0xf] %v1349
    %1418 = vst [vmem:[%s1405 + $0x30] sm:$0xf] %v1350
    %1419 = vst [vmem:[%s1405 + $0x34] sm:$0xf] %v1351
    %1420 = vst [vmem:[%s1405 + $0x38] sm:$0xf] %v1352
    %1421 = vst [vmem:[%s1405 + $0x3c] sm:$0xf] %v1353
    %1422 = vst [vmem:[%s1405 + $0x40] sm:$0xf] %v1354
    %1423 = vst [vmem:[%s1405 + $0x44] sm:$0xf] %v1355
    %1424 = vst [vmem:[%s1405 + $0x48] sm:$0xf] %v1356
    %1425 = vst [vmem:[%s1405 + $0x4c] sm:$0xf] %v1357
    %1426 = vst [vmem:[%s1405 + $0x50] sm:$0xf] %v1358
    %1427 = vst [vmem:[%s1405 + $0x54] sm:$0xf] %v1359
    %1428 = vst [vmem:[%s1405 + $0x58] sm:$0xf] %v1360
    %1429 = vst [vmem:[%s1405 + $0x5c] sm:$0xf] %v1361
    %1430 = vst [vmem:[%s1405 + $0x60] sm:$0xf] %v1362
    %1431 = vst [vmem:[%s1405 + $0x64] sm:$0xf] %v1363
    %1432 = vst [vmem:[%s1405 + $0x68] sm:$0xf] %v1364
    %1433 = vst [vmem:[%s1405 + $0x6c] sm:$0xf] %v1365
    %1434 = vst [vmem:[%s1405 + $0x70] sm:$0xf] %v1366
    %1435 = vst [vmem:[%s1405 + $0x74] sm:$0xf] %v1367
    %1436 = vst [vmem:[%s1405 + $0x78] sm:$0xf] %v1368
    %1437 = vst [vmem:[%s1405 + $0x7c] sm:$0xf] %v1369
  $region21: #{generator_forward.7} parent=0 // loop_footer
    %s1143 = sadd.s32 1, %s1139
  $region22: #{generator_forward.7} parent=0 // loop_footer_branch
    %1138 = sbr.rel target = $region18
  $region23: #{generator_forward.7} parent=0 // loop_exit
    _
  // Predicated region
  $region24: #{generator_forward.7} parent=0 // pred_check
    _
  $region25: #{generator_forward.7} parent=0 // pred_check_branch
    %1439 = sbr.rel (0) target = $region27
  $region26: #{generator_forward.7} parent=0 // pred_region
    _
  $region27: #{generator_forward.7} parent=0 // pred_fallthru
    _
  // Predicated region
  $region28: #{generator_forward.7} parent=0 // pred_check
    _
  $region29: #{generator_forward.7} parent=0 // pred_check_branch
    %1441 = sbr.rel (0) target = $region31
  $region30: #{generator_forward.7} parent=0 // pred_region
    _
  $region31: #{generator_forward.7} parent=0 // pred_fallthru
    _

// kernel: generator_forward.8
$region0: #{generator_forward.8}
  #allocation0 [shape = 'u32[]', space=smem, size = 0x4, offset = 0x4, fixed_abs, tag = 'smem constant byte address 0x4 - core index']
  #allocation1 [shape = 'u32[144,128]{1,0:T(1,128)}', space=vmem, size = 0x12000, scoped, tag = 'internal scratch']
  #allocation2 [shape = 'f32[2048,128]{1,0:T(8,128)}', space=vmem, size = 0x100000, scoped, tag = 'scratch operand']
  %s0 = inlined_call_operand.vmem [shape: bf16[2048,256], index: 0, kind: input, shape index: {}]
  %s1 = inlined_call_operand.vmem [shape: bf16[256,128], index: 1, kind: input, shape index: {}]
  %s2 = inlined_call_operand.vmem [shape: bf16[2048,128], index: 2, kind: output, shape index: {}]
  %s3 = sld [smem:[#allocation0]]
  $region32: #{generator_forward.8} parent=0
    _
  %s5 = ssub.s32 1, %s3
  %s6 = scalar_select 0, %s5, %s3
  // Predicated region
  $region2: #{generator_forward.8} parent=0 // pred_check
    _
  $region3: #{generator_forward.8} parent=0 // pred_check_branch
    %8 = sbr.rel (0) target = $region5
  $region4: #{generator_forward.8} parent=0 // pred_region
    _
  $region5: #{generator_forward.8} parent=0 // pred_fallthru
    _
  // Predicated region
  $region6: #{generator_forward.8} parent=0 // pred_check
    _
  $region7: #{generator_forward.8} parent=0 // pred_check_branch
    %10 = sbr.rel (0) target = $region9
  $region8: #{generator_forward.8} parent=0 // pred_region
    _
  $region9: #{generator_forward.8} parent=0 // pred_fallthru
    _
  loop: start=0, step=1, limit=8
  $region10: #{generator_forward.8} parent=0 // loop_pre_header
    _
  $region11: #{generator_forward.8} parent=0 // loop_header
    %s13 = sphi 0, %s17
    %p14 = scmp.ge.s32.totalorder %s13, 8
    %v18 = vphi 0.0, %v577
    %v19 = vphi 0.0, %v647
  $region12: #{generator_forward.8} parent=0 // loop_header_branch
    %16 = sbr.rel (%p14) target = $region16
  $region13: #{generator_forward.8} parent=0 // loop_body
    %s20 = smul.u32 %s13, 256
    %s21 = sshra.s32 %s20, 3
    %s22 = sand.u32 %s20, 7
    %s23 = smul.u32 %s21, 2
    %s24 = smul.addr %s23, 4
    %s25 = scalar_lea.vmem %s0, %s24
    %v26 = vld [vmem:[%s25] sm:$0xff]
    %v27 = vld [vmem:[%s25 + $0x8] sm:$0xff]
    %v28 = vld [vmem:[%s25 + $0x10] sm:$0xff]
    %v29 = vld [vmem:[%s25 + $0x18] sm:$0xff]
    %v30 = vld [vmem:[%s25 + $0x20] sm:$0xff]
    %v31 = vld [vmem:[%s25 + $0x28] sm:$0xff]
    %v32 = vld [vmem:[%s25 + $0x30] sm:$0xff]
    %v33 = vld [vmem:[%s25 + $0x38] sm:$0xff]
    %v34 = vld [vmem:[%s25 + $0x40] sm:$0xff]
    %v35 = vld [vmem:[%s25 + $0x48] sm:$0xff]
    %v36 = vld [vmem:[%s25 + $0x50] sm:$0xff]
    %v37 = vld [vmem:[%s25 + $0x58] sm:$0xff]
    %v38 = vld [vmem:[%s25 + $0x60] sm:$0xff]
    %v39 = vld [vmem:[%s25 + $0x68] sm:$0xff]
    %v40 = vld [vmem:[%s25 + $0x70] sm:$0xff]
    %v41 = vld [vmem:[%s25 + $0x78] sm:$0xff]
    %v42 = vld [vmem:[%s25 + $0x80] sm:$0xff]
    %v43 = vld [vmem:[%s25 + $0x88] sm:$0xff]
    %v44 = vld [vmem:[%s25 + $0x90] sm:$0xff]
    %v45 = vld [vmem:[%s25 + $0x98] sm:$0xff]
    %v46 = vld [vmem:[%s25 + $0xa0] sm:$0xff]
    %v47 = vld [vmem:[%s25 + $0xa8] sm:$0xff]
    %v48 = vld [vmem:[%s25 + $0xb0] sm:$0xff]
    %v49 = vld [vmem:[%s25 + $0xb8] sm:$0xff]
    %v50 = vld [vmem:[%s25 + $0xc0] sm:$0xff]
    %v51 = vld [vmem:[%s25 + $0xc8] sm:$0xff]
    %v52 = vld [vmem:[%s25 + $0xd0] sm:$0xff]
    %v53 = vld [vmem:[%s25 + $0xd8] sm:$0xff]
    %v54 = vld [vmem:[%s25 + $0xe0] sm:$0xff]
    %v55 = vld [vmem:[%s25 + $0xe8] sm:$0xff]
    %v56 = vld [vmem:[%s25 + $0xf0] sm:$0xff]
    %v57 = vld [vmem:[%s25 + $0xf8] sm:$0xff]
    %v58 = vld [vmem:[%s1] sm:$0xf]
    %v59 = vld [vmem:[%s1 + $0x4] sm:$0xf]
    %v60 = vld [vmem:[%s1 + $0x8] sm:$0xf]
    %v61 = vld [vmem:[%s1 + $0xc] sm:$0xf]
    %v62 = vld [vmem:[%s1 + $0x10] sm:$0xf]
    %v63 = vld [vmem:[%s1 + $0x14] sm:$0xf]
    %v64 = vld [vmem:[%s1 + $0x18] sm:$0xf]
    %v65 = vld [vmem:[%s1 + $0x1c] sm:$0xf]
    %v66 = vld [vmem:[%s1 + $0x20] sm:$0xf]
    %v67 = vld [vmem:[%s1 + $0x24] sm:$0xf]
    %v68 = vld [vmem:[%s1 + $0x28] sm:$0xf]
    %v69 = vld [vmem:[%s1 + $0x2c] sm:$0xf]
    %v70 = vld [vmem:[%s1 + $0x30] sm:$0xf]
    %v71 = vld [vmem:[%s1 + $0x34] sm:$0xf]
    %v72 = vld [vmem:[%s1 + $0x38] sm:$0xf]
    %v73 = vld [vmem:[%s1 + $0x3c] sm:$0xf]
    %v74 = vld [vmem:[%s1 + $0x40] sm:$0xf]
    %v75 = vld [vmem:[%s1 + $0x44] sm:$0xf]
    %v76 = vld [vmem:[%s1 + $0x48] sm:$0xf]
    %v77 = vld [vmem:[%s1 + $0x4c] sm:$0xf]
    %v78 = vld [vmem:[%s1 + $0x50] sm:$0xf]
    %v79 = vld [vmem:[%s1 + $0x54] sm:$0xf]
    %v80 = vld [vmem:[%s1 + $0x58] sm:$0xf]
    %v81 = vld [vmem:[%s1 + $0x5c] sm:$0xf]
    %v82 = vld [vmem:[%s1 + $0x60] sm:$0xf]
    %v83 = vld [vmem:[%s1 + $0x64] sm:$0xf]
    %v84 = vld [vmem:[%s1 + $0x68] sm:$0xf]
    %v85 = vld [vmem:[%s1 + $0x6c] sm:$0xf]
    %v86 = vld [vmem:[%s1 + $0x70] sm:$0xf]
    %v87 = vld [vmem:[%s1 + $0x74] sm:$0xf]
    %v88 = vld [vmem:[%s1 + $0x78] sm:$0xf]
    %v89 = vld [vmem:[%s1 + $0x7c] sm:$0xf]
    %v122 = vunpack.c.l.b16 %v26
    %v123 = vunpack.c.h.b16 %v26
    %v124 = vunpack.c.l.b16 %v27
    %v125 = vunpack.c.h.b16 %v27
    %v126 = vunpack.c.l.b16 %v28
    %v127 = vunpack.c.h.b16 %v28
    %v128 = vunpack.c.l.b16 %v29
    %v129 = vunpack.c.h.b16 %v29
    %v130 = vunpack.c.l.b16 %v30
    %v131 = vunpack.c.h.b16 %v30
    %v132 = vunpack.c.l.b16 %v31
    %v133 = vunpack.c.h.b16 %v31
    %v134 = vunpack.c.l.b16 %v32
    %v135 = vunpack.c.h.b16 %v32
    %v136 = vunpack.c.l.b16 %v33
    %v137 = vunpack.c.h.b16 %v33
    %v138 = vunpack.c.l.b16 %v34
    %v139 = vunpack.c.h.b16 %v34
    %v140 = vunpack.c.l.b16 %v35
    %v141 = vunpack.c.h.b16 %v35
    %v142 = vunpack.c.l.b16 %v36
    %v143 = vunpack.c.h.b16 %v36
    %v144 = vunpack.c.l.b16 %v37
    %v145 = vunpack.c.h.b16 %v37
    %v146 = vunpack.c.l.b16 %v38
    %v147 = vunpack.c.h.b16 %v38
    %v148 = vunpack.c.l.b16 %v39
    %v149 = vunpack.c.h.b16 %v39
    %v150 = vunpack.c.l.b16 %v40
    %v151 = vunpack.c.h.b16 %v40
    %v152 = vunpack.c.l.b16 %v41
    %v153 = vunpack.c.h.b16 %v41
    %v154 = vunpack.c.l.b16 %v42
    %v155 = vunpack.c.h.b16 %v42
    %v156 = vunpack.c.l.b16 %v43
    %v157 = vunpack.c.h.b16 %v43
    %v158 = vunpack.c.l.b16 %v44
    %v159 = vunpack.c.h.b16 %v44
    %v160 = vunpack.c.l.b16 %v45
    %v161 = vunpack.c.h.b16 %v45
    %v162 = vunpack.c.l.b16 %v46
    %v163 = vunpack.c.h.b16 %v46
    %v164 = vunpack.c.l.b16 %v47
    %v165 = vunpack.c.h.b16 %v47
    %v166 = vunpack.c.l.b16 %v48
    %v167 = vunpack.c.h.b16 %v48
    %v168 = vunpack.c.l.b16 %v49
    %v169 = vunpack.c.h.b16 %v49
    %v170 = vunpack.c.l.b16 %v50
    %v171 = vunpack.c.h.b16 %v50
    %v172 = vunpack.c.l.b16 %v51
    %v173 = vunpack.c.h.b16 %v51
    %v174 = vunpack.c.l.b16 %v52
    %v175 = vunpack.c.h.b16 %v52
    %v176 = vunpack.c.l.b16 %v53
    %v177 = vunpack.c.h.b16 %v53
    %v178 = vunpack.c.l.b16 %v54
    %v179 = vunpack.c.h.b16 %v54
    %v180 = vunpack.c.l.b16 %v55
    %v181 = vunpack.c.h.b16 %v55
    %v182 = vunpack.c.l.b16 %v56
    %v183 = vunpack.c.h.b16 %v56
    %v184 = vunpack.c.l.b16 %v57
    %v185 = vunpack.c.h.b16 %v57
    %v186 = vpack.c.b16 %v124, %v122
    %v187 = vpack.c.b16 %v125, %v123
    %v188 = vpack.c.b16 %v128, %v126
    %v189 = vpack.c.b16 %v129, %v127
    %v190 = vpack.c.b16 %v132, %v130
    %v191 = vpack.c.b16 %v133, %v131
    %v192 = vpack.c.b16 %v136, %v134
    %v193 = vpack.c.b16 %v137, %v135
    %v194 = vpack.c.b16 %v140, %v138
    %v195 = vpack.c.b16 %v141, %v139
    %v196 = vpack.c.b16 %v144, %v142
    %v197 = vpack.c.b16 %v145, %v143
    %v198 = vpack.c.b16 %v148, %v146
    %v199 = vpack.c.b16 %v149, %v147
    %v200 = vpack.c.b16 %v152, %v150
    %v201 = vpack.c.b16 %v153, %v151
    %v202 = vpack.c.b16 %v156, %v154
    %v203 = vpack.c.b16 %v157, %v155
    %v204 = vpack.c.b16 %v160, %v158
    %v205 = vpack.c.b16 %v161, %v159
    %v206 = vpack.c.b16 %v164, %v162
    %v207 = vpack.c.b16 %v165, %v163
    %v208 = vpack.c.b16 %v168, %v166
    %v209 = vpack.c.b16 %v169, %v167
    %v210 = vpack.c.b16 %v172, %v170
    %v211 = vpack.c.b16 %v173, %v171
    %v212 = vpack.c.b16 %v176, %v174
    %v213 = vpack.c.b16 %v177, %v175
    %v214 = vpack.c.b16 %v180, %v178
    %v215 = vpack.c.b16 %v181, %v179
    %v216 = vpack.c.b16 %v184, %v182
    %v217 = vpack.c.b16 %v185, %v183
    %v282 = vunpack.c.l.b16 %v58
    %v283 = vunpack.c.l.b16 %v59
    %v284 = vunpack.c.l.b16 %v60
    %v285 = vunpack.c.l.b16 %v61
    %v286 = vunpack.c.l.b16 %v62
    %v287 = vunpack.c.l.b16 %v63
    %v288 = vunpack.c.l.b16 %v64
    %v289 = vunpack.c.l.b16 %v65
    %v290 = vunpack.c.l.b16 %v66
    %v291 = vunpack.c.l.b16 %v67
    %v292 = vunpack.c.l.b16 %v68
    %v293 = vunpack.c.l.b16 %v69
    %v294 = vunpack.c.l.b16 %v70
    %v295 = vunpack.c.l.b16 %v71
    %v296 = vunpack.c.l.b16 %v72
    %v297 = vunpack.c.l.b16 %v73
    %v298 = vunpack.c.l.b16 %v74
    %v299 = vunpack.c.l.b16 %v75
    %v300 = vunpack.c.l.b16 %v76
    %v301 = vunpack.c.l.b16 %v77
    %v302 = vunpack.c.l.b16 %v78
    %v303 = vunpack.c.l.b16 %v79
    %v304 = vunpack.c.l.b16 %v80
    %v305 = vunpack.c.l.b16 %v81
    %v306 = vunpack.c.l.b16 %v82
    %v307 = vunpack.c.l.b16 %v83
    %v308 = vunpack.c.l.b16 %v84
    %v309 = vunpack.c.l.b16 %v85
    %v310 = vunpack.c.l.b16 %v86
    %v311 = vunpack.c.l.b16 %v87
    %v312 = vunpack.c.l.b16 %v88
    %v313 = vunpack.c.l.b16 %v89
    %v314 = vpack.c.b16 %v283, %v282
    %v315 = vpack.c.b16 %v285, %v284
    %v316 = vpack.c.b16 %v287, %v286
    %v317 = vpack.c.b16 %v289, %v288
    %v318 = vpack.c.b16 %v291, %v290
    %v319 = vpack.c.b16 %v293, %v292
    %v320 = vpack.c.b16 %v295, %v294
    %v321 = vpack.c.b16 %v297, %v296
    %v322 = vpack.c.b16 %v299, %v298
    %v323 = vpack.c.b16 %v301, %v300
    %v324 = vpack.c.b16 %v303, %v302
    %v325 = vpack.c.b16 %v305, %v304
    %v326 = vpack.c.b16 %v307, %v306
    %v327 = vpack.c.b16 %v309, %v308
    %v328 = vpack.c.b16 %v311, %v310
    %v329 = vpack.c.b16 %v313, %v312
    %346 = vmatprep.subr.bf16.mxu0 0
    %347 = vmatpush1.bf16.msra.mxu0 %v314
    %348 = vmatprep.subr.bf16.mxu0 0
    %349 = vmatpush1.bf16.msra.mxu0 %v315
    %350 = vmatprep.subr.bf16.mxu0 0
    %351 = vmatpush1.bf16.msra.mxu0 %v316
    %352 = vmatprep.subr.bf16.mxu0 0
    %353 = vmatpush1.bf16.msra.mxu0 %v317
    %354 = vmatprep.subr.bf16.mxu0 0
    %355 = vmatpush1.bf16.msra.mxu0 %v318
    %356 = vmatprep.subr.bf16.mxu0 0
    %357 = vmatpush1.bf16.msra.mxu0 %v319
    %358 = vmatprep.subr.bf16.mxu0 0
    %359 = vmatpush1.bf16.msra.mxu0 %v320
    %360 = vmatprep.subr.bf16.mxu0 0
    %361 = vmatpush1.bf16.msra.mxu0 %v321
    %362 = vmatprep.subr.bf16.mxu0 0
    %363 = vmatpush1.bf16.msra.mxu0 %v322
    %364 = vmatprep.subr.bf16.mxu0 0
    %365 = vmatpush1.bf16.msra.mxu0 %v323
    %366 = vmatprep.subr.bf16.mxu0 0
    %367 = vmatpush1.bf16.msra.mxu0 %v324
    %368 = vmatprep.subr.bf16.mxu0 0
    %369 = vmatpush1.bf16.msra.mxu0 %v325
    %370 = vmatprep.subr.bf16.mxu0 0
    %371 = vmatpush1.bf16.msra.mxu0 %v326
    %372 = vmatprep.subr.bf16.mxu0 0
    %373 = vmatpush1.bf16.msra.mxu0 %v327
    %374 = vmatprep.subr.bf16.mxu0 0
    %375 = vmatpush1.bf16.msra.mxu0 %v328
    %376 = vmatprep.subr.bf16.mxu0 0
    %377 = vmatpush1.bf16.msra.mxu0 %v329
    %378 = vmatprep.mubr.bf16.mxu0 %v187
    %379 = vmatmul.mubr.bf16.gmra.mrb[0].mxu0 %v186
    %v380 = vpop.f32.mrb[0].mxu0
    %v381 = vadd.f32 0.0, %v380
    %v382 = vpop.f32.mrb[0].mxu0
    %v383 = vpop.f32.mrb[0].mxu0
    %v384 = vadd.f32 0.0, %v383
    %v385 = vpop.f32.mrb[0].mxu0
    %386 = vmatprep.mubr.bf16.mxu0 %v189
    %387 = vmatmul.mubr.bf16.gmra.mrb[0].mxu0 %v188
    %v388 = vpop.f32.mrb[0].mxu0
    %v389 = vadd.f32 0.0, %v388
    %v390 = vpop.f32.mrb[0].mxu0
    %v391 = vpop.f32.mrb[0].mxu0
    %v392 = vadd.f32 0.0, %v391
    %v393 = vpop.f32.mrb[0].mxu0
    %394 = vmatprep.mubr.bf16.mxu0 %v191
    %395 = vmatmul.mubr.bf16.gmra.mrb[0].mxu0 %v190
    %v396 = vpop.f32.mrb[0].mxu0
    %v397 = vadd.f32 0.0, %v396
    %v398 = vpop.f32.mrb[0].mxu0
    %v399 = vpop.f32.mrb[0].mxu0
    %v400 = vadd.f32 0.0, %v399
    %v401 = vpop.f32.mrb[0].mxu0
    %402 = vmatprep.mubr.bf16.mxu0 %v193
    %403 = vmatmul.mubr.bf16.gmra.mrb[0].mxu0 %v192
    %v404 = vpop.f32.mrb[0].mxu0
    %v405 = vadd.f32 0.0, %v404
    %v406 = vpop.f32.mrb[0].mxu0
    %v407 = vpop.f32.mrb[0].mxu0
    %v408 = vadd.f32 0.0, %v407
    %v409 = vpop.f32.mrb[0].mxu0
    %410 = vmatprep.mubr.bf16.mxu0 %v195
    %411 = vmatmul.mubr.bf16.gmra.mrb[0].mxu0 %v194
    %v412 = vpop.f32.mrb[0].mxu0
    %v413 = vadd.f32 0.0, %v412
    %v414 = vpop.f32.mrb[0].mxu0
    %v415 = vpop.f32.mrb[0].mxu0
    %v416 = vadd.f32 0.0, %v415
    %v417 = vpop.f32.mrb[0].mxu0
    %418 = vmatprep.mubr.bf16.mxu0 %v197
    %419 = vmatmul.mubr.bf16.gmra.mrb[0].mxu0 %v196
    %v420 = vpop.f32.mrb[0].mxu0
    %v421 = vadd.f32 0.0, %v420
    %v422 = vpop.f32.mrb[0].mxu0
    %v423 = vpop.f32.mrb[0].mxu0
    %v424 = vadd.f32 0.0, %v423
    %v425 = vpop.f32.mrb[0].mxu0
    %426 = vmatprep.mubr.bf16.mxu0 %v199
    %427 = vmatmul.mubr.bf16.gmra.mrb[0].mxu0 %v198
    %v428 = vpop.f32.mrb[0].mxu0
    %v429 = vadd.f32 0.0, %v428
    %v430 = vpop.f32.mrb[0].mxu0
    %v431 = vpop.f32.mrb[0].mxu0
    %v432 = vadd.f32 0.0, %v431
    %v433 = vpop.f32.mrb[0].mxu0
    %434 = vmatprep.mubr.bf16.mxu0 %v201
    %435 = vmatmul.mubr.bf16.gmra.mrb[0].mxu0 %v200
    %v436 = vpop.f32.mrb[0].mxu0
    %v437 = vadd.f32 0.0, %v436
    %v438 = vpop.f32.mrb[0].mxu0
    %v439 = vpop.f32.mrb[0].mxu0
    %v440 = vadd.f32 0.0, %v439
    %v441 = vpop.f32.mrb[0].mxu0
    %442 = vmatprep.mubr.bf16.mxu0 %v203
    %443 = vmatmul.mubr.bf16.gmra.mrb[0].mxu0 %v202
    %v444 = vpop.f32.mrb[0].mxu0
    %v445 = vadd.f32 0.0, %v444
    %v446 = vpop.f32.mrb[0].mxu0
    %v447 = vpop.f32.mrb[0].mxu0
    %v448 = vadd.f32 0.0, %v447
    %v449 = vpop.f32.mrb[0].mxu0
    %450 = vmatprep.mubr.bf16.mxu0 %v205
    %451 = vmatmul.mubr.bf16.gmra.mrb[0].mxu0 %v204
    %v452 = vpop.f32.mrb[0].mxu0
    %v453 = vadd.f32 0.0, %v452
    %v454 = vpop.f32.mrb[0].mxu0
    %v455 = vpop.f32.mrb[0].mxu0
    %v456 = vadd.f32 0.0, %v455
    %v457 = vpop.f32.mrb[0].mxu0
    %458 = vmatprep.mubr.bf16.mxu0 %v207
    %459 = vmatmul.mubr.bf16.gmra.mrb[0].mxu0 %v206
    %v460 = vpop.f32.mrb[0].mxu0
    %v461 = vadd.f32 0.0, %v460
    %v462 = vpop.f32.mrb[0].mxu0
    %v463 = vpop.f32.mrb[0].mxu0
    %v464 = vadd.f32 0.0, %v463
    %v465 = vpop.f32.mrb[0].mxu0
    %466 = vmatprep.mubr.bf16.mxu0 %v209
    %467 = vmatmul.mubr.bf16.gmra.mrb[0].mxu0 %v208
    %v468 = vpop.f32.mrb[0].mxu0
    %v469 = vadd.f32 0.0, %v468
    %v470 = vpop.f32.mrb[0].mxu0
    %v471 = vpop.f32.mrb[0].mxu0
    %v472 = vadd.f32 0.0, %v471
    %v473 = vpop.f32.mrb[0].mxu0
    %474 = vmatprep.mubr.bf16.mxu0 %v211
    %475 = vmatmul.mubr.bf16.gmra.mrb[0].mxu0 %v210
    %v476 = vpop.f32.mrb[0].mxu0
    %v477 = vadd.f32 0.0, %v476
    %v478 = vpop.f32.mrb[0].mxu0
    %v479 = vpop.f32.mrb[0].mxu0
    %v480 = vadd.f32 0.0, %v479
    %v481 = vpop.f32.mrb[0].mxu0
    %482 = vmatprep.mubr.bf16.mxu0 %v213
    %483 = vmatmul.mubr.bf16.gmra.mrb[0].mxu0 %v212
    %v484 = vpop.f32.mrb[0].mxu0
    %v485 = vadd.f32 0.0, %v484
    %v486 = vpop.f32.mrb[0].mxu0
    %v487 = vpop.f32.mrb[0].mxu0
    %v488 = vadd.f32 0.0, %v487
    %v489 = vpop.f32.mrb[0].mxu0
    %490 = vmatprep.mubr.bf16.mxu0 %v215
    %491 = vmatmul.mubr.bf16.gmra.mrb[0].mxu0 %v214
    %v492 = vpop.f32.mrb[0].mxu0
    %v493 = vadd.f32 0.0, %v492
    %v494 = vpop.f32.mrb[0].mxu0
    %v495 = vpop.f32.mrb[0].mxu0
    %v496 = vadd.f32 0.0, %v495
    %v497 = vpop.f32.mrb[0].mxu0
    %498 = vmatprep.mubr.bf16.mxu0 %v217
    %499 = vmatmul.mubr.bf16.gmra.mrb[0].mxu0 %v216
    %v500 = vpop.f32.mrb[0].mxu0
    %v501 = vadd.f32 0.0, %v500
    %v502 = vpop.f32.mrb[0].mxu0
    %v503 = vpop.f32.mrb[0].mxu0
    %v504 = vadd.f32 0.0, %v503
    %v505 = vpop.f32.mrb[0].mxu0
    %506 = vdwg.mxu0
    %s507 = scalar_lea.vmem [#allocation2], %s20
    %508 = vst [vmem:[%s507] sm:$0xff] %v381
    %509 = vst [vmem:[%s507 + $0x8] sm:$0xff] %v384
    %510 = vst [vmem:[%s507 + $0x10] sm:$0xff] %v389
    %511 = vst [vmem:[%s507 + $0x18] sm:$0xff] %v392
    %512 = vst [vmem:[%s507 + $0x20] sm:$0xff] %v397
    %513 = vst [vmem:[%s507 + $0x28] sm:$0xff] %v400
    %514 = vst [vmem:[%s507 + $0x30] sm:$0xff] %v405
    %515 = vst [vmem:[%s507 + $0x38] sm:$0xff] %v408
    %516 = vst [vmem:[%s507 + $0x40] sm:$0xff] %v413
    %517 = vst [vmem:[%s507 + $0x48] sm:$0xff] %v416
    %518 = vst [vmem:[%s507 + $0x50] sm:$0xff] %v421
    %519 = vst [vmem:[%s507 + $0x58] sm:$0xff] %v424
    %520 = vst [vmem:[%s507 + $0x60] sm:$0xff] %v429
    %521 = vst [vmem:[%s507 + $0x68] sm:$0xff] %v432
    %522 = vst [vmem:[%s507 + $0x70] sm:$0xff] %v437
    %523 = vst [vmem:[%s507 + $0x78] sm:$0xff] %v440
    %524 = vst [vmem:[%s507 + $0x80] sm:$0xff] %v445
    %525 = vst [vmem:[%s507 + $0x88] sm:$0xff] %v448
    %526 = vst [vmem:[%s507 + $0x90] sm:$0xff] %v453
    %527 = vst [vmem:[%s507 + $0x98] sm:$0xff] %v456
    %528 = vst [vmem:[%s507 + $0xa0] sm:$0xff] %v461
    %529 = vst [vmem:[%s507 + $0xa8] sm:$0xff] %v464
    %530 = vst [vmem:[%s507 + $0xb0] sm:$0xff] %v469
    %531 = vst [vmem:[%s507 + $0xb8] sm:$0xff] %v472
    %532 = vst [vmem:[%s507 + $0xc0] sm:$0xff] %v477
    %533 = vst [vmem:[%s507 + $0xc8] sm:$0xff] %v480
    %534 = vst [vmem:[%s507 + $0xd0] sm:$0xff] %v485
    %535 = vst [vmem:[%s507 + $0xd8] sm:$0xff] %v488
    %536 = vst [vmem:[%s507 + $0xe0] sm:$0xff] %v493
    %537 = vst [vmem:[%s507 + $0xe8] sm:$0xff] %v496
    %538 = vst [vmem:[%s507 + $0xf0] sm:$0xff] %v501
    %539 = vst [vmem:[%s507 + $0xf8] sm:$0xff] %v504
    %v540 = vadd.f32 %v381, %v384
    %v541 = vadd.f32 %v540, %v389
    %v542 = vadd.f32 %v541, %v392
    %v543 = vadd.f32 %v542, %v397
    %v544 = vadd.f32 %v543, %v400
    %v545 = vadd.f32 %v544, %v405
    %v546 = vadd.f32 %v545, %v408
    %v547 = vadd.f32 %v546, %v413
    %v548 = vadd.f32 %v547, %v416
    %v549 = vadd.f32 %v548, %v421
    %v550 = vadd.f32 %v549, %v424
    %v551 = vadd.f32 %v550, %v429
    %v552 = vadd.f32 %v551, %v432
    %v553 = vadd.f32 %v552, %v437
    %v554 = vadd.f32 %v553, %v440
    %v555 = vadd.f32 %v554, %v445
    %v556 = vadd.f32 %v555, %v448
    %v557 = vadd.f32 %v556, %v453
    %v558 = vadd.f32 %v557, %v456
    %v559 = vadd.f32 %v558, %v461
    %v560 = vadd.f32 %v559, %v464
    %v561 = vadd.f32 %v560, %v469
    %v562 = vadd.f32 %v561, %v472
    %v563 = vadd.f32 %v562, %v477
    %v564 = vadd.f32 %v563, %v480
    %v565 = vadd.f32 %v564, %v485
    %v566 = vadd.f32 %v565, %v488
    %v567 = vadd.f32 %v566, %v493
    %v568 = vadd.f32 %v567, %v496
    %v569 = vadd.f32 %v568, %v501
    %v570 = vadd.f32 %v569, %v504
    %v571 = vrot.slane %v570, 4
    %v572 = vadd.f32 %v570, %v571
    %v573 = vrot.slane %v572, 2
    %v574 = vadd.f32 %v572, %v573
    %v575 = vrot.slane %v574, 1
    %v576 = vadd.f32 %v574, %v575
    %v577 = vadd.f32 %v18, %v576
    %v578 = vmul.f32 %v381, %v381
    %v579 = vmul.f32 %v384, %v384
    %v580 = vmul.f32 %v389, %v389
    %v581 = vmul.f32 %v392, %v392
    %v582 = vmul.f32 %v397, %v397
    %v583 = vmul.f32 %v400, %v400
    %v584 = vmul.f32 %v405, %v405
    %v585 = vmul.f32 %v408, %v408
    %v586 = vmul.f32 %v413, %v413
    %v587 = vmul.f32 %v416, %v416
    %v588 = vmul.f32 %v421, %v421
    %v589 = vmul.f32 %v424, %v424
    %v590 = vmul.f32 %v429, %v429
    %v591 = vmul.f32 %v432, %v432
    %v592 = vmul.f32 %v437, %v437
    %v593 = vmul.f32 %v440, %v440
    %v594 = vmul.f32 %v445, %v445
    %v595 = vmul.f32 %v448, %v448
    %v596 = vmul.f32 %v453, %v453
    %v597 = vmul.f32 %v456, %v456
    %v598 = vmul.f32 %v461, %v461
    %v599 = vmul.f32 %v464, %v464
    %v600 = vmul.f32 %v469, %v469
    %v601 = vmul.f32 %v472, %v472
    %v602 = vmul.f32 %v477, %v477
    %v603 = vmul.f32 %v480, %v480
    %v604 = vmul.f32 %v485, %v485
    %v605 = vmul.f32 %v488, %v488
    %v606 = vmul.f32 %v493, %v493
    %v607 = vmul.f32 %v496, %v496
    %v608 = vmul.f32 %v501, %v501
    %v609 = vmul.f32 %v504, %v504
    %v610 = vadd.f32 %v578, %v579
    %v611 = vadd.f32 %v610, %v580
    %v612 = vadd.f32 %v611, %v581
    %v613 = vadd.f32 %v612, %v582
    %v614 = vadd.f32 %v613, %v583
    %v615 = vadd.f32 %v614, %v584
    %v616 = vadd.f32 %v615, %v585
    %v617 = vadd.f32 %v616, %v586
    %v618 = vadd.f32 %v617, %v587
    %v619 = vadd.f32 %v618, %v588
    %v620 = vadd.f32 %v619, %v589
    %v621 = vadd.f32 %v620, %v590
    %v622 = vadd.f32 %v621, %v591
    %v623 = vadd.f32 %v622, %v592
    %v624 = vadd.f32 %v623, %v593
    %v625 = vadd.f32 %v624, %v594
    %v626 = vadd.f32 %v625, %v595
    %v627 = vadd.f32 %v626, %v596
    %v628 = vadd.f32 %v627, %v597
    %v629 = vadd.f32 %v628, %v598
    %v630 = vadd.f32 %v629, %v599
    %v631 = vadd.f32 %v630, %v600
    %v632 = vadd.f32 %v631, %v601
    %v633 = vadd.f32 %v632, %v602
    %v634 = vadd.f32 %v633, %v603
    %v635 = vadd.f32 %v634, %v604
    %v636 = vadd.f32 %v635, %v605
    %v637 = vadd.f32 %v636, %v606
    %v638 = vadd.f32 %v637, %v607
    %v639 = vadd.f32 %v638, %v608
    %v640 = vadd.f32 %v639, %v609
    %v641 = vrot.slane %v640, 4
    %v642 = vadd.f32 %v640, %v641
    %v643 = vrot.slane %v642, 2
    %v644 = vadd.f32 %v642, %v643
    %v645 = vrot.slane %v644, 1
    %v646 = vadd.f32 %v644, %v645
    %v647 = vadd.f32 %v19, %v646
  $region14: #{generator_forward.8} parent=0 // loop_footer
    %s17 = sadd.s32 1, %s13
  $region15: #{generator_forward.8} parent=0 // loop_footer_branch
    %12 = sbr.rel target = $region11
  $region16: #{generator_forward.8} parent=0 // loop_exit
    _
  %v648 = vmul.f32 %v18, 0.00048828125
  %v649 = vmul.f32 %v19, 0.00048828125
  %v650 = vmul.f32 %v648, %v648
  %v651 = vsub.f32 %v649, %v650
  %v652 = vmax.f32 %v651, 0.0
  %v653 = vadd.f32 %v652, 1e-05
  %v654 = vrsqrt.pop %v653
  %v655 = vsub.f32 0.0, %v648
  %v656 = vmul.f32 %v655, %v654
  loop: start=0, step=1, limit=8
  $region17: #{generator_forward.8} parent=0 // loop_pre_header
    _
  $region18: #{generator_forward.8} parent=0 // loop_header
    %s658 = sphi 0, %s662
    %p659 = scmp.ge.s32.totalorder %s658, 8
  $region19: #{generator_forward.8} parent=0 // loop_header_branch
    %661 = sbr.rel (%p659) target = $region23
  $region20: #{generator_forward.8} parent=0 // loop_body
    %s663 = smul.u32 %s658, 256
    %s664 = scalar_lea.vmem [#allocation2], %s663
    %v665 = vld [vmem:[%s664] sm:$0xff]
    %v666 = vld [vmem:[%s664 + $0x8] sm:$0xff]
    %v667 = vld [vmem:[%s664 + $0x10] sm:$0xff]
    %v668 = vld [vmem:[%s664 + $0x18] sm:$0xff]
    %v669 = vld [vmem:[%s664 + $0x20] sm:$0xff]
    %v670 = vld [vmem:[%s664 + $0x28] sm:$0xff]
    %v671 = vld [vmem:[%s664 + $0x30] sm:$0xff]
    %v672 = vld [vmem:[%s664 + $0x38] sm:$0xff]
    %v673 = vld [vmem:[%s664 + $0x40] sm:$0xff]
    %v674 = vld [vmem:[%s664 + $0x48] sm:$0xff]
    %v675 = vld [vmem:[%s664 + $0x50] sm:$0xff]
    %v676 = vld [vmem:[%s664 + $0x58] sm:$0xff]
    %v677 = vld [vmem:[%s664 + $0x60] sm:$0xff]
    %v678 = vld [vmem:[%s664 + $0x68] sm:$0xff]
    %v679 = vld [vmem:[%s664 + $0x70] sm:$0xff]
    %v680 = vld [vmem:[%s664 + $0x78] sm:$0xff]
    %v681 = vld [vmem:[%s664 + $0x80] sm:$0xff]
    %v682 = vld [vmem:[%s664 + $0x88] sm:$0xff]
    %v683 = vld [vmem:[%s664 + $0x90] sm:$0xff]
    %v684 = vld [vmem:[%s664 + $0x98] sm:$0xff]
    %v685 = vld [vmem:[%s664 + $0xa0] sm:$0xff]
    %v686 = vld [vmem:[%s664 + $0xa8] sm:$0xff]
    %v687 = vld [vmem:[%s664 + $0xb0] sm:$0xff]
    %v688 = vld [vmem:[%s664 + $0xb8] sm:$0xff]
    %v689 = vld [vmem:[%s664 + $0xc0] sm:$0xff]
    %v690 = vld [vmem:[%s664 + $0xc8] sm:$0xff]
    %v691 = vld [vmem:[%s664 + $0xd0] sm:$0xff]
    %v692 = vld [vmem:[%s664 + $0xd8] sm:$0xff]
    %v693 = vld [vmem:[%s664 + $0xe0] sm:$0xff]
    %v694 = vld [vmem:[%s664 + $0xe8] sm:$0xff]
    %v695 = vld [vmem:[%s664 + $0xf0] sm:$0xff]
    %v696 = vld [vmem:[%s664 + $0xf8] sm:$0xff]
    %v697 = vmul.f32 %v665, %v654
    %v698 = vmul.f32 %v666, %v654
    %v699 = vmul.f32 %v667, %v654
    %v700 = vmul.f32 %v668, %v654
    %v701 = vmul.f32 %v669, %v654
    %v702 = vmul.f32 %v670, %v654
    %v703 = vmul.f32 %v671, %v654
    %v704 = vmul.f32 %v672, %v654
    %v705 = vmul.f32 %v673, %v654
    %v706 = vmul.f32 %v674, %v654
    %v707 = vmul.f32 %v675, %v654
    %v708 = vmul.f32 %v676, %v654
    %v709 = vmul.f32 %v677, %v654
    %v710 = vmul.f32 %v678, %v654
    %v711 = vmul.f32 %v679, %v654
    %v712 = vmul.f32 %v680, %v654
    %v713 = vmul.f32 %v681, %v654
    %v714 = vmul.f32 %v682, %v654
    %v715 = vmul.f32 %v683, %v654
    %v716 = vmul.f32 %v684, %v654
    %v717 = vmul.f32 %v685, %v654
    %v718 = vmul.f32 %v686, %v654
    %v719 = vmul.f32 %v687, %v654
    %v720 = vmul.f32 %v688, %v654
    %v721 = vmul.f32 %v689, %v654
    %v722 = vmul.f32 %v690, %v654
    %v723 = vmul.f32 %v691, %v654
    %v724 = vmul.f32 %v692, %v654
    %v725 = vmul.f32 %v693, %v654
    %v726 = vmul.f32 %v694, %v654
    %v727 = vmul.f32 %v695, %v654
    %v728 = vmul.f32 %v696, %v654
    %v729 = vadd.f32 %v697, %v656
    %v730 = vadd.f32 %v698, %v656
    %v731 = vadd.f32 %v699, %v656
    %v732 = vadd.f32 %v700, %v656
    %v733 = vadd.f32 %v701, %v656
    %v734 = vadd.f32 %v702, %v656
    %v735 = vadd.f32 %v703, %v656
    %v736 = vadd.f32 %v704, %v656
    %v737 = vadd.f32 %v705, %v656
    %v738 = vadd.f32 %v706, %v656
    %v739 = vadd.f32 %v707, %v656
    %v740 = vadd.f32 %v708, %v656
    %v741 = vadd.f32 %v709, %v656
    %v742 = vadd.f32 %v710, %v656
    %v743 = vadd.f32 %v711, %v656
    %v744 = vadd.f32 %v712, %v656
    %v745 = vadd.f32 %v713, %v656
    %v746 = vadd.f32 %v714, %v656
    %v747 = vadd.f32 %v715, %v656
    %v748 = vadd.f32 %v716, %v656
    %v749 = vadd.f32 %v717, %v656
    %v750 = vadd.f32 %v718, %v656
    %v751 = vadd.f32 %v719, %v656
    %v752 = vadd.f32 %v720, %v656
    %v753 = vadd.f32 %v721, %v656
    %v754 = vadd.f32 %v722, %v656
    %v755 = vadd.f32 %v723, %v656
    %v756 = vadd.f32 %v724, %v656
    %v757 = vadd.f32 %v725, %v656
    %v758 = vadd.f32 %v726, %v656
    %v759 = vadd.f32 %v727, %v656
    %v760 = vadd.f32 %v728, %v656
    %v761 = vmax.f32 %v729, 0.0
    %v762 = vmax.f32 %v730, 0.0
    %v763 = vmax.f32 %v731, 0.0
    %v764 = vmax.f32 %v732, 0.0
    %v765 = vmax.f32 %v733, 0.0
    %v766 = vmax.f32 %v734, 0.0
    %v767 = vmax.f32 %v735, 0.0
    %v768 = vmax.f32 %v736, 0.0
    %v769 = vmax.f32 %v737, 0.0
    %v770 = vmax.f32 %v738, 0.0
    %v771 = vmax.f32 %v739, 0.0
    %v772 = vmax.f32 %v740, 0.0
    %v773 = vmax.f32 %v741, 0.0
    %v774 = vmax.f32 %v742, 0.0
    %v775 = vmax.f32 %v743, 0.0
    %v776 = vmax.f32 %v744, 0.0
    %v777 = vmax.f32 %v745, 0.0
    %v778 = vmax.f32 %v746, 0.0
    %v779 = vmax.f32 %v747, 0.0
    %v780 = vmax.f32 %v748, 0.0
    %v781 = vmax.f32 %v749, 0.0
    %v782 = vmax.f32 %v750, 0.0
    %v783 = vmax.f32 %v751, 0.0
    %v784 = vmax.f32 %v752, 0.0
    %v785 = vmax.f32 %v753, 0.0
    %v786 = vmax.f32 %v754, 0.0
    %v787 = vmax.f32 %v755, 0.0
    %v788 = vmax.f32 %v756, 0.0
    %v789 = vmax.f32 %v757, 0.0
    %v790 = vmax.f32 %v758, 0.0
    %v791 = vmax.f32 %v759, 0.0
    %v792 = vmax.f32 %v760, 0.0
    %v793 = vpack.c.bf16 %v762, %v761
    %v794 = vpack.c.bf16 %v764, %v763
    %v795 = vpack.c.bf16 %v766, %v765
    %v796 = vpack.c.bf16 %v768, %v767
    %v797 = vpack.c.bf16 %v770, %v769
    %v798 = vpack.c.bf16 %v772, %v771
    %v799 = vpack.c.bf16 %v774, %v773
    %v800 = vpack.c.bf16 %v776, %v775
    %v801 = vpack.c.bf16 %v778, %v777
    %v802 = vpack.c.bf16 %v780, %v779
    %v803 = vpack.c.bf16 %v782, %v781
    %v804 = vpack.c.bf16 %v784, %v783
    %v805 = vpack.c.bf16 %v786, %v785
    %v806 = vpack.c.bf16 %v788, %v787
    %v807 = vpack.c.bf16 %v790, %v789
    %v808 = vpack.c.bf16 %v792, %v791
    %v825 = vunpack.c.l.b16 %v793
    %v826 = vunpack.c.h.b16 %v793
    %v827 = vunpack.c.l.b16 %v794
    %v828 = vunpack.c.h.b16 %v794
    %v829 = vunpack.c.l.b16 %v795
    %v830 = vunpack.c.h.b16 %v795
    %v831 = vunpack.c.l.b16 %v796
    %v832 = vunpack.c.h.b16 %v796
    %v833 = vunpack.c.l.b16 %v797
    %v834 = vunpack.c.h.b16 %v797
    %v835 = vunpack.c.l.b16 %v798
    %v836 = vunpack.c.h.b16 %v798
    %v837 = vunpack.c.l.b16 %v799
    %v838 = vunpack.c.h.b16 %v799
    %v839 = vunpack.c.l.b16 %v800
    %v840 = vunpack.c.h.b16 %v800
    %v841 = vunpack.c.l.b16 %v801
    %v842 = vunpack.c.h.b16 %v801
    %v843 = vunpack.c.l.b16 %v802
    %v844 = vunpack.c.h.b16 %v802
    %v845 = vunpack.c.l.b16 %v803
    %v846 = vunpack.c.h.b16 %v803
    %v847 = vunpack.c.l.b16 %v804
    %v848 = vunpack.c.h.b16 %v804
    %v849 = vunpack.c.l.b16 %v805
    %v850 = vunpack.c.h.b16 %v805
    %v851 = vunpack.c.l.b16 %v806
    %v852 = vunpack.c.h.b16 %v806
    %v853 = vunpack.c.l.b16 %v807
    %v854 = vunpack.c.h.b16 %v807
    %v855 = vunpack.c.l.b16 %v808
    %v856 = vunpack.c.h.b16 %v808
    %v857 = vpack.c.b16 %v825, %v825
    %v858 = vpack.c.b16 %v826, %v826
    %v859 = vpack.c.b16 %v827, %v827
    %v860 = vpack.c.b16 %v828, %v828
    %v861 = vpack.c.b16 %v829, %v829
    %v862 = vpack.c.b16 %v830, %v830
    %v863 = vpack.c.b16 %v831, %v831
    %v864 = vpack.c.b16 %v832, %v832
    %v865 = vpack.c.b16 %v833, %v833
    %v866 = vpack.c.b16 %v834, %v834
    %v867 = vpack.c.b16 %v835, %v835
    %v868 = vpack.c.b16 %v836, %v836
    %v869 = vpack.c.b16 %v837, %v837
    %v870 = vpack.c.b16 %v838, %v838
    %v871 = vpack.c.b16 %v839, %v839
    %v872 = vpack.c.b16 %v840, %v840
    %v873 = vpack.c.b16 %v841, %v841
    %v874 = vpack.c.b16 %v842, %v842
    %v875 = vpack.c.b16 %v843, %v843
    %v876 = vpack.c.b16 %v844, %v844
    %v877 = vpack.c.b16 %v845, %v845
    %v878 = vpack.c.b16 %v846, %v846
    %v879 = vpack.c.b16 %v847, %v847
    %v880 = vpack.c.b16 %v848, %v848
    %v881 = vpack.c.b16 %v849, %v849
    %v882 = vpack.c.b16 %v850, %v850
    %v883 = vpack.c.b16 %v851, %v851
    %v884 = vpack.c.b16 %v852, %v852
    %v885 = vpack.c.b16 %v853, %v853
    %v886 = vpack.c.b16 %v854, %v854
    %v887 = vpack.c.b16 %v855, %v855
    %v888 = vpack.c.b16 %v856, %v856
    %s921 = sshra.s32 %s663, 3
    %s922 = sand.u32 %s663, 7
    %s923 = smul.addr %s921, 4
    %s924 = scalar_lea.vmem %s2, %s923
    %925 = vst [vmem:[%s924] sm:$0xf] %v857
    %926 = vst [vmem:[%s924 + $0x4] sm:$0xf] %v858
    %927 = vst [vmem:[%s924 + $0x8] sm:$0xf] %v859
    %928 = vst [vmem:[%s924 + $0xc] sm:$0xf] %v860
    %929 = vst [vmem:[%s924 + $0x10] sm:$0xf] %v861
    %930 = vst [vmem:[%s924 + $0x14] sm:$0xf] %v862
    %931 = vst [vmem:[%s924 + $0x18] sm:$0xf] %v863
    %932 = vst [vmem:[%s924 + $0x1c] sm:$0xf] %v864
    %933 = vst [vmem:[%s924 + $0x20] sm:$0xf] %v865
    %934 = vst [vmem:[%s924 + $0x24] sm:$0xf] %v866
    %935 = vst [vmem:[%s924 + $0x28] sm:$0xf] %v867
    %936 = vst [vmem:[%s924 + $0x2c] sm:$0xf] %v868
    %937 = vst [vmem:[%s924 + $0x30] sm:$0xf] %v869
    %938 = vst [vmem:[%s924 + $0x34] sm:$0xf] %v870
    %939 = vst [vmem:[%s924 + $0x38] sm:$0xf] %v871
    %940 = vst [vmem:[%s924 + $0x3c] sm:$0xf] %v872
    %941 = vst [vmem:[%s924 + $0x40] sm:$0xf] %v873
    %942 = vst [vmem:[%s924 + $0x44] sm:$0xf] %v874
    %943 = vst [vmem:[%s924 + $0x48] sm:$0xf] %v875
    %944 = vst [vmem:[%s924 + $0x4c] sm:$0xf] %v876
    %945 = vst [vmem:[%s924 + $0x50] sm:$0xf] %v877
    %946 = vst [vmem:[%s924 + $0x54] sm:$0xf] %v878
    %947 = vst [vmem:[%s924 + $0x58] sm:$0xf] %v879
    %948 = vst [vmem:[%s924 + $0x5c] sm:$0xf] %v880
    %949 = vst [vmem:[%s924 + $0x60] sm:$0xf] %v881
    %950 = vst [vmem:[%s924 + $0x64] sm:$0xf] %v882
    %951 = vst [vmem:[%s924 + $0x68] sm:$0xf] %v883
    %952 = vst [vmem:[%s924 + $0x6c] sm:$0xf] %v884
    %953 = vst [vmem:[%s924 + $0x70] sm:$0xf] %v885
    %954 = vst [vmem:[%s924 + $0x74] sm:$0xf] %v886
    %955 = vst [vmem:[%s924 + $0x78] sm:$0xf] %v887
    %956 = vst [vmem:[%s924 + $0x7c] sm:$0xf] %v888
  $region21: #{generator_forward.8} parent=0 // loop_footer
    %s662 = sadd.s32 1, %s658
  $region22: #{generator_forward.8} parent=0 // loop_footer_branch
    %657 = sbr.rel target = $region18
  $region23: #{generator_forward.8} parent=0 // loop_exit
    _
  // Predicated region
  $region24: #{generator_forward.8} parent=0 // pred_check
    _
  $region25: #{generator_forward.8} parent=0 // pred_check_branch
    %958 = sbr.rel (0) target = $region27
  $region26: #{generator_forward.8} parent=0 // pred_region
    _
  $region27: #{generator_forward.8} parent=0 // pred_fallthru
    _
  // Predicated region
  $region28: #{generator_forward.8} parent=0 // pred_check
    _
  $region29: #{generator_forward.8} parent=0 // pred_check_branch
    %960 = sbr.rel (0) target = $region31
  $region30: #{generator_forward.8} parent=0 // pred_region
    _
  $region31: #{generator_forward.8} parent=0 // pred_fallthru
    _

// kernel: generator_forward.9
$region0: #{generator_forward.9}
  #allocation0 [shape = 'u32[]', space=smem, size = 0x4, offset = 0x4, fixed_abs, tag = 'smem constant byte address 0x4 - core index']
  #allocation1 [shape = 'u32[144,128]{1,0:T(1,128)}', space=vmem, size = 0x12000, scoped, tag = 'internal scratch']
  %s0 = inlined_call_operand.vmem [shape: bf16[8192,128], index: 0, kind: input, shape index: {}]
  %s1 = inlined_call_operand.vmem [shape: bf16[128,128], index: 1, kind: input, shape index: {}]
  %s2 = inlined_call_operand.vmem [shape: bf16[8192,128], index: 2, kind: output, shape index: {}]
  %s3 = sld [smem:[#allocation0]]
  $region48: #{generator_forward.9} parent=0
    _
  %s5 = ssub.s32 1, %s3
  %s6 = scalar_select 0, %s5, %s3
  loop: start=0, step=1, limit=6
  $region2: #{generator_forward.9} parent=0 // loop_pre_header
    _
  $region3: #{generator_forward.9} parent=0 // loop_header
    %s8 = sphi 0, %s12
    %p9 = scmp.ge.s32.totalorder %s8, 6
    %s18 = sphi 0, %s20
    %s21 = sphi 0, %s18
    %s22 = sphi 0, %s21
    %s38 = sphi 0, %s22
    %s42 = sphi 0, %s42
    %s44 = sphi 0, %s42
    %s45 = sphi 0, %s44
    %s59 = sphi 0, %s45
    %s65 = sphi 0, %s67
    %s68 = sphi 0, %s65
    %s69 = sphi 0, %s68
    %s85 = sphi 0, %s69
  $region4: #{generator_forward.9} parent=0 // loop_header_branch
    %11 = sbr.rel (%p9) target = $region8
  $region5: #{generator_forward.9} parent=0 // loop_body
    %s13 = ssub.s32 %s8, 1
    %s14 = ssub.s32 %s8, 2
    %s15 = sadd.s32 %s8, 1
    %s16 = ssub.s32 %s8, %s15
    %p17 = scmp.eq.s32.totalorder %s16, 0
    %s19 = sadd.s32 %s18, 1
    %s20 = scalar_select %p17, %s18, %s19
    %p23 = pneg %p17
    %p24 = scmp.eq.s32.totalorder %s8, 3
    %p25 = por %p23, %p24
    %p26 = scmp.ne.s32.totalorder %s18, %s21
    %p27 = scmp.eq.s32.totalorder %s8, 0
    %p28 = por %p26, %p27
    %p29 = scmp.ne.s32.totalorder %s18, %s21
    %p30 = scmp.eq.s32.totalorder %s13, 3
    %p31 = por %p29, %p30
    %p32 = scmp.ne.s32.totalorder %s21, %s22
    %p33 = scmp.eq.s32.totalorder %s13, 0
    %p34 = por %p32, %p33
    %p35 = scmp.ne.s32.totalorder %s21, %s22
    %p36 = scmp.eq.s32.totalorder %s14, 3
    %p37 = por %p35, %p36
    %p39 = scmp.ne.s32.totalorder %s22, %s38
    %p40 = scmp.eq.s32.totalorder %s14, 0
    %p41 = por %p39, %p40
    %s43 = sadd.s32 %s42, 1
    %p46 = scmp.eq.s32.totalorder %s8, 3
    %p47 = scmp.ne.s32.totalorder %s42, %s44
    %p48 = scmp.eq.s32.totalorder %s8, 0
    %p49 = por %p47, %p48
    %p50 = scmp.ne.s32.totalorder %s42, %s44
    %p51 = scmp.eq.s32.totalorder %s13, 3
    %p52 = por %p50, %p51
    %p53 = scmp.ne.s32.totalorder %s44, %s45
    %p54 = scmp.eq.s32.totalorder %s13, 0
    %p55 = por %p53, %p54
    %p56 = scmp.ne.s32.totalorder %s44, %s45
    %p57 = scmp.eq.s32.totalorder %s14, 3
    %p58 = por %p56, %p57
    %p60 = scmp.ne.s32.totalorder %s45, %s59
    %p61 = scmp.eq.s32.totalorder %s14, 0
    %p62 = por %p60, %p61
    %s63 = ssub.s32 %s8, %s15
    %p64 = scmp.eq.s32.totalorder %s63, 0
    %s66 = sadd.s32 %s65, 1
    %s67 = scalar_select %p64, %s65, %s66
    %p70 = pneg %p64
    %p71 = scmp.eq.s32.totalorder %s8, 3
    %p72 = por %p70, %p71
    %p73 = scmp.ne.s32.totalorder %s65, %s68
    %p74 = scmp.eq.s32.totalorder %s8, 0
    %p75 = por %p73, %p74
    %p76 = scmp.ne.s32.totalorder %s65, %s68
    %p77 = scmp.eq.s32.totalorder %s13, 3
    %p78 = por %p76, %p77
    %p79 = scmp.ne.s32.totalorder %s68, %s69
    %p80 = scmp.eq.s32.totalorder %s13, 0
    %p81 = por %p79, %p80
    %p82 = scmp.ne.s32.totalorder %s68, %s69
    %p83 = scmp.eq.s32.totalorder %s14, 3
    %p84 = por %p82, %p83
    %p86 = scmp.ne.s32.totalorder %s69, %s85
    %p87 = scmp.eq.s32.totalorder %s14, 0
    %p88 = por %p86, %p87
    %p89 = scmp.le.s32.totalorder 1, %s8
    %p90 = scmp.lt.s32.totalorder %s8, 5
    %p91 = pnand %p89, %p90
    %p92 = pneg %p91
    // Predicated region
    $region9: #{generator_forward.9} parent=5 // pred_check
      _
    $region10: #{generator_forward.9} parent=5 // pred_check_branch
      %94 = sbr.rel (%p91) target = $region12
    $region11: #{generator_forward.9} parent=5 // pred_region
      %s95 = ssub.s32 %s8, 1
      // Predicated region
      $region13: #{generator_forward.9} parent=11 // pred_check
        %p96 = pneg %p55
      $region14: #{generator_forward.9} parent=11 // pred_check_branch
        %98 = sbr.rel (%p96) target = $region16
      $region15: #{generator_forward.9} parent=11 // pred_region
        _
      $region16: #{generator_forward.9} parent=11 // pred_fallthru
        _
    $region12: #{generator_forward.9} parent=5 // pred_fallthru
      _
    %p99 = scmp.lt.s32.totalorder %s8, 4
    // Predicated region
    $region17: #{generator_forward.9} parent=5 // pred_check
      %p100 = pneg %p99
    $region18: #{generator_forward.9} parent=5 // pred_check_branch
      %102 = sbr.rel (%p100) target = $region20
    $region19: #{generator_forward.9} parent=5 // pred_region
      // Predicated region
      $region21: #{generator_forward.9} parent=19 // pred_check
        %p103 = pneg %p28
      $region22: #{generator_forward.9} parent=19 // pred_check_branch
        %105 = sbr.rel (%p103) target = $region24
      $region23: #{generator_forward.9} parent=19 // pred_region
        %s106 = smul.u32 256, %s8
        %p107 = scmp.lt.s32.totalorder %s106, 1023
        %s108 = scalar_select %p107, %s106, 1023
        %s109 = smul.addr %s108, 4
        %s110 = scalar_lea.vmem %s0, %s109
        %s111 = smul.u32 256, %s8
      $region24: #{generator_forward.9} parent=19 // pred_fallthru
        _
    $region20: #{generator_forward.9} parent=5 // pred_fallthru
      _
    %p112 = scmp.le.s32.totalorder 1, %s8
    %p113 = scmp.lt.s32.totalorder %s8, 5
    %p114 = pnand %p112, %p113
    %p115 = pneg %p114
    // Predicated region
    $region25: #{generator_forward.9} parent=5 // pred_check
      _
    $region26: #{generator_forward.9} parent=5 // pred_check_branch
      %117 = sbr.rel (%p114) target = $region28
    $region27: #{generator_forward.9} parent=5 // pred_region
      %s118 = ssub.s32 %s8, 1
      %s119 = smul.u32 256, %s13
      %p120 = scmp.lt.s32.totalorder %s119, 1023
      %s121 = scalar_select %p120, %s119, 1023
      %s122 = smul.addr %s121, 4
      %s123 = scalar_lea.vmem %s0, %s122
      %p124 = pneg %p34
      %p125 = pneg %p31
      %p126 = pneg %p55
      %p127 = pneg %p52
      %p128 = pneg %p81
      %p129 = pneg %p78
      %s130 = smul.u32 256, %s13
      %p131 = scmp.lt.s32.totalorder %s130, 1023
      %s132 = scalar_select %p131, %s130, 1023
      %s133 = smul.addr %s132, 4
      %s134 = scalar_lea.vmem %s2, %s133
      %s135 = smul.u32 256, %s13
      %p136 = scmp.lt.s32.totalorder %s135, 1023
      %s137 = scalar_select %p136, %s135, 1023
      %s138 = smul.addr %s137, 4
      %s139 = scalar_lea.vmem %s0, %s138
      %s140 = smul.u32 256, %s13
      %s141 = smul.u32 256, %s13
      %p142 = scmp.lt.s32.totalorder %s141, 1023
      %s143 = scalar_select %p142, %s141, 1023
      %s144 = smul.addr %s143, 4
      %s145 = scalar_lea.vmem %s2, %s144
      %s146 = smul.u32 256, %s13
      loop: start=0, step=1, limit=8
      $region29: #{generator_forward.9} parent=27 // loop_pre_header
        _
      $region30: #{generator_forward.9} parent=27 // loop_header
        %s149 = sphi 0, %s153
        %p150 = scmp.ge.s32.totalorder %s149, 8
      $region31: #{generator_forward.9} parent=27 // loop_header_branch
        %152 = sbr.rel (%p150) target = $region35
      $region32: #{generator_forward.9} parent=27 // loop_body
        %s154 = smul.u32 %s149, 256
        %s155 = sshra.s32 %s154, 3
        %s156 = sand.u32 %s154, 7
        %s157 = smul.addr %s155, 4
        %s158 = scalar_lea.vmem %s139, %s157
        %v159 = vld [vmem:[%s158] sm:$0xf]
        %v160 = vld [vmem:[%s158 + $0x4] sm:$0xf]
        %v161 = vld [vmem:[%s158 + $0x8] sm:$0xf]
        %v162 = vld [vmem:[%s158 + $0xc] sm:$0xf]
        %v163 = vld [vmem:[%s158 + $0x10] sm:$0xf]
        %v164 = vld [vmem:[%s158 + $0x14] sm:$0xf]
        %v165 = vld [vmem:[%s158 + $0x18] sm:$0xf]
        %v166 = vld [vmem:[%s158 + $0x1c] sm:$0xf]
        %v167 = vld [vmem:[%s158 + $0x20] sm:$0xf]
        %v168 = vld [vmem:[%s158 + $0x24] sm:$0xf]
        %v169 = vld [vmem:[%s158 + $0x28] sm:$0xf]
        %v170 = vld [vmem:[%s158 + $0x2c] sm:$0xf]
        %v171 = vld [vmem:[%s158 + $0x30] sm:$0xf]
        %v172 = vld [vmem:[%s158 + $0x34] sm:$0xf]
        %v173 = vld [vmem:[%s158 + $0x38] sm:$0xf]
        %v174 = vld [vmem:[%s158 + $0x3c] sm:$0xf]
        %v175 = vld [vmem:[%s158 + $0x40] sm:$0xf]
        %v176 = vld [vmem:[%s158 + $0x44] sm:$0xf]
        %v177 = vld [vmem:[%s158 + $0x48] sm:$0xf]
        %v178 = vld [vmem:[%s158 + $0x4c] sm:$0xf]
        %v179 = vld [vmem:[%s158 + $0x50] sm:$0xf]
        %v180 = vld [vmem:[%s158 + $0x54] sm:$0xf]
        %v181 = vld [vmem:[%s158 + $0x58] sm:$0xf]
        %v182 = vld [vmem:[%s158 + $0x5c] sm:$0xf]
        %v183 = vld [vmem:[%s158 + $0x60] sm:$0xf]
        %v184 = vld [vmem:[%s158 + $0x64] sm:$0xf]
        %v185 = vld [vmem:[%s158 + $0x68] sm:$0xf]
        %v186 = vld [vmem:[%s158 + $0x6c] sm:$0xf]
        %v187 = vld [vmem:[%s158 + $0x70] sm:$0xf]
        %v188 = vld [vmem:[%s158 + $0x74] sm:$0xf]
        %v189 = vld [vmem:[%s158 + $0x78] sm:$0xf]
        %v190 = vld [vmem:[%s158 + $0x7c] sm:$0xf]
        %v191 = vld [vmem:[%s1] sm:$0xf]
        %v192 = vld [vmem:[%s1 + $0x4] sm:$0xf]
        %v193 = vld [vmem:[%s1 + $0x8] sm:$0xf]
        %v194 = vld [vmem:[%s1 + $0xc] sm:$0xf]
        %v195 = vld [vmem:[%s1 + $0x10] sm:$0xf]
        %v196 = vld [vmem:[%s1 + $0x14] sm:$0xf]
        %v197 = vld [vmem:[%s1 + $0x18] sm:$0xf]
        %v198 = vld [vmem:[%s1 + $0x1c] sm:$0xf]
        %v199 = vld [vmem:[%s1 + $0x20] sm:$0xf]
        %v200 = vld [vmem:[%s1 + $0x24] sm:$0xf]
        %v201 = vld [vmem:[%s1 + $0x28] sm:$0xf]
        %v202 = vld [vmem:[%s1 + $0x2c] sm:$0xf]
        %v203 = vld [vmem:[%s1 + $0x30] sm:$0xf]
        %v204 = vld [vmem:[%s1 + $0x34] sm:$0xf]
        %v205 = vld [vmem:[%s1 + $0x38] sm:$0xf]
        %v206 = vld [vmem:[%s1 + $0x3c] sm:$0xf]
        %v239 = vunpack.c.l.b16 %v159
        %v240 = vunpack.c.l.b16 %v160
        %v241 = vunpack.c.l.b16 %v161
        %v242 = vunpack.c.l.b16 %v162
        %v243 = vunpack.c.l.b16 %v163
        %v244 = vunpack.c.l.b16 %v164
        %v245 = vunpack.c.l.b16 %v165
        %v246 = vunpack.c.l.b16 %v166
        %v247 = vunpack.c.l.b16 %v167
        %v248 = vunpack.c.l.b16 %v168
        %v249 = vunpack.c.l.b16 %v169
        %v250 = vunpack.c.l.b16 %v170
        %v251 = vunpack.c.l.b16 %v171
        %v252 = vunpack.c.l.b16 %v172
        %v253 = vunpack.c.l.b16 %v173
        %v254 = vunpack.c.l.b16 %v174
        %v255 = vunpack.c.l.b16 %v175
        %v256 = vunpack.c.l.b16 %v176
        %v257 = vunpack.c.l.b16 %v177
        %v258 = vunpack.c.l.b16 %v178
        %v259 = vunpack.c.l.b16 %v179
        %v260 = vunpack.c.l.b16 %v180
        %v261 = vunpack.c.l.b16 %v181
        %v262 = vunpack.c.l.b16 %v182
        %v263 = vunpack.c.l.b16 %v183
        %v264 = vunpack.c.l.b16 %v184
        %v265 = vunpack.c.l.b16 %v185
        %v266 = vunpack.c.l.b16 %v186
        %v267 = vunpack.c.l.b16 %v187
        %v268 = vunpack.c.l.b16 %v188
        %v269 = vunpack.c.l.b16 %v189
        %v270 = vunpack.c.l.b16 %v190
        %v271 = vpack.c.b16 %v240, %v239
        %v272 = vpack.c.b16 %v242, %v241
        %v273 = vpack.c.b16 %v244, %v243
        %v274 = vpack.c.b16 %v246, %v245
        %v275 = vpack.c.b16 %v248, %v247
        %v276 = vpack.c.b16 %v250, %v249
        %v277 = vpack.c.b16 %v252, %v251
        %v278 = vpack.c.b16 %v254, %v253
        %v279 = vpack.c.b16 %v256, %v255
        %v280 = vpack.c.b16 %v258, %v257
        %v281 = vpack.c.b16 %v260, %v259
        %v282 = vpack.c.b16 %v262, %v261
        %v283 = vpack.c.b16 %v264, %v263
        %v284 = vpack.c.b16 %v266, %v265
        %v285 = vpack.c.b16 %v268, %v267
        %v286 = vpack.c.b16 %v270, %v269
        %v319 = vunpack.c.l.b16 %v191
        %v320 = vunpack.c.l.b16 %v192
        %v321 = vunpack.c.l.b16 %v193
        %v322 = vunpack.c.l.b16 %v194
        %v323 = vunpack.c.l.b16 %v195
        %v324 = vunpack.c.l.b16 %v196
        %v325 = vunpack.c.l.b16 %v197
        %v326 = vunpack.c.l.b16 %v198
        %v327 = vunpack.c.l.b16 %v199
        %v328 = vunpack.c.l.b16 %v200
        %v329 = vunpack.c.l.b16 %v201
        %v330 = vunpack.c.l.b16 %v202
        %v331 = vunpack.c.l.b16 %v203
        %v332 = vunpack.c.l.b16 %v204
        %v333 = vunpack.c.l.b16 %v205
        %v334 = vunpack.c.l.b16 %v206
        %v335 = vpack.c.b16 %v320, %v319
        %v336 = vpack.c.b16 %v322, %v321
        %v337 = vpack.c.b16 %v324, %v323
        %v338 = vpack.c.b16 %v326, %v325
        %v339 = vpack.c.b16 %v328, %v327
        %v340 = vpack.c.b16 %v330, %v329
        %v341 = vpack.c.b16 %v332, %v331
        %v342 = vpack.c.b16 %v334, %v333
        %351 = vmatprep.subr.bf16.mxu0 0
        %352 = vmatpush1.bf16.msra.mxu0 %v335
        %353 = vmatprep.subr.bf16.mxu0 0
        %354 = vmatpush1.bf16.msra.mxu0 %v336
        %355 = vmatprep.subr.bf16.mxu0 0
        %356 = vmatpush1.bf16.msra.mxu0 %v337
        %357 = vmatprep.subr.bf16.mxu0 0
        %358 = vmatpush1.bf16.msra.mxu0 %v338
        %359 = vmatprep.subr.bf16.mxu0 0
        %360 = vmatpush1.bf16.msra.mxu0 %v339
        %361 = vmatprep.subr.bf16.mxu0 0
        %362 = vmatpush1.bf16.msra.mxu0 %v340
        %363 = vmatprep.subr.bf16.mxu0 0
        %364 = vmatpush1.bf16.msra.mxu0 %v341
        %365 = vmatprep.subr.bf16.mxu0 0
        %366 = vmatpush1.bf16.msra.mxu0 %v342
        %367 = vmatprep.subr.bf16.mxu0 0
        %368 = vmatpush1.bf16.msra.mxu0 0
        %369 = vmatprep.subr.bf16.mxu0 0
        %370 = vmatpush1.bf16.msra.mxu0 0
        %371 = vmatprep.subr.bf16.mxu0 0
        %372 = vmatpush1.bf16.msra.mxu0 0
        %373 = vmatprep.subr.bf16.mxu0 0
        %374 = vmatpush1.bf16.msra.mxu0 0
        %375 = vmatprep.subr.bf16.mxu0 0
        %376 = vmatpush1.bf16.msra.mxu0 0
        %377 = vmatprep.subr.bf16.mxu0 0
        %378 = vmatpush1.bf16.msra.mxu0 0
        %379 = vmatprep.subr.bf16.mxu0 0
        %380 = vmatpush1.bf16.msra.mxu0 0
        %381 = vmatprep.subr.bf16.mxu0 0
        %382 = vmatpush1.bf16.msra.mxu0 0
        %383 = vmatprep.mubr.bf16.mxu0 0
        %384 = vmatmul.mubr.bf16.gmra.mrb[0].mxu0 %v271
        %v385 = vpop.f32.mrb[0].mxu0
        %v386 = vadd.f32 0.0, %v385
        %v387 = vpop.f32.mrb[0].mxu0
        %v388 = vpop.f32.mrb[0].mxu0
        %v389 = vadd.f32 0.0, %v388
        %v390 = vpop.f32.mrb[0].mxu0
        %391 = vmatprep.mubr.bf16.mxu0 0
        %392 = vmatmul.mubr.bf16.gmra.mrb[0].mxu0 %v272
        %v393 = vpop.f32.mrb[0].mxu0
        %v394 = vadd.f32 0.0, %v393
        %v395 = vpop.f32.mrb[0].mxu0
        %v396 = vpop.f32.mrb[0].mxu0
        %v397 = vadd.f32 0.0, %v396
        %v398 = vpop.f32.mrb[0].mxu0
        %399 = vmatprep.mubr.bf16.mxu0 0
        %400 = vmatmul.mubr.bf16.gmra.mrb[0].mxu0 %v273
        %v401 = vpop.f32.mrb[0].mxu0
        %v402 = vadd.f32 0.0, %v401
        %v403 = vpop.f32.mrb[0].mxu0
        %v404 = vpop.f32.mrb[0].mxu0
        %v405 = vadd.f32 0.0, %v404
        %v406 = vpop.f32.mrb[0].mxu0
        %407 = vmatprep.mubr.bf16.mxu0 0
        %408 = vmatmul.mubr.bf16.gmra.mrb[0].mxu0 %v274
        %v409 = vpop.f32.mrb[0].mxu0
        %v410 = vadd.f32 0.0, %v409
        %v411 = vpop.f32.mrb[0].mxu0
        %v412 = vpop.f32.mrb[0].mxu0
        %v413 = vadd.f32 0.0, %v412
        %v414 = vpop.f32.mrb[0].mxu0
        %415 = vmatprep.mubr.bf16.mxu0 0
        %416 = vmatmul.mubr.bf16.gmra.mrb[0].mxu0 %v275
        %v417 = vpop.f32.mrb[0].mxu0
        %v418 = vadd.f32 0.0, %v417
        %v419 = vpop.f32.mrb[0].mxu0
        %v420 = vpop.f32.mrb[0].mxu0
        %v421 = vadd.f32 0.0, %v420
        %v422 = vpop.f32.mrb[0].mxu0
        %423 = vmatprep.mubr.bf16.mxu0 0
        %424 = vmatmul.mubr.bf16.gmra.mrb[0].mxu0 %v276
        %v425 = vpop.f32.mrb[0].mxu0
        %v426 = vadd.f32 0.0, %v425
        %v427 = vpop.f32.mrb[0].mxu0
        %v428 = vpop.f32.mrb[0].mxu0
        %v429 = vadd.f32 0.0, %v428
        %v430 = vpop.f32.mrb[0].mxu0
        %431 = vmatprep.mubr.bf16.mxu0 0
        %432 = vmatmul.mubr.bf16.gmra.mrb[0].mxu0 %v277
        %v433 = vpop.f32.mrb[0].mxu0
        %v434 = vadd.f32 0.0, %v433
        %v435 = vpop.f32.mrb[0].mxu0
        %v436 = vpop.f32.mrb[0].mxu0
        %v437 = vadd.f32 0.0, %v436
        %v438 = vpop.f32.mrb[0].mxu0
        %439 = vmatprep.mubr.bf16.mxu0 0
        %440 = vmatmul.mubr.bf16.gmra.mrb[0].mxu0 %v278
        %v441 = vpop.f32.mrb[0].mxu0
        %v442 = vadd.f32 0.0, %v441
        %v443 = vpop.f32.mrb[0].mxu0
        %v444 = vpop.f32.mrb[0].mxu0
        %v445 = vadd.f32 0.0, %v444
        %v446 = vpop.f32.mrb[0].mxu0
        %447 = vmatprep.mubr.bf16.mxu0 0
        %448 = vmatmul.mubr.bf16.gmra.mrb[0].mxu0 %v279
        %v449 = vpop.f32.mrb[0].mxu0
        %v450 = vadd.f32 0.0, %v449
        %v451 = vpop.f32.mrb[0].mxu0
        %v452 = vpop.f32.mrb[0].mxu0
        %v453 = vadd.f32 0.0, %v452
        %v454 = vpop.f32.mrb[0].mxu0
        %455 = vmatprep.mubr.bf16.mxu0 0
        %456 = vmatmul.mubr.bf16.gmra.mrb[0].mxu0 %v280
        %v457 = vpop.f32.mrb[0].mxu0
        %v458 = vadd.f32 0.0, %v457
        %v459 = vpop.f32.mrb[0].mxu0
        %v460 = vpop.f32.mrb[0].mxu0
        %v461 = vadd.f32 0.0, %v460
        %v462 = vpop.f32.mrb[0].mxu0
        %463 = vmatprep.mubr.bf16.mxu0 0
        %464 = vmatmul.mubr.bf16.gmra.mrb[0].mxu0 %v281
        %v465 = vpop.f32.mrb[0].mxu0
        %v466 = vadd.f32 0.0, %v465
        %v467 = vpop.f32.mrb[0].mxu0
        %v468 = vpop.f32.mrb[0].mxu0
        %v469 = vadd.f32 0.0, %v468
        %v470 = vpop.f32.mrb[0].mxu0
        %471 = vmatprep.mubr.bf16.mxu0 0
        %472 = vmatmul.mubr.bf16.gmra.mrb[0].mxu0 %v282
        %v473 = vpop.f32.mrb[0].mxu0
        %v474 = vadd.f32 0.0, %v473
        %v475 = vpop.f32.mrb[0].mxu0
        %v476 = vpop.f32.mrb[0].mxu0
        %v477 = vadd.f32 0.0, %v476
        %v478 = vpop.f32.mrb[0].mxu0
        %479 = vmatprep.mubr.bf16.mxu0 0
        %480 = vmatmul.mubr.bf16.gmra.mrb[0].mxu0 %v283
        %v481 = vpop.f32.mrb[0].mxu0
        %v482 = vadd.f32 0.0, %v481
        %v483 = vpop.f32.mrb[0].mxu0
        %v484 = vpop.f32.mrb[0].mxu0
        %v485 = vadd.f32 0.0, %v484
        %v486 = vpop.f32.mrb[0].mxu0
        %487 = vmatprep.mubr.bf16.mxu0 0
        %488 = vmatmul.mubr.bf16.gmra.mrb[0].mxu0 %v284
        %v489 = vpop.f32.mrb[0].mxu0
        %v490 = vadd.f32 0.0, %v489
        %v491 = vpop.f32.mrb[0].mxu0
        %v492 = vpop.f32.mrb[0].mxu0
        %v493 = vadd.f32 0.0, %v492
        %v494 = vpop.f32.mrb[0].mxu0
        %495 = vmatprep.mubr.bf16.mxu0 0
        %496 = vmatmul.mubr.bf16.gmra.mrb[0].mxu0 %v285
        %v497 = vpop.f32.mrb[0].mxu0
        %v498 = vadd.f32 0.0, %v497
        %v499 = vpop.f32.mrb[0].mxu0
        %v500 = vpop.f32.mrb[0].mxu0
        %v501 = vadd.f32 0.0, %v500
        %v502 = vpop.f32.mrb[0].mxu0
        %503 = vmatprep.mubr.bf16.mxu0 0
        %504 = vmatmul.mubr.bf16.gmra.mrb[0].mxu0 %v286
        %v505 = vpop.f32.mrb[0].mxu0
        %v506 = vadd.f32 0.0, %v505
        %v507 = vpop.f32.mrb[0].mxu0
        %v508 = vpop.f32.mrb[0].mxu0
        %v509 = vadd.f32 0.0, %v508
        %v510 = vpop.f32.mrb[0].mxu0
        %511 = vdwg.mxu0
        %v512 = vtanh.pop %v386
        %v513 = vtanh.pop %v389
        %v514 = vtanh.pop %v394
        %v515 = vtanh.pop %v397
        %v516 = vtanh.pop %v402
        %v517 = vtanh.pop %v405
        %v518 = vtanh.pop %v410
        %v519 = vtanh.pop %v413
        %v520 = vtanh.pop %v418
        %v521 = vtanh.pop %v421
        %v522 = vtanh.pop %v426
        %v523 = vtanh.pop %v429
        %v524 = vtanh.pop %v434
        %v525 = vtanh.pop %v437
        %v526 = vtanh.pop %v442
        %v527 = vtanh.pop %v445
        %v528 = vtanh.pop %v450
        %v529 = vtanh.pop %v453
        %v530 = vtanh.pop %v458
        %v531 = vtanh.pop %v461
        %v532 = vtanh.pop %v466
        %v533 = vtanh.pop %v469
        %v534 = vtanh.pop %v474
        %v535 = vtanh.pop %v477
        %v536 = vtanh.pop %v482
        %v537 = vtanh.pop %v485
        %v538 = vtanh.pop %v490
        %v539 = vtanh.pop %v493
        %v540 = vtanh.pop %v498
        %v541 = vtanh.pop %v501
        %v542 = vtanh.pop %v506
        %v543 = vtanh.pop %v509
        %v544 = vpack.c.bf16 %v513, %v512
        %v545 = vpack.c.bf16 %v515, %v514
        %v546 = vpack.c.bf16 %v517, %v516
        %v547 = vpack.c.bf16 %v519, %v518
        %v548 = vpack.c.bf16 %v521, %v520
        %v549 = vpack.c.bf16 %v523, %v522
        %v550 = vpack.c.bf16 %v525, %v524
        %v551 = vpack.c.bf16 %v527, %v526
        %v552 = vpack.c.bf16 %v529, %v528
        %v553 = vpack.c.bf16 %v531, %v530
        %v554 = vpack.c.bf16 %v533, %v532
        %v555 = vpack.c.bf16 %v535, %v534
        %v556 = vpack.c.bf16 %v537, %v536
        %v557 = vpack.c.bf16 %v539, %v538
        %v558 = vpack.c.bf16 %v541, %v540
        %v559 = vpack.c.bf16 %v543, %v542
        %v576 = vunpack.c.l.b16 %v544
        %v577 = vunpack.c.h.b16 %v544
        %v578 = vunpack.c.l.b16 %v545
        %v579 = vunpack.c.h.b16 %v545
        %v580 = vunpack.c.l.b16 %v546
        %v581 = vunpack.c.h.b16 %v546
        %v582 = vunpack.c.l.b16 %v547
        %v583 = vunpack.c.h.b16 %v547
        %v584 = vunpack.c.l.b16 %v548
        %v585 = vunpack.c.h.b16 %v548
        %v586 = vunpack.c.l.b16 %v549
        %v587 = vunpack.c.h.b16 %v549
        %v588 = vunpack.c.l.b16 %v550
        %v589 = vunpack.c.h.b16 %v550
        %v590 = vunpack.c.l.b16 %v551
        %v591 = vunpack.c.h.b16 %v551
        %v592 = vunpack.c.l.b16 %v552
        %v593 = vunpack.c.h.b16 %v552
        %v594 = vunpack.c.l.b16 %v553
        %v595 = vunpack.c.h.b16 %v553
        %v596 = vunpack.c.l.b16 %v554
        %v597 = vunpack.c.h.b16 %v554
        %v598 = vunpack.c.l.b16 %v555
        %v599 = vunpack.c.h.b16 %v555
        %v600 = vunpack.c.l.b16 %v556
        %v601 = vunpack.c.h.b16 %v556
        %v602 = vunpack.c.l.b16 %v557
        %v603 = vunpack.c.h.b16 %v557
        %v604 = vunpack.c.l.b16 %v558
        %v605 = vunpack.c.h.b16 %v558
        %v606 = vunpack.c.l.b16 %v559
        %v607 = vunpack.c.h.b16 %v559
        %v608 = vpack.c.b16 %v576, %v576
        %v609 = vpack.c.b16 %v577, %v577
        %v610 = vpack.c.b16 %v578, %v578
        %v611 = vpack.c.b16 %v579, %v579
        %v612 = vpack.c.b16 %v580, %v580
        %v613 = vpack.c.b16 %v581, %v581
        %v614 = vpack.c.b16 %v582, %v582
        %v615 = vpack.c.b16 %v583, %v583
        %v616 = vpack.c.b16 %v584, %v584
        %v617 = vpack.c.b16 %v585, %v585
        %v618 = vpack.c.b16 %v586, %v586
        %v619 = vpack.c.b16 %v587, %v587
        %v620 = vpack.c.b16 %v588, %v588
        %v621 = vpack.c.b16 %v589, %v589
        %v622 = vpack.c.b16 %v590, %v590
        %v623 = vpack.c.b16 %v591, %v591
        %v624 = vpack.c.b16 %v592, %v592
        %v625 = vpack.c.b16 %v593, %v593
        %v626 = vpack.c.b16 %v594, %v594
        %v627 = vpack.c.b16 %v595, %v595
        %v628 = vpack.c.b16 %v596, %v596
        %v629 = vpack.c.b16 %v597, %v597
        %v630 = vpack.c.b16 %v598, %v598
        %v631 = vpack.c.b16 %v599, %v599
        %v632 = vpack.c.b16 %v600, %v600
        %v633 = vpack.c.b16 %v601, %v601
        %v634 = vpack.c.b16 %v602, %v602
        %v635 = vpack.c.b16 %v603, %v603
        %v636 = vpack.c.b16 %v604, %v604
        %v637 = vpack.c.b16 %v605, %v605
        %v638 = vpack.c.b16 %v606, %v606
        %v639 = vpack.c.b16 %v607, %v607
        %s672 = smul.addr %s155, 4
        %s673 = scalar_lea.vmem %s145, %s672
        %674 = vst [vmem:[%s673] sm:$0xf] %v608
        %675 = vst [vmem:[%s673 + $0x4] sm:$0xf] %v609
        %676 = vst [vmem:[%s673 + $0x8] sm:$0xf] %v610
        %677 = vst [vmem:[%s673 + $0xc] sm:$0xf] %v611
        %678 = vst [vmem:[%s673 + $0x10] sm:$0xf] %v612
        %679 = vst [vmem:[%s673 + $0x14] sm:$0xf] %v613
        %680 = vst [vmem:[%s673 + $0x18] sm:$0xf] %v614
        %681 = vst [vmem:[%s673 + $0x1c] sm:$0xf] %v615
        %682 = vst [vmem:[%s673 + $0x20] sm:$0xf] %v616
        %683 = vst [vmem:[%s673 + $0x24] sm:$0xf] %v617
        %684 = vst [vmem:[%s673 + $0x28] sm:$0xf] %v618
        %685 = vst [vmem:[%s673 + $0x2c] sm:$0xf] %v619
        %686 = vst [vmem:[%s673 + $0x30] sm:$0xf] %v620
        %687 = vst [vmem:[%s673 + $0x34] sm:$0xf] %v621
        %688 = vst [vmem:[%s673 + $0x38] sm:$0xf] %v622
        %689 = vst [vmem:[%s673 + $0x3c] sm:$0xf] %v623
        %690 = vst [vmem:[%s673 + $0x40] sm:$0xf] %v624
        %691 = vst [vmem:[%s673 + $0x44] sm:$0xf] %v625
        %692 = vst [vmem:[%s673 + $0x48] sm:$0xf] %v626
        %693 = vst [vmem:[%s673 + $0x4c] sm:$0xf] %v627
        %694 = vst [vmem:[%s673 + $0x50] sm:$0xf] %v628
        %695 = vst [vmem:[%s673 + $0x54] sm:$0xf] %v629
        %696 = vst [vmem:[%s673 + $0x58] sm:$0xf] %v630
        %697 = vst [vmem:[%s673 + $0x5c] sm:$0xf] %v631
        %698 = vst [vmem:[%s673 + $0x60] sm:$0xf] %v632
        %699 = vst [vmem:[%s673 + $0x64] sm:$0xf] %v633
        %700 = vst [vmem:[%s673 + $0x68] sm:$0xf] %v634
        %701 = vst [vmem:[%s673 + $0x6c] sm:$0xf] %v635
        %702 = vst [vmem:[%s673 + $0x70] sm:$0xf] %v636
        %703 = vst [vmem:[%s673 + $0x74] sm:$0xf] %v637
        %704 = vst [vmem:[%s673 + $0x78] sm:$0xf] %v638
        %705 = vst [vmem:[%s673 + $0x7c] sm:$0xf] %v639
      $region33: #{generator_forward.9} parent=27 // loop_footer
        %s153 = sadd.s32 1, %s149
      $region34: #{generator_forward.9} parent=27 // loop_footer_branch
        %148 = sbr.rel target = $region30
      $region35: #{generator_forward.9} parent=27 // loop_exit
        _
      %s706 = smul.u32 256, %s13
      %p707 = scmp.lt.s32.totalorder %s706, 1023
      %s708 = scalar_select %p707, %s706, 1023
      %s709 = smul.addr %s708, 4
      %s710 = scalar_lea.vmem %s2, %s709
      // Predicated region
      $region36: #{generator_forward.9} parent=27 // pred_check
        %p711 = pneg %p78
      $region37: #{generator_forward.9} parent=27 // pred_check_branch
        %713 = sbr.rel (%p711) target = $region39
      $region38: #{generator_forward.9} parent=27 // pred_region
        %s714 = smul.u32 256, %s13
      $region39: #{generator_forward.9} parent=27 // pred_fallthru
        _
    $region28: #{generator_forward.9} parent=5 // pred_fallthru
      _
    %p715 = scmp.le.s32.totalorder 2, %s8
    // Predicated region
    $region40: #{generator_forward.9} parent=5 // pred_check
      %p716 = pneg %p715
    $region41: #{generator_forward.9} parent=5 // pred_check_branch
      %718 = sbr.rel (%p716) target = $region43
    $region42: #{generator_forward.9} parent=5 // pred_region
      %s719 = ssub.s32 %s8, 2
      // Predicated region
      $region44: #{generator_forward.9} parent=42 // pred_check
        %p720 = pneg %p84
      $region45: #{generator_forward.9} parent=42 // pred_check_branch
        %722 = sbr.rel (%p720) target = $region47
      $region46: #{generator_forward.9} parent=42 // pred_region
        %s723 = smul.u32 256, %s14
        %p724 = scmp.lt.s32.totalorder %s723, 1023
        %s725 = scalar_select %p724, %s723, 1023
        %s726 = smul.addr %s725, 4
        %s727 = scalar_lea.vmem %s2, %s726
      $region47: #{generator_forward.9} parent=42 // pred_fallthru
        _
    $region43: #{generator_forward.9} parent=5 // pred_fallthru
      _
  $region6: #{generator_forward.9} parent=0 // loop_footer
    %s12 = sadd.s32 1, %s8
  $region7: #{generator_forward.9} parent=0 // loop_footer_branch
    %7 = sbr.rel target = $region3
  $region8: #{generator_forward.9} parent=0 // loop_exit
    _

</llo_original>
